<compile_context>
chip_gen: v5e
topology: v5e:2x2
jax: 0.10.0
libtpu: 0.0.40
codegen_flags: <defaults>
</compile_context>

<pallas_src>
import functools

import jax
import jax.numpy as jnp
from jax.experimental import pallas as pl
from jax.experimental.pallas import tpu as pltpu


def _round_up(x, m):
    return (x + m - 1) // m * m


def _cdiv(a, b):
    return (a + b - 1) // b


_TM_MAX = 1024        # max lane-tile width (multiple of 128)


# ---------------------------------------------------------------------------
# Pallas kernel: one conv layer as a sum of shifted matmuls (+ bias + ReLU)
# ---------------------------------------------------------------------------
def _conv_shift_kernel(a_ref, h_ref, w_ref, b_ref, o_ref, buf_ref,
                       *, shifts, tm, dpad):
    # a_ref  : (K0, tm)        bf16   this tile of the flattened activation
    # h_ref  : (K0, dpad)      bf16   halo: first dpad columns of the next tile
    # w_ref  : (T, Cout, K0)   bf16   per-offset weight slabs
    # b_ref  : (Cout, 1)       f32    bias
    # o_ref  : (Cout, tm)      out    lane-dense output tile
    # buf_ref: (K0, tm+dpad)   bf16   VMEM staging: tile ++ halo (contiguous)
    buf_ref[:, :tm] = a_ref[...]
    buf_ref[:, tm:tm + dpad] = h_ref[...]
    cout = o_ref.shape[0]
    acc = jnp.zeros((cout, tm), jnp.float32)
    for t, d in enumerate(shifts):           # static, fully unrolled (<= 9)
        acc = acc + jnp.dot(w_ref[t], buf_ref[:, d:d + tm],
                            preferred_element_type=jnp.float32)
    acc = acc + b_ref[...]                   # (Cout, 1) lane-broadcast
    o_ref[...] = jnp.maximum(acc, 0.0).astype(o_ref.dtype)


# ---------------------------------------------------------------------------
# One conv + ReLU layer (space-to-depth JAX glue + shift-matmul kernel)
# ---------------------------------------------------------------------------
def conv2d_relu_pallas(a_cbhw, w, bias, stride, *, out_dtype):
    """Valid conv + ReLU.

    a_cbhw: (Cin, B, H, W) activation (bf16), w: (Cout, Cin, kh, kw) f32,
    bias: (Cout,) f32.  Returns (Cout, B, OH, OW) in `out_dtype`.
    """
    Cout, Cin, kh, kw = w.shape
    C, B, H, W = a_cbhw.shape
    assert C == Cin
    s = stride
    assert kh % s == 0 and kw % s == 0, "kernel size must be a multiple of stride"
    OH = (H - kh) // s + 1
    OW = (W - kw) // s + 1
    # Crop to the region reachable by valid windows -> H, W multiples of s.
    Hc, Wc = s * (OH - 1) + kh, s * (OW - 1) + kw
    a = a_cbhw[:, :, :Hc, :Wc]

    # --- space-to-depth: stride-s conv -> stride-1 conv with ka x kb kernel --
    Hs, Ws = Hc // s, Wc // s
    ka, kb = kh // s, kw // s
    K0 = s * s * Cin
    L = B * Hs * Ws
    a = a.reshape(Cin, B, Hs, s, Ws, s).transpose(3, 5, 0, 1, 2, 4)  # (p,q,c,B,Hs,Ws)
    a2 = a.reshape(K0, L)                    # lanes = flat (b, h', w'), row pitch Ws

    # Weights -> (T, Cout, K0), T = ka*kb offsets, K0 order = (p, q, c).
    # (Constant-folded under jit: params are closure constants.)
    wr = w.reshape(Cout, Cin, ka, s, kb, s).transpose(2, 4, 0, 3, 5, 1)
    wr = wr.reshape(ka * kb, Cout, K0).astype(jnp.bfloat16)
    b2 = bias.reshape(Cout, 1).astype(jnp.float32)

    # --- shift table, lane tiling, halo padding ------------------------------
    shifts = tuple(ia * Ws + ib for ia in range(ka) for ib in range(kb))
    dmax = shifts[-1]
    dpad = _round_up(max(dmax, 1), 128)      # halo width / tile granularity
    gran = dpad
    Lr = _round_up(L, gran)
    if Lr <= gran:
        tm = gran
    elif Lr <= 2 * _TM_MAX:
        tm = _round_up(_cdiv(Lr, 2), gran)   # >= 2 grid steps -> both v7x cores
    else:
        tm = _round_up(_TM_MAX, gran)
    nt = _cdiv(L, tm)
    halo_step = tm // dpad
    Lpad = nt * tm + dpad
    a2 = jnp.pad(a2.astype(jnp.bfloat16), ((0, 0), (0, Lpad - L)))

    kernel = functools.partial(_conv_shift_kernel, shifts=shifts, tm=tm, dpad=dpad)
    out_itemsize = jnp.dtype(out_dtype).itemsize
    cost = pl.CostEstimate(
        flops=2 * Cout * kh * kw * Cin * L,
        transcendentals=0,
        bytes_accessed=(a2.size * 2 + wr.size * 2 + b2.size * 4
                        + Cout * L * out_itemsize),
    )
    out = pl.pallas_call(
        kernel,
        out_shape=jax.ShapeDtypeStruct((Cout, L), out_dtype),
        grid=(nt,),
        in_specs=[
            pl.BlockSpec((K0, tm), lambda m: (0, m)),
            pl.BlockSpec((K0, dpad), lambda m: (0, (m + 1) * halo_step)),
            pl.BlockSpec((ka * kb, Cout, K0), lambda m: (0, 0, 0)),
            pl.BlockSpec((Cout, 1), lambda m: (0, 0)),
        ],
        out_specs=pl.BlockSpec((Cout, tm), lambda m: (0, m)),
        scratch_shapes=[pltpu.VMEM((K0, tm + dpad), jnp.bfloat16)],
        compiler_params=pltpu.CompilerParams(
            dimension_semantics=("parallel",),
            vmem_limit_bytes=32 * 1024 * 1024),
        cost_estimate=cost,
    )(a2, a2, wr, b2)

    # Valid outputs live at flat columns b*Hs*Ws + oh*Ws + ow (input pitch);
    # columns whose window wrapped across a row/image edge are discarded here.
    out = out.reshape(Cout, B, Hs, Ws)[:, :, :OH, :OW]
    return out


# ---------------------------------------------------------------------------
# CNNOnly forward (NatureCNN conv stack + Flatten)
# ---------------------------------------------------------------------------
def cnn_only_forward(x, params):
    """x: (B, C, H, W) f32 -> (B, features) f32."""
    (w1, b1), (w2, b2), (w3, b3) = params
    a = jnp.transpose(x.astype(jnp.bfloat16), (1, 0, 2, 3))   # (C, B, H, W)
    a = conv2d_relu_pallas(a, w1, b1, 4, out_dtype=jnp.bfloat16)
    a = conv2d_relu_pallas(a, w2, b2, 2, out_dtype=jnp.bfloat16)
    a = conv2d_relu_pallas(a, w3, b3, 1, out_dtype=jnp.float32)  # (64, B, OH3, OW3)
    Bsz = x.shape[0]
    # nn.Flatten on NCHW: (B, C*H*W), channel-major.
    return jnp.transpose(a, (1, 0, 2, 3)).reshape(Bsz, -1)


# ---------------------------------------------------------------------------
# Pure-JAX reference (for correctness check)
# ---------------------------------------------------------------------------
def _conv_ref(x, w, b, stride):
    y = jax.lax.conv_general_dilated(
        x, w, window_strides=(stride, stride), padding="VALID",
        dimension_numbers=("NCHW", "OIHW", "NCHW"))
    return jnp.maximum(y + b.reshape(1, -1, 1, 1), 0.0)


def cnn_only_ref(x, params):
    (w1, b1), (w2, b2), (w3, b3) = params
    h = _conv_ref(x, w1, b1, 4)
    h = _conv_ref(h, w2, b2, 2)
    h = _conv_ref(h, w3, b3, 1)
    return h.reshape(h.shape[0], -1)


# ---------------------------------------------------------------------------
# Deterministic parameter init
# ---------------------------------------------------------------------------
def init_params(key, c_in):
    shapes = [
        ((32, c_in, 8, 8), (32,)),
        ((64, 32, 4, 4), (64,)),
        ((64, 64, 3, 3), (64,)),
    ]
    params = []
    for i, (ws, bs) in enumerate(shapes):
        kw, kb = jax.random.split(jax.random.fold_in(key, i))
        fan_in = ws[1] * ws[2] * ws[3]
        scale = 1.0 / jnp.sqrt(jnp.float32(fan_in))
        w = jax.random.uniform(kw, ws, jnp.float32, -scale, scale)
        b = jax.random.uniform(kb, bs, jnp.float32, -scale, scale)
        params.append((w, b))
    return params


if __name__ == "__main__":
    key = jax.random.PRNGKey(0)
    # 36x36 is the smallest spatial size the NatureCNN stack accepts.
    B, C, H, W = 2, 4, 36, 36
    x = jax.random.uniform(jax.random.fold_in(key, 100), (B, C, H, W),
                           jnp.float32)
    params = init_params(jax.random.fold_in(key, 200), C)

    fwd = jax.jit(functools.partial(cnn_only_forward, params=params))
    out = fwd(x)
    jax.block_until_ready(out)

    ref = cnn_only_ref(x, params)
    assert out.shape == ref.shape == (B, 64)  # 64ch * 1 * 1 after three convs
    # bf16 operands (f32 accumulation) -> loosened tolerance vs f32 reference.
    assert jnp.allclose(out, ref, atol=5e-2, rtol=5e-2), "mismatch vs reference"

    print("KERNEL_OK")
</pallas_src>

<mosaic_0001>
module attributes {stable_mosaic.version = 11 : i64} {
  func.func @_conv_shift_kernel(%arg0: i32, %arg1: memref<64x128xbf16, #tpu.memory_space<vmem>>, %arg2: memref<64x128xbf16, #tpu.memory_space<vmem>>, %arg3: memref<4x32x64xbf16, #tpu.memory_space<vmem>>, %arg4: memref<32x1xf32, #tpu.memory_space<vmem>>, %arg5: memref<32x128xbf16, #tpu.memory_space<vmem>>, %arg6: memref<64x256xbf16, #tpu.memory_space<vmem>>) attributes {dimension_semantics = [#tpu.dimension_semantics<parallel>], iteration_bounds = array<i64: 2>, scalar_prefetch = 0 : i64, scratch_operands = 1 : i64, tpu.core_type = #tpu.core_type<tc>, window_params = [{transform_indices = @transform_0, window_bounds = array<i64: 64, 128>}, {transform_indices = @transform_1, window_bounds = array<i64: 64, 128>}, {pipeline_mode = #tpu.pipeline_mode<synchronous>, transform_indices = @transform_2, window_bounds = array<i64: 4, 32, 64>}, {pipeline_mode = #tpu.pipeline_mode<synchronous>, transform_indices = @transform_3, window_bounds = array<i64: 32, 1>}, {transform_indices = @transform_4, window_bounds = array<i64: 32, 128>}]} {
    %c0 = arith.constant 0 : index
    %c0_0 = arith.constant 0 : index
    %0 = vector.load %arg1[%c0, %c0_0] : memref<64x128xbf16, #tpu.memory_space<vmem>>, vector<64x128xbf16>
    %c0_1 = arith.constant 0 : index
    %c0_2 = arith.constant 0 : index
    %1 = vector.load %arg6[%c0_1, %c0_2] : memref<64x256xbf16, #tpu.memory_space<vmem>>, vector<64x128xbf16>
    tpu.vector_store %arg6[%c0_1, %c0_2], %0 {strides = array<i32>} : memref<64x256xbf16, #tpu.memory_space<vmem>>, vector<64x128xbf16>,
    %c0_3 = arith.constant 0 : index
    %c0_4 = arith.constant 0 : index
    %2 = vector.load %arg2[%c0_3, %c0_4] : memref<64x128xbf16, #tpu.memory_space<vmem>>, vector<64x128xbf16>
    %c0_5 = arith.constant 0 : index
    %c128 = arith.constant 128 : index
    %3 = vector.load %arg6[%c0_5, %c128] : memref<64x256xbf16, #tpu.memory_space<vmem>>, vector<64x128xbf16>
    tpu.vector_store %arg6[%c0_5, %c128], %2 {strides = array<i32>} : memref<64x256xbf16, #tpu.memory_space<vmem>>, vector<64x128xbf16>,
    %cst = arith.constant 0.000000e+00 : f32
    %4 = vector.broadcast %cst : f32 to vector<32x128xf32>
    %c0_6 = arith.constant 0 : index
    %c0_7 = arith.constant 0 : index
    %c0_8 = arith.constant 0 : index
    %5 = vector.load %arg3[%c0_6, %c0_7, %c0_8] : memref<4x32x64xbf16, #tpu.memory_space<vmem>>, vector<1x32x64xbf16>
    %6 = vector.shape_cast %5 : vector<1x32x64xbf16> to vector<32x64xbf16>
    %c0_9 = arith.constant 0 : index
    %c0_10 = arith.constant 0 : index
    %7 = vector.load %arg6[%c0_9, %c0_10] : memref<64x256xbf16, #tpu.memory_space<vmem>>, vector<64x128xbf16>
    %cst_11 = arith.constant dense<0.000000e+00> : vector<32x128xf32>
    %8 = tpu.matmul %6, %7, %cst_11 {dimension_numbers = #tpu.dot_dimension_numbers<[1], [0], [0], [1], [0, 0, 1, 1], [], []>} : vector<32x64xbf16>, vector<64x128xbf16>, vector<32x128xf32> -> vector<32x128xf32>
    %9 = arith.addf %4, %8 : vector<32x128xf32>
    %c1 = arith.constant 1 : index
    %c0_12 = arith.constant 0 : index
    %c0_13 = arith.constant 0 : index
    %10 = vector.load %arg3[%c1, %c0_12, %c0_13] : memref<4x32x64xbf16, #tpu.memory_space<vmem>>, vector<1x32x64xbf16>
    %11 = vector.shape_cast %10 : vector<1x32x64xbf16> to vector<32x64xbf16>
    %c0_14 = arith.constant 0 : index
    %c1_15 = arith.constant 1 : index
    %12 = vector.load %arg6[%c0_14, %c1_15] : memref<64x256xbf16, #tpu.memory_space<vmem>>, vector<64x128xbf16>
    %cst_16 = arith.constant dense<0.000000e+00> : vector<32x128xf32>
    %13 = tpu.matmul %11, %12, %cst_16 {dimension_numbers = #tpu.dot_dimension_numbers<[1], [0], [0], [1], [0, 0, 1, 1], [], []>} : vector<32x64xbf16>, vector<64x128xbf16>, vector<32x128xf32> -> vector<32x128xf32>
    %14 = arith.addf %9, %13 : vector<32x128xf32>
    %c2 = arith.constant 2 : index
    %c0_17 = arith.constant 0 : index
    %c0_18 = arith.constant 0 : index
    %15 = vector.load %arg3[%c2, %c0_17, %c0_18] : memref<4x32x64xbf16, #tpu.memory_space<vmem>>, vector<1x32x64xbf16>
    %16 = vector.shape_cast %15 : vector<1x32x64xbf16> to vector<32x64xbf16>
    %c0_19 = arith.constant 0 : index
    %c9 = arith.constant 9 : index
    %17 = vector.load %arg6[%c0_19, %c9] : memref<64x256xbf16, #tpu.memory_space<vmem>>, vector<64x128xbf16>
    %cst_20 = arith.constant dense<0.000000e+00> : vector<32x128xf32>
    %18 = tpu.matmul %16, %17, %cst_20 {dimension_numbers = #tpu.dot_dimension_numbers<[1], [0], [0], [1], [0, 0, 1, 1], [], []>} : vector<32x64xbf16>, vector<64x128xbf16>, vector<32x128xf32> -> vector<32x128xf32>
    %19 = arith.addf %14, %18 : vector<32x128xf32>
    %c3 = arith.constant 3 : index
    %c0_21 = arith.constant 0 : index
    %c0_22 = arith.constant 0 : index
    %20 = vector.load %arg3[%c3, %c0_21, %c0_22] : memref<4x32x64xbf16, #tpu.memory_space<vmem>>, vector<1x32x64xbf16>
    %21 = vector.shape_cast %20 : vector<1x32x64xbf16> to vector<32x64xbf16>
    %c0_23 = arith.constant 0 : index
    %c10 = arith.constant 10 : index
    %22 = vector.load %arg6[%c0_23, %c10] : memref<64x256xbf16, #tpu.memory_space<vmem>>, vector<64x128xbf16>
    %cst_24 = arith.constant dense<0.000000e+00> : vector<32x128xf32>
    %23 = tpu.matmul %21, %22, %cst_24 {dimension_numbers = #tpu.dot_dimension_numbers<[1], [0], [0], [1], [0, 0, 1, 1], [], []>} : vector<32x64xbf16>, vector<64x128xbf16>, vector<32x128xf32> -> vector<32x128xf32>
    %24 = arith.addf %19, %23 : vector<32x128xf32>
    %c0_25 = arith.constant 0 : index
    %c0_26 = arith.constant 0 : index
    %25 = vector.load %arg4[%c0_25, %c0_26] : memref<32x1xf32, #tpu.memory_space<vmem>>, vector<32x1xf32>
    %26 = vector.broadcast %25 : vector<32x1xf32> to vector<32x128xf32>
    %27 = arith.addf %24, %26 : vector<32x128xf32>
    %cst_27 = arith.constant 0.000000e+00 : f32
    %28 = vector.broadcast %cst_27 : f32 to vector<32x128xf32>
    %29 = arith.maximumf %27, %28 : vector<32x128xf32>
    %30 = arith.truncf %29 : vector<32x128xf32> to vector<32x128xbf16>
    %c0_28 = arith.constant 0 : index
    %c0_29 = arith.constant 0 : index
    %31 = vector.load %arg5[%c0_28, %c0_29] : memref<32x128xbf16, #tpu.memory_space<vmem>>, vector<32x128xbf16>
    tpu.vector_store %arg5[%c0_28, %c0_29], %30 {strides = array<i32>} : memref<32x128xbf16, #tpu.memory_space<vmem>>, vector<32x128xbf16>,
    return
  }
  func.func @transform_0(%arg0: i32) -> (i32, i32) {
    %c0_i32 = arith.constant 0 : i32
    %c0_i32_0 = arith.constant 0 : i32
    return %c0_i32, %arg0 : i32, i32
  }
  func.func @transform_1(%arg0: i32) -> (i32, i32) {
    %c1_i32 = arith.constant 1 : i32
    %0 = arith.addi %arg0, %c1_i32 : i32
    %c1_i32_0 = arith.constant 1 : i32
    %1 = arith.muli %0, %c1_i32_0 : i32
    %c0_i32 = arith.constant 0 : i32
    %c0_i32_1 = arith.constant 0 : i32
    return %c0_i32, %1 : i32, i32
  }
  func.func @transform_2(%arg0: i32) -> (i32, i32, i32) {
    %c0_i32 = arith.constant 0 : i32
    %c0_i32_0 = arith.constant 0 : i32
    %c0_i32_1 = arith.constant 0 : i32
    %c0_i32_2 = arith.constant 0 : i32
    return %c0_i32, %c0_i32_0, %c0_i32_1 : i32, i32, i32
  }
  func.func @transform_3(%arg0: i32) -> (i32, i32) {
    %c0_i32 = arith.constant 0 : i32
    %c0_i32_0 = arith.constant 0 : i32
    %c0_i32_1 = arith.constant 0 : i32
    return %c0_i32, %c0_i32_0 : i32, i32
  }
  func.func @transform_4(%arg0: i32) -> (i32, i32) {
    %c0_i32 = arith.constant 0 : i32
    %c0_i32_0 = arith.constant 0 : i32
    return %c0_i32, %arg0 : i32, i32
  }
}

module attributes {stable_mosaic.version = 11 : i64} {
  func.func @_conv_shift_kernel(%arg0: i32, %arg1: memref<128x128xbf16, #tpu.memory_space<vmem>>, %arg2: memref<128x128xbf16, #tpu.memory_space<vmem>>, %arg3: memref<4x64x128xbf16, #tpu.memory_space<vmem>>, %arg4: memref<64x1xf32, #tpu.memory_space<vmem>>, %arg5: memref<64x128xbf16, #tpu.memory_space<vmem>>, %arg6: memref<128x256xbf16, #tpu.memory_space<vmem>>) attributes {dimension_semantics = [#tpu.dimension_semantics<parallel>], iteration_bounds = array<i64: 1>, scalar_prefetch = 0 : i64, scratch_operands = 1 : i64, tpu.core_type = #tpu.core_type<tc>, window_params = [{transform_indices = @transform_0, window_bounds = array<i64: 128, 128>}, {transform_indices = @transform_1, window_bounds = array<i64: 128, 128>}, {pipeline_mode = #tpu.pipeline_mode<synchronous>, transform_indices = @transform_2, window_bounds = array<i64: 4, 64, 128>}, {pipeline_mode = #tpu.pipeline_mode<synchronous>, transform_indices = @transform_3, window_bounds = array<i64: 64, 1>}, {transform_indices = @transform_4, window_bounds = array<i64: 64, 128>}]} {
    %c0 = arith.constant 0 : index
    %c0_0 = arith.constant 0 : index
    %0 = vector.load %arg1[%c0, %c0_0] : memref<128x128xbf16, #tpu.memory_space<vmem>>, vector<128x128xbf16>
    %c0_1 = arith.constant 0 : index
    %c0_2 = arith.constant 0 : index
    %1 = vector.load %arg6[%c0_1, %c0_2] : memref<128x256xbf16, #tpu.memory_space<vmem>>, vector<128x128xbf16>
    tpu.vector_store %arg6[%c0_1, %c0_2], %0 {strides = array<i32>} : memref<128x256xbf16, #tpu.memory_space<vmem>>, vector<128x128xbf16>,
    %c0_3 = arith.constant 0 : index
    %c0_4 = arith.constant 0 : index
    %2 = vector.load %arg2[%c0_3, %c0_4] : memref<128x128xbf16, #tpu.memory_space<vmem>>, vector<128x128xbf16>
    %c0_5 = arith.constant 0 : index
    %c128 = arith.constant 128 : index
    %3 = vector.load %arg6[%c0_5, %c128] : memref<128x256xbf16, #tpu.memory_space<vmem>>, vector<128x128xbf16>
    tpu.vector_store %arg6[%c0_5, %c128], %2 {strides = array<i32>} : memref<128x256xbf16, #tpu.memory_space<vmem>>, vector<128x128xbf16>,
    %cst = arith.constant 0.000000e+00 : f32
    %4 = vector.broadcast %cst : f32 to vector<64x128xf32>
    %c0_6 = arith.constant 0 : index
    %c0_7 = arith.constant 0 : index
    %c0_8 = arith.constant 0 : index
    %5 = vector.load %arg3[%c0_6, %c0_7, %c0_8] : memref<4x64x128xbf16, #tpu.memory_space<vmem>>, vector<1x64x128xbf16>
    %6 = vector.shape_cast %5 : vector<1x64x128xbf16> to vector<64x128xbf16>
    %c0_9 = arith.constant 0 : index
    %c0_10 = arith.constant 0 : index
    %7 = vector.load %arg6[%c0_9, %c0_10] : memref<128x256xbf16, #tpu.memory_space<vmem>>, vector<128x128xbf16>
    %cst_11 = arith.constant dense<0.000000e+00> : vector<64x128xf32>
    %8 = tpu.matmul %6, %7, %cst_11 {dimension_numbers = #tpu.dot_dimension_numbers<[1], [0], [0], [1], [0, 0, 1, 1], [], []>} : vector<64x128xbf16>, vector<128x128xbf16>, vector<64x128xf32> -> vector<64x128xf32>
    %9 = arith.addf %4, %8 : vector<64x128xf32>
    %c1 = arith.constant 1 : index
    %c0_12 = arith.constant 0 : index
    %c0_13 = arith.constant 0 : index
    %10 = vector.load %arg3[%c1, %c0_12, %c0_13] : memref<4x64x128xbf16, #tpu.memory_space<vmem>>, vector<1x64x128xbf16>
    %11 = vector.shape_cast %10 : vector<1x64x128xbf16> to vector<64x128xbf16>
    %c0_14 = arith.constant 0 : index
    %c1_15 = arith.constant 1 : index
    %12 = vector.load %arg6[%c0_14, %c1_15] : memref<128x256xbf16, #tpu.memory_space<vmem>>, vector<128x128xbf16>
    %cst_16 = arith.constant dense<0.000000e+00> : vector<64x128xf32>
    %13 = tpu.matmul %11, %12, %cst_16 {dimension_numbers = #tpu.dot_dimension_numbers<[1], [0], [0], [1], [0, 0, 1, 1], [], []>} : vector<64x128xbf16>, vector<128x128xbf16>, vector<64x128xf32> -> vector<64x128xf32>
    %14 = arith.addf %9, %13 : vector<64x128xf32>
    %c2 = arith.constant 2 : index
    %c0_17 = arith.constant 0 : index
    %c0_18 = arith.constant 0 : index
    %15 = vector.load %arg3[%c2, %c0_17, %c0_18] : memref<4x64x128xbf16, #tpu.memory_space<vmem>>, vector<1x64x128xbf16>
    %16 = vector.shape_cast %15 : vector<1x64x128xbf16> to vector<64x128xbf16>
    %c0_19 = arith.constant 0 : index
    %c4 = arith.constant 4 : index
    %17 = vector.load %arg6[%c0_19, %c4] : memref<128x256xbf16, #tpu.memory_space<vmem>>, vector<128x128xbf16>
    %cst_20 = arith.constant dense<0.000000e+00> : vector<64x128xf32>
    %18 = tpu.matmul %16, %17, %cst_20 {dimension_numbers = #tpu.dot_dimension_numbers<[1], [0], [0], [1], [0, 0, 1, 1], [], []>} : vector<64x128xbf16>, vector<128x128xbf16>, vector<64x128xf32> -> vector<64x128xf32>
    %19 = arith.addf %14, %18 : vector<64x128xf32>
    %c3 = arith.constant 3 : index
    %c0_21 = arith.constant 0 : index
    %c0_22 = arith.constant 0 : index
    %20 = vector.load %arg3[%c3, %c0_21, %c0_22] : memref<4x64x128xbf16, #tpu.memory_space<vmem>>, vector<1x64x128xbf16>
    %21 = vector.shape_cast %20 : vector<1x64x128xbf16> to vector<64x128xbf16>
    %c0_23 = arith.constant 0 : index
    %c5 = arith.constant 5 : index
    %22 = vector.load %arg6[%c0_23, %c5] : memref<128x256xbf16, #tpu.memory_space<vmem>>, vector<128x128xbf16>
    %cst_24 = arith.constant dense<0.000000e+00> : vector<64x128xf32>
    %23 = tpu.matmul %21, %22, %cst_24 {dimension_numbers = #tpu.dot_dimension_numbers<[1], [0], [0], [1], [0, 0, 1, 1], [], []>} : vector<64x128xbf16>, vector<128x128xbf16>, vector<64x128xf32> -> vector<64x128xf32>
    %24 = arith.addf %19, %23 : vector<64x128xf32>
    %c0_25 = arith.constant 0 : index
    %c0_26 = arith.constant 0 : index
    %25 = vector.load %arg4[%c0_25, %c0_26] : memref<64x1xf32, #tpu.memory_space<vmem>>, vector<64x1xf32>
    %26 = vector.broadcast %25 : vector<64x1xf32> to vector<64x128xf32>
    %27 = arith.addf %24, %26 : vector<64x128xf32>
    %cst_27 = arith.constant 0.000000e+00 : f32
    %28 = vector.broadcast %cst_27 : f32 to vector<64x128xf32>
    %29 = arith.maximumf %27, %28 : vector<64x128xf32>
    %30 = arith.truncf %29 : vector<64x128xf32> to vector<64x128xbf16>
    %c0_28 = arith.constant 0 : index
    %c0_29 = arith.constant 0 : index
    %31 = vector.load %arg5[%c0_28, %c0_29] : memref<64x128xbf16, #tpu.memory_space<vmem>>, vector<64x128xbf16>
    tpu.vector_store %arg5[%c0_28, %c0_29], %30 {strides = array<i32>} : memref<64x128xbf16, #tpu.memory_space<vmem>>, vector<64x128xbf16>,
    return
  }
  func.func @transform_0(%arg0: i32) -> (i32, i32) {
    %c0_i32 = arith.constant 0 : i32
    %c0_i32_0 = arith.constant 0 : i32
    return %c0_i32, %arg0 : i32, i32
  }
  func.func @transform_1(%arg0: i32) -> (i32, i32) {
    %c1_i32 = arith.constant 1 : i32
    %0 = arith.addi %arg0, %c1_i32 : i32
    %c1_i32_0 = arith.constant 1 : i32
    %1 = arith.muli %0, %c1_i32_0 : i32
    %c0_i32 = arith.constant 0 : i32
    %c0_i32_1 = arith.constant 0 : i32
    return %c0_i32, %1 : i32, i32
  }
  func.func @transform_2(%arg0: i32) -> (i32, i32, i32) {
    %c0_i32 = arith.constant 0 : i32
    %c0_i32_0 = arith.constant 0 : i32
    %c0_i32_1 = arith.constant 0 : i32
    %c0_i32_2 = arith.constant 0 : i32
    return %c0_i32, %c0_i32_0, %c0_i32_1 : i32, i32, i32
  }
  func.func @transform_3(%arg0: i32) -> (i32, i32) {
    %c0_i32 = arith.constant 0 : i32
    %c0_i32_0 = arith.constant 0 : i32
    %c0_i32_1 = arith.constant 0 : i32
    return %c0_i32, %c0_i32_0 : i32, i32
  }
  func.func @transform_4(%arg0: i32) -> (i32, i32) {
    %c0_i32 = arith.constant 0 : i32
    %c0_i32_0 = arith.constant 0 : i32
    return %c0_i32, %arg0 : i32, i32
  }
}

module attributes {stable_mosaic.version = 11 : i64} {
  func.func @_conv_shift_kernel(%arg0: i32, %arg1: memref<64x128xbf16, #tpu.memory_space<vmem>>, %arg2: memref<64x128xbf16, #tpu.memory_space<vmem>>, %arg3: memref<9x64x64xbf16, #tpu.memory_space<vmem>>, %arg4: memref<64x1xf32, #tpu.memory_space<vmem>>, %arg5: memref<64x128xf32, #tpu.memory_space<vmem>>, %arg6: memref<64x256xbf16, #tpu.memory_space<vmem>>) attributes {dimension_semantics = [#tpu.dimension_semantics<parallel>], iteration_bounds = array<i64: 1>, scalar_prefetch = 0 : i64, scratch_operands = 1 : i64, tpu.core_type = #tpu.core_type<tc>, window_params = [{transform_indices = @transform_0, window_bounds = array<i64: 64, 128>}, {transform_indices = @transform_1, window_bounds = array<i64: 64, 128>}, {pipeline_mode = #tpu.pipeline_mode<synchronous>, transform_indices = @transform_2, window_bounds = array<i64: 9, 64, 64>}, {pipeline_mode = #tpu.pipeline_mode<synchronous>, transform_indices = @transform_3, window_bounds = array<i64: 64, 1>}, {transform_indices = @transform_4, window_bounds = array<i64: 64, 128>}]} {
    %c0 = arith.constant 0 : index
    %c0_0 = arith.constant 0 : index
    %0 = vector.load %arg1[%c0, %c0_0] : memref<64x128xbf16, #tpu.memory_space<vmem>>, vector<64x128xbf16>
    %c0_1 = arith.constant 0 : index
    %c0_2 = arith.constant 0 : index
    %1 = vector.load %arg6[%c0_1, %c0_2] : memref<64x256xbf16, #tpu.memory_space<vmem>>, vector<64x128xbf16>
    tpu.vector_store %arg6[%c0_1, %c0_2], %0 {strides = array<i32>} : memref<64x256xbf16, #tpu.memory_space<vmem>>, vector<64x128xbf16>,
    %c0_3 = arith.constant 0 : index
    %c0_4 = arith.constant 0 : index
    %2 = vector.load %arg2[%c0_3, %c0_4] : memref<64x128xbf16, #tpu.memory_space<vmem>>, vector<64x128xbf16>
    %c0_5 = arith.constant 0 : index
    %c128 = arith.constant 128 : index
    %3 = vector.load %arg6[%c0_5, %c128] : memref<64x256xbf16, #tpu.memory_space<vmem>>, vector<64x128xbf16>
    tpu.vector_store %arg6[%c0_5, %c128], %2 {strides = array<i32>} : memref<64x256xbf16, #tpu.memory_space<vmem>>, vector<64x128xbf16>,
    %cst = arith.constant 0.000000e+00 : f32
    %4 = vector.broadcast %cst : f32 to vector<64x128xf32>
    %c0_6 = arith.constant 0 : index
    %c0_7 = arith.constant 0 : index
    %c0_8 = arith.constant 0 : index
    %5 = vector.load %arg3[%c0_6, %c0_7, %c0_8] : memref<9x64x64xbf16, #tpu.memory_space<vmem>>, vector<1x64x64xbf16>
    %6 = vector.shape_cast %5 : vector<1x64x64xbf16> to vector<64x64xbf16>
    %c0_9 = arith.constant 0 : index
    %c0_10 = arith.constant 0 : index
    %7 = vector.load %arg6[%c0_9, %c0_10] : memref<64x256xbf16, #tpu.memory_space<vmem>>, vector<64x128xbf16>
    %cst_11 = arith.constant dense<0.000000e+00> : vector<64x128xf32>
    %8 = tpu.matmul %6, %7, %cst_11 {dimension_numbers = #tpu.dot_dimension_numbers<[1], [0], [0], [1], [0, 0, 1, 1], [], []>} : vector<64x64xbf16>, vector<64x128xbf16>, vector<64x128xf32> -> vector<64x128xf32>
    %9 = arith.addf %4, %8 : vector<64x128xf32>
    %c1 = arith.constant 1 : index
    %c0_12 = arith.constant 0 : index
    %c0_13 = arith.constant 0 : index
    %10 = vector.load %arg3[%c1, %c0_12, %c0_13] : memref<9x64x64xbf16, #tpu.memory_space<vmem>>, vector<1x64x64xbf16>
    %11 = vector.shape_cast %10 : vector<1x64x64xbf16> to vector<64x64xbf16>
    %c0_14 = arith.constant 0 : index
    %c1_15 = arith.constant 1 : index
    %12 = vector.load %arg6[%c0_14, %c1_15] : memref<64x256xbf16, #tpu.memory_space<vmem>>, vector<64x128xbf16>
    %cst_16 = arith.constant dense<0.000000e+00> : vector<64x128xf32>
    %13 = tpu.matmul %11, %12, %cst_16 {dimension_numbers = #tpu.dot_dimension_numbers<[1], [0], [0], [1], [0, 0, 1, 1], [], []>} : vector<64x64xbf16>, vector<64x128xbf16>, vector<64x128xf32> -> vector<64x128xf32>
    %14 = arith.addf %9, %13 : vector<64x128xf32>
    %c2 = arith.constant 2 : index
    %c0_17 = arith.constant 0 : index
    %c0_18 = arith.constant 0 : index
    %15 = vector.load %arg3[%c2, %c0_17, %c0_18] : memref<9x64x64xbf16, #tpu.memory_space<vmem>>, vector<1x64x64xbf16>
    %16 = vector.shape_cast %15 : vector<1x64x64xbf16> to vector<64x64xbf16>
    %c0_19 = arith.constant 0 : index
    %c2_20 = arith.constant 2 : index
    %17 = vector.load %arg6[%c0_19, %c2_20] : memref<64x256xbf16, #tpu.memory_space<vmem>>, vector<64x128xbf16>
    %cst_21 = arith.constant dense<0.000000e+00> : vector<64x128xf32>
    %18 = tpu.matmul %16, %17, %cst_21 {dimension_numbers = #tpu.dot_dimension_numbers<[1], [0], [0], [1], [0, 0, 1, 1], [], []>} : vector<64x64xbf16>, vector<64x128xbf16>, vector<64x128xf32> -> vector<64x128xf32>
    %19 = arith.addf %14, %18 : vector<64x128xf32>
    %c3 = arith.constant 3 : index
    %c0_22 = arith.constant 0 : index
    %c0_23 = arith.constant 0 : index
    %20 = vector.load %arg3[%c3, %c0_22, %c0_23] : memref<9x64x64xbf16, #tpu.memory_space<vmem>>, vector<1x64x64xbf16>
    %21 = vector.shape_cast %20 : vector<1x64x64xbf16> to vector<64x64xbf16>
    %c0_24 = arith.constant 0 : index
    %c3_25 = arith.constant 3 : index
    %22 = vector.load %arg6[%c0_24, %c3_25] : memref<64x256xbf16, #tpu.memory_space<vmem>>, vector<64x128xbf16>
    %cst_26 = arith.constant dense<0.000000e+00> : vector<64x128xf32>
    %23 = tpu.matmul %21, %22, %cst_26 {dimension_numbers = #tpu.dot_dimension_numbers<[1], [0], [0], [1], [0, 0, 1, 1], [], []>} : vector<64x64xbf16>, vector<64x128xbf16>, vector<64x128xf32> -> vector<64x128xf32>
    %24 = arith.addf %19, %23 : vector<64x128xf32>
    %c4 = arith.constant 4 : index
    %c0_27 = arith.constant 0 : index
    %c0_28 = arith.constant 0 : index
    %25 = vector.load %arg3[%c4, %c0_27, %c0_28] : memref<9x64x64xbf16, #tpu.memory_space<vmem>>, vector<1x64x64xbf16>
    %26 = vector.shape_cast %25 : vector<1x64x64xbf16> to vector<64x64xbf16>
    %c0_29 = arith.constant 0 : index
    %c4_30 = arith.constant 4 : index
    %27 = vector.load %arg6[%c0_29, %c4_30] : memref<64x256xbf16, #tpu.memory_space<vmem>>, vector<64x128xbf16>
    %cst_31 = arith.constant dense<0.000000e+00> : vector<64x128xf32>
    %28 = tpu.matmul %26, %27, %cst_31 {dimension_numbers = #tpu.dot_dimension_numbers<[1], [0], [0], [1], [0, 0, 1, 1], [], []>} : vector<64x64xbf16>, vector<64x128xbf16>, vector<64x128xf32> -> vector<64x128xf32>
    %29 = arith.addf %24, %28 : vector<64x128xf32>
    %c5 = arith.constant 5 : index
    %c0_32 = arith.constant 0 : index
    %c0_33 = arith.constant 0 : index
    %30 = vector.load %arg3[%c5, %c0_32, %c0_33] : memref<9x64x64xbf16, #tpu.memory_space<vmem>>, vector<1x64x64xbf16>
    %31 = vector.shape_cast %30 : vector<1x64x64xbf16> to vector<64x64xbf16>
    %c0_34 = arith.constant 0 : index
    %c5_35 = arith.constant 5 : index
    %32 = vector.load %arg6[%c0_34, %c5_35] : memref<64x256xbf16, #tpu.memory_space<vmem>>, vector<64x128xbf16>
    %cst_36 = arith.constant dense<0.000000e+00> : vector<64x128xf32>
    %33 = tpu.matmul %31, %32, %cst_36 {dimension_numbers = #tpu.dot_dimension_numbers<[1], [0], [0], [1], [0, 0, 1, 1], [], []>} : vector<64x64xbf16>, vector<64x128xbf16>, vector<64x128xf32> -> vector<64x128xf32>
    %34 = arith.addf %29, %33 : vector<64x128xf32>
    %c6 = arith.constant 6 : index
    %c0_37 = arith.constant 0 : index
    %c0_38 = arith.constant 0 : index
    %35 = vector.load %arg3[%c6, %c0_37, %c0_38] : memref<9x64x64xbf16, #tpu.memory_space<vmem>>, vector<1x64x64xbf16>
    %36 = vector.shape_cast %35 : vector<1x64x64xbf16> to vector<64x64xbf16>
    %c0_39 = arith.constant 0 : index
    %c6_40 = arith.constant 6 : index
    %37 = vector.load %arg6[%c0_39, %c6_40] : memref<64x256xbf16, #tpu.memory_space<vmem>>, vector<64x128xbf16>
    %cst_41 = arith.constant dense<0.000000e+00> : vector<64x128xf32>
    %38 = tpu.matmul %36, %37, %cst_41 {dimension_numbers = #tpu.dot_dimension_numbers<[1], [0], [0], [1], [0, 0, 1, 1], [], []>} : vector<64x64xbf16>, vector<64x128xbf16>, vector<64x128xf32> -> vector<64x128xf32>
    %39 = arith.addf %34, %38 : vector<64x128xf32>
    %c7 = arith.constant 7 : index
    %c0_42 = arith.constant 0 : index
    %c0_43 = arith.constant 0 : index
    %40 = vector.load %arg3[%c7, %c0_42, %c0_43] : memref<9x64x64xbf16, #tpu.memory_space<vmem>>, vector<1x64x64xbf16>
    %41 = vector.shape_cast %40 : vector<1x64x64xbf16> to vector<64x64xbf16>
    %c0_44 = arith.constant 0 : index
    %c7_45 = arith.constant 7 : index
    %42 = vector.load %arg6[%c0_44, %c7_45] : memref<64x256xbf16, #tpu.memory_space<vmem>>, vector<64x128xbf16>
    %cst_46 = arith.constant dense<0.000000e+00> : vector<64x128xf32>
    %43 = tpu.matmul %41, %42, %cst_46 {dimension_numbers = #tpu.dot_dimension_numbers<[1], [0], [0], [1], [0, 0, 1, 1], [], []>} : vector<64x64xbf16>, vector<64x128xbf16>, vector<64x128xf32> -> vector<64x128xf32>
    %44 = arith.addf %39, %43 : vector<64x128xf32>
    %c8 = arith.constant 8 : index
    %c0_47 = arith.constant 0 : index
    %c0_48 = arith.constant 0 : index
    %45 = vector.load %arg3[%c8, %c0_47, %c0_48] : memref<9x64x64xbf16, #tpu.memory_space<vmem>>, vector<1x64x64xbf16>
    %46 = vector.shape_cast %45 : vector<1x64x64xbf16> to vector<64x64xbf16>
    %c0_49 = arith.constant 0 : index
    %c8_50 = arith.constant 8 : index
    %47 = vector.load %arg6[%c0_49, %c8_50] : memref<64x256xbf16, #tpu.memory_space<vmem>>, vector<64x128xbf16>
    %cst_51 = arith.constant dense<0.000000e+00> : vector<64x128xf32>
    %48 = tpu.matmul %46, %47, %cst_51 {dimension_numbers = #tpu.dot_dimension_numbers<[1], [0], [0], [1], [0, 0, 1, 1], [], []>} : vector<64x64xbf16>, vector<64x128xbf16>, vector<64x128xf32> -> vector<64x128xf32>
    %49 = arith.addf %44, %48 : vector<64x128xf32>
    %c0_52 = arith.constant 0 : index
    %c0_53 = arith.constant 0 : index
    %50 = vector.load %arg4[%c0_52, %c0_53] : memref<64x1xf32, #tpu.memory_space<vmem>>, vector<64x1xf32>
    %51 = vector.broadcast %50 : vector<64x1xf32> to vector<64x128xf32>
    %52 = arith.addf %49, %51 : vector<64x128xf32>
    %cst_54 = arith.constant 0.000000e+00 : f32
    %53 = vector.broadcast %cst_54 : f32 to vector<64x128xf32>
    %54 = arith.maximumf %52, %53 : vector<64x128xf32>
    %c0_55 = arith.constant 0 : index
    %c0_56 = arith.constant 0 : index
    %55 = vector.load %arg5[%c0_55, %c0_56] : memref<64x128xf32, #tpu.memory_space<vmem>>, vector<64x128xf32>
    tpu.vector_store %arg5[%c0_55, %c0_56], %54 {strides = array<i32>} : memref<64x128xf32, #tpu.memory_space<vmem>>, vector<64x128xf32>,
    return
  }
  func.func @transform_0(%arg0: i32) -> (i32, i32) {
    %c0_i32 = arith.constant 0 : i32
    %c0_i32_0 = arith.constant 0 : i32
    return %c0_i32, %arg0 : i32, i32
  }
  func.func @transform_1(%arg0: i32) -> (i32, i32) {
    %c1_i32 = arith.constant 1 : i32
    %0 = arith.addi %arg0, %c1_i32 : i32
    %c1_i32_0 = arith.constant 1 : i32
    %1 = arith.muli %0, %c1_i32_0 : i32
    %c0_i32 = arith.constant 0 : i32
    %c0_i32_1 = arith.constant 0 : i32
    return %c0_i32, %1 : i32, i32
  }
  func.func @transform_2(%arg0: i32) -> (i32, i32, i32) {
    %c0_i32 = arith.constant 0 : i32
    %c0_i32_0 = arith.constant 0 : i32
    %c0_i32_1 = arith.constant 0 : i32
    %c0_i32_2 = arith.constant 0 : i32
    return %c0_i32, %c0_i32_0, %c0_i32_1 : i32, i32, i32
  }
  func.func @transform_3(%arg0: i32) -> (i32, i32) {
    %c0_i32 = arith.constant 0 : i32
    %c0_i32_0 = arith.constant 0 : i32
    %c0_i32_1 = arith.constant 0 : i32
    return %c0_i32, %c0_i32_0 : i32, i32
  }
  func.func @transform_4(%arg0: i32) -> (i32, i32) {
    %c0_i32 = arith.constant 0 : i32
    %c0_i32_0 = arith.constant 0 : i32
    return %c0_i32, %arg0 : i32, i32
  }
}

</mosaic_0001>

<llo_original>
// kernel: cnn_only_forward.3
$region0: #{cnn_only_forward.3}
  #allocation0 [shape = 'u32[]', space=smem, size = 0x4, offset = 0x4, fixed_abs, tag = 'smem constant byte address 0x4 - core index']
  #allocation1 [shape = 'u32[72,128]{1,0:T(1,128)}', space=vmem, size = 0x9000, scoped, tag = 'internal scratch']
  #allocation2 [shape = 'bf16[64,256]{1,0:T(8,128)(2,1)}', space=vmem, size = 0x8000, scoped, tag = 'scratch operand']
  %s0 = inlined_call_operand.vmem [shape: bf16[64,384], index: 0, kind: input, shape index: {}, may-alias: {0,1}]
  %s1 = inlined_call_operand.vmem [shape: bf16[64,384], index: 1, kind: input, shape index: {}, may-alias: {0,1}]
  %s2 = inlined_call_operand.vmem [shape: bf16[4,32,64], index: 2, kind: input, shape index: {}]
  %s3 = inlined_call_operand.vmem [shape: f32[32,1], index: 3, kind: input, shape index: {}]
  %s4 = inlined_call_operand.vmem [shape: bf16[32,162], index: 4, kind: output, shape index: {}]
  %s5 = sld [smem:[#allocation0]]
  $region168: #{cnn_only_forward.3} parent=0
    _
  %s7 = ssub.s32 1, %s5
  %s8 = scalar_select 0, %s7, %s5
  $region1: #{cnn_only_forward.3} parent=0
    #allocation3 [shape = 'u8[32768]{0}', space=vmem, size = 0x8000, scoped, tag = 'input window, operand 0']
    #allocation4 [shape = 'u8[32768]{0}', space=vmem, size = 0x8000, scoped, tag = 'input window, operand 1']
    #allocation5 [shape = 'u8[16384]{0}', space=vmem, size = 0x4000, scoped, tag = 'output window, operand 0']
    loop: start=0, step=1, limit=4
    $region2: #{cnn_only_forward.3} parent=1 // loop_pre_header
      _
    $region3: #{cnn_only_forward.3} parent=1 // loop_header
      %s10 = sphi 0, %s14
      %p11 = scmp.ge.s32.totalorder %s10, 4
      %s20 = sphi 0, %s22
      %s23 = sphi 0, %s20
      %s24 = sphi 0, %s23
      %s40 = sphi 0, %s24
      %s48 = sphi 0, %s50
      %s51 = sphi 0, %s48
      %s52 = sphi 0, %s51
      %s68 = sphi 0, %s52
      %s72 = sphi 0, %s72
      %s74 = sphi 0, %s72
      %s75 = sphi 0, %s74
      %s89 = sphi 0, %s75
      %s93 = sphi 0, %s93
      %s95 = sphi 0, %s93
      %s96 = sphi 0, %s95
      %s110 = sphi 0, %s96
      %s116 = sphi 0, %s118
      %s119 = sphi 0, %s116
      %s120 = sphi 0, %s119
      %s136 = sphi 0, %s120
    $region4: #{cnn_only_forward.3} parent=1 // loop_header_branch
      %13 = sbr.rel (%p11) target = $region8
    $region5: #{cnn_only_forward.3} parent=1 // loop_body
      %s15 = ssub.s32 %s10, 1
      %s16 = ssub.s32 %s10, 2
      %s17 = sadd.s32 %s10, 1
      %s18 = ssub.s32 %s10, %s17
      %p19 = scmp.eq.s32.totalorder %s18, 0
      %s21 = sadd.s32 %s20, 1
      %s22 = scalar_select %p19, %s20, %s21
      %p25 = pneg %p19
      %p26 = scmp.eq.s32.totalorder %s10, 1
      %p27 = por %p25, %p26
      %p28 = scmp.ne.s32.totalorder %s20, %s23
      %p29 = scmp.eq.s32.totalorder %s10, 0
      %p30 = por %p28, %p29
      %p31 = scmp.ne.s32.totalorder %s20, %s23
      %p32 = scmp.eq.s32.totalorder %s15, 1
      %p33 = por %p31, %p32
      %p34 = scmp.ne.s32.totalorder %s23, %s24
      %p35 = scmp.eq.s32.totalorder %s15, 0
      %p36 = por %p34, %p35
      %p37 = scmp.ne.s32.totalorder %s23, %s24
      %p38 = scmp.eq.s32.totalorder %s16, 1
      %p39 = por %p37, %p38
      %p41 = scmp.ne.s32.totalorder %s24, %s40
      %p42 = scmp.eq.s32.totalorder %s16, 0
      %p43 = por %p41, %p42
      %s44 = sadd.s32 %s10, 1
      %s45 = sadd.s32 %s17, 1
      %s46 = ssub.s32 %s44, %s45
      %p47 = scmp.eq.s32.totalorder %s46, 0
      %s49 = sadd.s32 %s48, 1
      %s50 = scalar_select %p47, %s48, %s49
      %p53 = pneg %p47
      %p54 = scmp.eq.s32.totalorder %s10, 1
      %p55 = por %p53, %p54
      %p56 = scmp.ne.s32.totalorder %s48, %s51
      %p57 = scmp.eq.s32.totalorder %s10, 0
      %p58 = por %p56, %p57
      %p59 = scmp.ne.s32.totalorder %s48, %s51
      %p60 = scmp.eq.s32.totalorder %s15, 1
      %p61 = por %p59, %p60
      %p62 = scmp.ne.s32.totalorder %s51, %s52
      %p63 = scmp.eq.s32.totalorder %s15, 0
      %p64 = por %p62, %p63
      %p65 = scmp.ne.s32.totalorder %s51, %s52
      %p66 = scmp.eq.s32.totalorder %s16, 1
      %p67 = por %p65, %p66
      %p69 = scmp.ne.s32.totalorder %s52, %s68
      %p70 = scmp.eq.s32.totalorder %s16, 0
      %p71 = por %p69, %p70
      %s73 = sadd.s32 %s72, 1
      %p76 = scmp.eq.s32.totalorder %s10, 1
      %p77 = scmp.ne.s32.totalorder %s72, %s74
      %p78 = scmp.eq.s32.totalorder %s10, 0
      %p79 = por %p77, %p78
      %p80 = scmp.ne.s32.totalorder %s72, %s74
      %p81 = scmp.eq.s32.totalorder %s15, 1
      %p82 = por %p80, %p81
      %p83 = scmp.ne.s32.totalorder %s74, %s75
      %p84 = scmp.eq.s32.totalorder %s15, 0
      %p85 = por %p83, %p84
      %p86 = scmp.ne.s32.totalorder %s74, %s75
      %p87 = scmp.eq.s32.totalorder %s16, 1
      %p88 = por %p86, %p87
      %p90 = scmp.ne.s32.totalorder %s75, %s89
      %p91 = scmp.eq.s32.totalorder %s16, 0
      %p92 = por %p90, %p91
      %s94 = sadd.s32 %s93, 1
      %p97 = scmp.eq.s32.totalorder %s10, 1
      %p98 = scmp.ne.s32.totalorder %s93, %s95
      %p99 = scmp.eq.s32.totalorder %s10, 0
      %p100 = por %p98, %p99
      %p101 = scmp.ne.s32.totalorder %s93, %s95
      %p102 = scmp.eq.s32.totalorder %s15, 1
      %p103 = por %p101, %p102
      %p104 = scmp.ne.s32.totalorder %s95, %s96
      %p105 = scmp.eq.s32.totalorder %s15, 0
      %p106 = por %p104, %p105
      %p107 = scmp.ne.s32.totalorder %s95, %s96
      %p108 = scmp.eq.s32.totalorder %s16, 1
      %p109 = por %p107, %p108
      %p111 = scmp.ne.s32.totalorder %s96, %s110
      %p112 = scmp.eq.s32.totalorder %s16, 0
      %p113 = por %p111, %p112
      %s114 = ssub.s32 %s10, %s17
      %p115 = scmp.eq.s32.totalorder %s114, 0
      %s117 = sadd.s32 %s116, 1
      %s118 = scalar_select %p115, %s116, %s117
      %p121 = pneg %p115
      %p122 = scmp.eq.s32.totalorder %s10, 1
      %p123 = por %p121, %p122
      %p124 = scmp.ne.s32.totalorder %s116, %s119
      %p125 = scmp.eq.s32.totalorder %s10, 0
      %p126 = por %p124, %p125
      %p127 = scmp.ne.s32.totalorder %s116, %s119
      %p128 = scmp.eq.s32.totalorder %s15, 1
      %p129 = por %p127, %p128
      %p130 = scmp.ne.s32.totalorder %s119, %s120
      %p131 = scmp.eq.s32.totalorder %s15, 0
      %p132 = por %p130, %p131
      %p133 = scmp.ne.s32.totalorder %s119, %s120
      %p134 = scmp.eq.s32.totalorder %s16, 1
      %p135 = por %p133, %p134
      %p137 = scmp.ne.s32.totalorder %s120, %s136
      %p138 = scmp.eq.s32.totalorder %s16, 0
      %p139 = por %p137, %p138
      %p140 = scmp.le.s32.totalorder 1, %s10
      %p141 = scmp.lt.s32.totalorder %s10, 3
      %p142 = pnand %p140, %p141
      %p143 = pneg %p142
      // Predicated region
      $region9: #{cnn_only_forward.3} parent=5 // pred_check
        _
      $region10: #{cnn_only_forward.3} parent=5 // pred_check_branch
        %145 = sbr.rel (%p142) target = $region12
      $region11: #{cnn_only_forward.3} parent=5 // pred_region
        %s146 = ssub.s32 %s10, 1
        // Predicated region
        $region13: #{cnn_only_forward.3} parent=11 // pred_check
          %p147 = pneg %p85
        $region14: #{cnn_only_forward.3} parent=11 // pred_check_branch
          %149 = sbr.rel (%p147) target = $region16
        $region15: #{cnn_only_forward.3} parent=11 // pred_region
          _
        $region16: #{cnn_only_forward.3} parent=11 // pred_fallthru
          _
        // Predicated region
        $region17: #{cnn_only_forward.3} parent=11 // pred_check
          %p150 = pneg %p106
        $region18: #{cnn_only_forward.3} parent=11 // pred_check_branch
          %152 = sbr.rel (%p150) target = $region20
        $region19: #{cnn_only_forward.3} parent=11 // pred_region
          _
        $region20: #{cnn_only_forward.3} parent=11 // pred_fallthru
          _
      $region12: #{cnn_only_forward.3} parent=5 // pred_fallthru
        _
      %p153 = scmp.lt.s32.totalorder %s10, 2
      // Predicated region
      $region21: #{cnn_only_forward.3} parent=5 // pred_check
        %p154 = pneg %p153
      $region22: #{cnn_only_forward.3} parent=5 // pred_check_branch
        %156 = sbr.rel (%p154) target = $region24
      $region23: #{cnn_only_forward.3} parent=5 // pred_region
        // Predicated region
        $region25: #{cnn_only_forward.3} parent=23 // pred_check
          %p157 = pneg %p30
        $region26: #{cnn_only_forward.3} parent=23 // pred_check_branch
          %159 = sbr.rel (%p157) target = $region28
        $region27: #{cnn_only_forward.3} parent=23 // pred_region
          %s160 = sand.u32 %s20, 1
          %s161 = sand.u32 %s20, 1
          %s162 = smul.addr %s161, 32
          %s163 = scalar_lea.vmem [#allocation3], %s162
          %s164 = smul.addr %s10, 4
          %s165 = scalar_lea.vmem %s0, %s164
          // Predicated region
          $region29: #{cnn_only_forward.3} parent=27 // pred_check
            _
          $region30: #{cnn_only_forward.3} parent=27 // pred_check_branch
            %167 = sbr.rel (0) target = $region32
          $region31: #{cnn_only_forward.3} parent=27 // pred_region
            // Predicated region
            $region33: #{cnn_only_forward.3} parent=31 // pred_check
              _
            $region34: #{cnn_only_forward.3} parent=31 // pred_check_branch
              %169 = sbr.rel target = $region36
            $region35: #{cnn_only_forward.3} parent=31 // pred_region
              // Predicated region
              $region48: #{cnn_only_forward.3} parent=35 // pred_check
                _
              $region49: #{cnn_only_forward.3} parent=35 // pred_check_branch
                %199 = sbr.rel (0) target = $region51
              $region50: #{cnn_only_forward.3} parent=35 // pred_region
                loop: start=0, step=1, limit=1
                $region52: #{cnn_only_forward.3} parent=50 // loop_pre_header
                  _
                $region53: #{cnn_only_forward.3} parent=50 // loop_header
                  %s201 = sphi 0, %s205
                  %p202 = scmp.ge.s32.totalorder %s201, 1
                  %s206 = sphi %s165, %s165
                  %s207 = sphi %s163, %s163
                $region54: #{cnn_only_forward.3} parent=50 // loop_header_branch
                  %204 = sbr.rel (%p202) target = $region58
                $region55: #{cnn_only_forward.3} parent=50 // loop_body
                  _
                $region56: #{cnn_only_forward.3} parent=50 // loop_footer
                  %s205 = sadd.s32 1, %s201
                $region57: #{cnn_only_forward.3} parent=50 // loop_footer_branch
                  %200 = sbr.rel target = $region53
                $region58: #{cnn_only_forward.3} parent=50 // loop_exit
                  _
                %s209 = ssub.s32 16, 1
                loop: start=0, step=1, limit=1
                $region59: #{cnn_only_forward.3} parent=50 // loop_pre_header
                  _
                $region60: #{cnn_only_forward.3} parent=50 // loop_header
                  %s211 = sphi 0, %s215
                  %p212 = scmp.ge.s32.totalorder %s211, 1
                  %s216 = sphi %s165, %s165
                  %s217 = sphi %s163, %s163
                $region61: #{cnn_only_forward.3} parent=50 // loop_header_branch
                  %214 = sbr.rel (%p212) target = $region65
                $region62: #{cnn_only_forward.3} parent=50 // loop_body
                  %v218 = vld [vmem:[%s216] sm:%s209]
                  %219 = vst [vmem:[%s217] sm:%s209] %v218
                  %v220 = vld [vmem:[%s216 + $0xc] sm:%s209]
                  %221 = vst [vmem:[%s217 + $0x4] sm:%s209] %v220
                  %v222 = vld [vmem:[%s216 + $0x18] sm:%s209]
                  %223 = vst [vmem:[%s217 + $0x8] sm:%s209] %v222
                  %v224 = vld [vmem:[%s216 + $0x24] sm:%s209]
                  %225 = vst [vmem:[%s217 + $0xc] sm:%s209] %v224
                  %v226 = vld [vmem:[%s216 + $0x30] sm:%s209]
                  %227 = vst [vmem:[%s217 + $0x10] sm:%s209] %v226
                  %v228 = vld [vmem:[%s216 + $0x3c] sm:%s209]
                  %229 = vst [vmem:[%s217 + $0x14] sm:%s209] %v228
                  %v230 = vld [vmem:[%s216 + $0x48] sm:%s209]
                  %231 = vst [vmem:[%s217 + $0x18] sm:%s209] %v230
                  %v232 = vld [vmem:[%s216 + $0x54] sm:%s209]
                  %233 = vst [vmem:[%s217 + $0x1c] sm:%s209] %v232
                $region63: #{cnn_only_forward.3} parent=50 // loop_footer
                  %s215 = sadd.s32 1, %s211
                $region64: #{cnn_only_forward.3} parent=50 // loop_footer_branch
                  %210 = sbr.rel target = $region60
                $region65: #{cnn_only_forward.3} parent=50 // loop_exit
                  _
              $region51: #{cnn_only_forward.3} parent=35 // pred_fallthru
                _
            $region36: #{cnn_only_forward.3} parent=31 // pred_fallthru
              _
            // Predicated region
            $region37: #{cnn_only_forward.3} parent=31 // pred_check
              _
            $region38: #{cnn_only_forward.3} parent=31 // pred_check_branch
              %171 = sbr.rel (0) target = $region40
            $region39: #{cnn_only_forward.3} parent=31 // pred_region
              %s173 = ssub.s32 16, 1
              loop: start=0, step=1, limit=1
              $region41: #{cnn_only_forward.3} parent=39 // loop_pre_header
                _
              $region42: #{cnn_only_forward.3} parent=39 // loop_header
                %s175 = sphi 0, %s179
                %p176 = scmp.ge.s32.totalorder %s175, 1
                %s180 = sphi %s165, %s165
                %s181 = sphi %s163, %s163
              $region43: #{cnn_only_forward.3} parent=39 // loop_header_branch
                %178 = sbr.rel (%p176) target = $region47
              $region44: #{cnn_only_forward.3} parent=39 // loop_body
                %v182 = vld [vmem:[%s180] sm:%s173]
                %183 = vst [vmem:[%s181] sm:%s173] %v182
                %v184 = vld [vmem:[%s180 + $0xc] sm:%s173]
                %185 = vst [vmem:[%s181 + $0x4] sm:%s173] %v184
                %v186 = vld [vmem:[%s180 + $0x18] sm:%s173]
                %187 = vst [vmem:[%s181 + $0x8] sm:%s173] %v186
                %v188 = vld [vmem:[%s180 + $0x24] sm:%s173]
                %189 = vst [vmem:[%s181 + $0xc] sm:%s173] %v188
                %v190 = vld [vmem:[%s180 + $0x30] sm:%s173]
                %191 = vst [vmem:[%s181 + $0x10] sm:%s173] %v190
                %v192 = vld [vmem:[%s180 + $0x3c] sm:%s173]
                %193 = vst [vmem:[%s181 + $0x14] sm:%s173] %v192
                %v194 = vld [vmem:[%s180 + $0x48] sm:%s173]
                %195 = vst [vmem:[%s181 + $0x18] sm:%s173] %v194
                %v196 = vld [vmem:[%s180 + $0x54] sm:%s173]
                %197 = vst [vmem:[%s181 + $0x1c] sm:%s173] %v196
              $region45: #{cnn_only_forward.3} parent=39 // loop_footer
                %s179 = sadd.s32 1, %s175
              $region46: #{cnn_only_forward.3} parent=39 // loop_footer_branch
                %174 = sbr.rel target = $region42
              $region47: #{cnn_only_forward.3} parent=39 // loop_exit
                _
            $region40: #{cnn_only_forward.3} parent=31 // pred_fallthru
              _
          $region32: #{cnn_only_forward.3} parent=27 // pred_fallthru
            _
          %234 = vnop
        $region28: #{cnn_only_forward.3} parent=23 // pred_fallthru
          _
        // Predicated region
        $region66: #{cnn_only_forward.3} parent=23 // pred_check
          %p235 = pneg %p58
        $region67: #{cnn_only_forward.3} parent=23 // pred_check_branch
          %237 = sbr.rel (%p235) target = $region69
        $region68: #{cnn_only_forward.3} parent=23 // pred_region
          %s238 = sand.u32 %s48, 1
          %s239 = sand.u32 %s48, 1
          %s240 = smul.addr %s239, 32
          %s241 = scalar_lea.vmem [#allocation4], %s240
          %s242 = sadd.s32 %s10, 1
          %s243 = smul.addr %s242, 4
          %s244 = scalar_lea.vmem %s1, %s243
          // Predicated region
          $region70: #{cnn_only_forward.3} parent=68 // pred_check
            _
          $region71: #{cnn_only_forward.3} parent=68 // pred_check_branch
            %246 = sbr.rel (0) target = $region73
          $region72: #{cnn_only_forward.3} parent=68 // pred_region
            // Predicated region
            $region74: #{cnn_only_forward.3} parent=72 // pred_check
              _
            $region75: #{cnn_only_forward.3} parent=72 // pred_check_branch
              %248 = sbr.rel target = $region77
            $region76: #{cnn_only_forward.3} parent=72 // pred_region
              // Predicated region
              $region89: #{cnn_only_forward.3} parent=76 // pred_check
                _
              $region90: #{cnn_only_forward.3} parent=76 // pred_check_branch
                %278 = sbr.rel (0) target = $region92
              $region91: #{cnn_only_forward.3} parent=76 // pred_region
                loop: start=0, step=1, limit=1
                $region93: #{cnn_only_forward.3} parent=91 // loop_pre_header
                  _
                $region94: #{cnn_only_forward.3} parent=91 // loop_header
                  %s280 = sphi 0, %s284
                  %p281 = scmp.ge.s32.totalorder %s280, 1
                  %s285 = sphi %s244, %s244
                  %s286 = sphi %s241, %s241
                $region95: #{cnn_only_forward.3} parent=91 // loop_header_branch
                  %283 = sbr.rel (%p281) target = $region99
                $region96: #{cnn_only_forward.3} parent=91 // loop_body
                  _
                $region97: #{cnn_only_forward.3} parent=91 // loop_footer
                  %s284 = sadd.s32 1, %s280
                $region98: #{cnn_only_forward.3} parent=91 // loop_footer_branch
                  %279 = sbr.rel target = $region94
                $region99: #{cnn_only_forward.3} parent=91 // loop_exit
                  _
                %s288 = ssub.s32 16, 1
                loop: start=0, step=1, limit=1
                $region100: #{cnn_only_forward.3} parent=91 // loop_pre_header
                  _
                $region101: #{cnn_only_forward.3} parent=91 // loop_header
                  %s290 = sphi 0, %s294
                  %p291 = scmp.ge.s32.totalorder %s290, 1
                  %s295 = sphi %s244, %s244
                  %s296 = sphi %s241, %s241
                $region102: #{cnn_only_forward.3} parent=91 // loop_header_branch
                  %293 = sbr.rel (%p291) target = $region106
                $region103: #{cnn_only_forward.3} parent=91 // loop_body
                  %v297 = vld [vmem:[%s295] sm:%s288]
                  %298 = vst [vmem:[%s296] sm:%s288] %v297
                  %v299 = vld [vmem:[%s295 + $0xc] sm:%s288]
                  %300 = vst [vmem:[%s296 + $0x4] sm:%s288] %v299
                  %v301 = vld [vmem:[%s295 + $0x18] sm:%s288]
                  %302 = vst [vmem:[%s296 + $0x8] sm:%s288] %v301
                  %v303 = vld [vmem:[%s295 + $0x24] sm:%s288]
                  %304 = vst [vmem:[%s296 + $0xc] sm:%s288] %v303
                  %v305 = vld [vmem:[%s295 + $0x30] sm:%s288]
                  %306 = vst [vmem:[%s296 + $0x10] sm:%s288] %v305
                  %v307 = vld [vmem:[%s295 + $0x3c] sm:%s288]
                  %308 = vst [vmem:[%s296 + $0x14] sm:%s288] %v307
                  %v309 = vld [vmem:[%s295 + $0x48] sm:%s288]
                  %310 = vst [vmem:[%s296 + $0x18] sm:%s288] %v309
                  %v311 = vld [vmem:[%s295 + $0x54] sm:%s288]
                  %312 = vst [vmem:[%s296 + $0x1c] sm:%s288] %v311
                $region104: #{cnn_only_forward.3} parent=91 // loop_footer
                  %s294 = sadd.s32 1, %s290
                $region105: #{cnn_only_forward.3} parent=91 // loop_footer_branch
                  %289 = sbr.rel target = $region101
                $region106: #{cnn_only_forward.3} parent=91 // loop_exit
                  _
              $region92: #{cnn_only_forward.3} parent=76 // pred_fallthru
                _
            $region77: #{cnn_only_forward.3} parent=72 // pred_fallthru
              _
            // Predicated region
            $region78: #{cnn_only_forward.3} parent=72 // pred_check
              _
            $region79: #{cnn_only_forward.3} parent=72 // pred_check_branch
              %250 = sbr.rel (0) target = $region81
            $region80: #{cnn_only_forward.3} parent=72 // pred_region
              %s252 = ssub.s32 16, 1
              loop: start=0, step=1, limit=1
              $region82: #{cnn_only_forward.3} parent=80 // loop_pre_header
                _
              $region83: #{cnn_only_forward.3} parent=80 // loop_header
                %s254 = sphi 0, %s258
                %p255 = scmp.ge.s32.totalorder %s254, 1
                %s259 = sphi %s244, %s244
                %s260 = sphi %s241, %s241
              $region84: #{cnn_only_forward.3} parent=80 // loop_header_branch
                %257 = sbr.rel (%p255) target = $region88
              $region85: #{cnn_only_forward.3} parent=80 // loop_body
                %v261 = vld [vmem:[%s259] sm:%s252]
                %262 = vst [vmem:[%s260] sm:%s252] %v261
                %v263 = vld [vmem:[%s259 + $0xc] sm:%s252]
                %264 = vst [vmem:[%s260 + $0x4] sm:%s252] %v263
                %v265 = vld [vmem:[%s259 + $0x18] sm:%s252]
                %266 = vst [vmem:[%s260 + $0x8] sm:%s252] %v265
                %v267 = vld [vmem:[%s259 + $0x24] sm:%s252]
                %268 = vst [vmem:[%s260 + $0xc] sm:%s252] %v267
                %v269 = vld [vmem:[%s259 + $0x30] sm:%s252]
                %270 = vst [vmem:[%s260 + $0x10] sm:%s252] %v269
                %v271 = vld [vmem:[%s259 + $0x3c] sm:%s252]
                %272 = vst [vmem:[%s260 + $0x14] sm:%s252] %v271
                %v273 = vld [vmem:[%s259 + $0x48] sm:%s252]
                %274 = vst [vmem:[%s260 + $0x18] sm:%s252] %v273
                %v275 = vld [vmem:[%s259 + $0x54] sm:%s252]
                %276 = vst [vmem:[%s260 + $0x1c] sm:%s252] %v275
              $region86: #{cnn_only_forward.3} parent=80 // loop_footer
                %s258 = sadd.s32 1, %s254
              $region87: #{cnn_only_forward.3} parent=80 // loop_footer_branch
                %253 = sbr.rel target = $region83
              $region88: #{cnn_only_forward.3} parent=80 // loop_exit
                _
            $region81: #{cnn_only_forward.3} parent=72 // pred_fallthru
              _
          $region73: #{cnn_only_forward.3} parent=68 // pred_fallthru
            _
          %313 = vnop
        $region69: #{cnn_only_forward.3} parent=23 // pred_fallthru
          _
      $region24: #{cnn_only_forward.3} parent=5 // pred_fallthru
        _
      %p314 = scmp.le.s32.totalorder 1, %s10
      %p315 = scmp.lt.s32.totalorder %s10, 3
      %p316 = pnand %p314, %p315
      %p317 = pneg %p316
      // Predicated region
      $region107: #{cnn_only_forward.3} parent=5 // pred_check
        _
      $region108: #{cnn_only_forward.3} parent=5 // pred_check_branch
        %319 = sbr.rel (%p316) target = $region110
      $region109: #{cnn_only_forward.3} parent=5 // pred_region
        %s320 = ssub.s32 %s10, 1
        %s321 = sand.u32 %s23, 1
        %s322 = sand.u32 %s23, 1
        %s323 = smul.addr %s322, 32
        %s324 = scalar_lea.vmem [#allocation3], %s323
        // Predicated region
        $region111: #{cnn_only_forward.3} parent=109 // pred_check
          %p325 = pneg %p36
        $region112: #{cnn_only_forward.3} parent=109 // pred_check_branch
          %327 = sbr.rel (%p325) target = $region114
        $region113: #{cnn_only_forward.3} parent=109 // pred_region
          _
        $region114: #{cnn_only_forward.3} parent=109 // pred_fallthru
          _
        %s328 = sand.u32 %s51, 1
        %s329 = sand.u32 %s51, 1
        %s330 = smul.addr %s329, 32
        %s331 = scalar_lea.vmem [#allocation4], %s330
        // Predicated region
        $region115: #{cnn_only_forward.3} parent=109 // pred_check
          %p332 = pneg %p64
        $region116: #{cnn_only_forward.3} parent=109 // pred_check_branch
          %334 = sbr.rel (%p332) target = $region118
        $region117: #{cnn_only_forward.3} parent=109 // pred_region
          _
        $region118: #{cnn_only_forward.3} parent=109 // pred_fallthru
          _
        %s335 = sand.u32 %s23, 1
        %s336 = sand.u32 %s23, 1
        %s337 = smul.addr %s336, 32
        %s338 = scalar_lea.vmem [#allocation3], %s337
        %p339 = pneg %p36
        %p340 = pneg %p33
        %s341 = sand.u32 %s51, 1
        %s342 = sand.u32 %s51, 1
        %s343 = smul.addr %s342, 32
        %s344 = scalar_lea.vmem [#allocation4], %s343
        %p345 = pneg %p64
        %p346 = pneg %p61
        %p347 = pneg %p85
        %p348 = pneg %p82
        %p349 = pneg %p106
        %p350 = pneg %p103
        %p351 = pneg %p132
        %p352 = pneg %p129
        %s353 = sand.u32 %s119, 1
        %s354 = sand.u32 %s119, 1
        %s355 = smul.addr %s354, 16
        %s356 = scalar_lea.vmem [#allocation5], %s355
        %s357 = sadd.s32 %s15, 1
        %v359 = vld [vmem:[%s324] sm:$0xf]
        %v360 = vld [vmem:[%s324 + $0x4] sm:$0xf]
        %v361 = vld [vmem:[%s324 + $0x8] sm:$0xf]
        %v362 = vld [vmem:[%s324 + $0xc] sm:$0xf]
        %v363 = vld [vmem:[%s324 + $0x10] sm:$0xf]
        %v364 = vld [vmem:[%s324 + $0x14] sm:$0xf]
        %v365 = vld [vmem:[%s324 + $0x18] sm:$0xf]
        %v366 = vld [vmem:[%s324 + $0x1c] sm:$0xf]
        %367 = vst [vmem:[#allocation2] sm:$0xf] %v359
        %368 = vst [vmem:[#allocation2 + $0x8] sm:$0xf] %v360
        %369 = vst [vmem:[#allocation2 + $0x10] sm:$0xf] %v361
        %370 = vst [vmem:[#allocation2 + $0x18] sm:$0xf] %v362
        %371 = vst [vmem:[#allocation2 + $0x20] sm:$0xf] %v363
        %372 = vst [vmem:[#allocation2 + $0x28] sm:$0xf] %v364
        %373 = vst [vmem:[#allocation2 + $0x30] sm:$0xf] %v365
        %374 = vst [vmem:[#allocation2 + $0x38] sm:$0xf] %v366
        %v375 = vld [vmem:[%s331] sm:$0xf]
        %v376 = vld [vmem:[%s331 + $0x4] sm:$0xf]
        %v377 = vld [vmem:[%s331 + $0x8] sm:$0xf]
        %v378 = vld [vmem:[%s331 + $0xc] sm:$0xf]
        %v379 = vld [vmem:[%s331 + $0x10] sm:$0xf]
        %v380 = vld [vmem:[%s331 + $0x14] sm:$0xf]
        %v381 = vld [vmem:[%s331 + $0x18] sm:$0xf]
        %v382 = vld [vmem:[%s331 + $0x1c] sm:$0xf]
        %383 = vst [vmem:[#allocation2 + $0x4] sm:$0xf] %v375
        %384 = vst [vmem:[#allocation2 + $0xc] sm:$0xf] %v376
        %385 = vst [vmem:[#allocation2 + $0x14] sm:$0xf] %v377
        %386 = vst [vmem:[#allocation2 + $0x1c] sm:$0xf] %v378
        %387 = vst [vmem:[#allocation2 + $0x24] sm:$0xf] %v379
        %388 = vst [vmem:[#allocation2 + $0x2c] sm:$0xf] %v380
        %389 = vst [vmem:[#allocation2 + $0x34] sm:$0xf] %v381
        %390 = vst [vmem:[#allocation2 + $0x3c] sm:$0xf] %v382
        %v391 = vld [vmem:[%s2] sm:$0xf]
        %v392 = vld [vmem:[%s2 + $0x4] sm:$0xf]
        %v393 = vld [vmem:[%s2 + $0x8] sm:$0xf]
        %v394 = vld [vmem:[%s2 + $0xc] sm:$0xf]
        %v395 = vld [vmem:[#allocation2] sm:$0xf]
        %v396 = vld [vmem:[#allocation2 + $0x8] sm:$0xf]
        %v397 = vld [vmem:[#allocation2 + $0x10] sm:$0xf]
        %v398 = vld [vmem:[#allocation2 + $0x18] sm:$0xf]
        %v399 = vld [vmem:[#allocation2 + $0x20] sm:$0xf]
        %v400 = vld [vmem:[#allocation2 + $0x28] sm:$0xf]
        %v401 = vld [vmem:[#allocation2 + $0x30] sm:$0xf]
        %v402 = vld [vmem:[#allocation2 + $0x38] sm:$0xf]
        %s403 = scalar_lea.vmem %s2, 16
        %v404 = vld [vmem:[%s403] sm:$0xf]
        %v405 = vld [vmem:[%s403 + $0x4] sm:$0xf]
        %v406 = vld [vmem:[%s403 + $0x8] sm:$0xf]
        %v407 = vld [vmem:[%s403 + $0xc] sm:$0xf]
        %v408 = vld [vmem:[#allocation2] sm:$0xff]
        %v409 = vld [vmem:[#allocation2 + $0x8] sm:$0xff]
        %v410 = vld [vmem:[#allocation2 + $0x10] sm:$0xff]
        %v411 = vld [vmem:[#allocation2 + $0x18] sm:$0xff]
        %v412 = vld [vmem:[#allocation2 + $0x20] sm:$0xff]
        %v413 = vld [vmem:[#allocation2 + $0x28] sm:$0xff]
        %v414 = vld [vmem:[#allocation2 + $0x30] sm:$0xff]
        %v415 = vld [vmem:[#allocation2 + $0x38] sm:$0xff]
        %v420 = vunpack.c.l.b16 %v404
        %v421 = vunpack.c.l.b16 %v405
        %v422 = vunpack.c.l.b16 %v406
        %v423 = vunpack.c.l.b16 %v407
        %v424 = vpack.c.b16 %v421, %v420
        %v425 = vpack.c.b16 %v423, %v422
        %v434 = vunpack.c.l.b16 %v408
        %v435 = vunpack.c.h.b16 %v408
        %v436 = vunpack.c.l.b16 %v409
        %v437 = vunpack.c.h.b16 %v409
        %v438 = vunpack.c.l.b16 %v410
        %v439 = vunpack.c.h.b16 %v410
        %v440 = vunpack.c.l.b16 %v411
        %v441 = vunpack.c.h.b16 %v411
        %v442 = vunpack.c.l.b16 %v412
        %v443 = vunpack.c.h.b16 %v412
        %v444 = vunpack.c.l.b16 %v413
        %v445 = vunpack.c.h.b16 %v413
        %v446 = vunpack.c.l.b16 %v414
        %v447 = vunpack.c.h.b16 %v414
        %v448 = vunpack.c.l.b16 %v415
        %v449 = vunpack.c.h.b16 %v415
        %v450 = vpack.c.b16 %v436, %v434
        %v451 = vpack.c.b16 %v437, %v435
        %v452 = vpack.c.b16 %v440, %v438
        %v453 = vpack.c.b16 %v441, %v439
        %v454 = vpack.c.b16 %v444, %v442
        %v455 = vpack.c.b16 %v445, %v443
        %v456 = vpack.c.b16 %v448, %v446
        %v457 = vpack.c.b16 %v449, %v447
        %458 = vrot.lane.b32.xlu0 %v450, 127
        %v459 = vpop.permute.xlu0 %458
        %460 = vrot.lane.b32.xlu0 %v451, 127
        %v461 = vpop.permute.xlu0 %460
        %462 = vrot.lane.b32.xlu0 %v452, 127
        %v463 = vpop.permute.xlu0 %462
        %464 = vrot.lane.b32.xlu0 %v453, 127
        %v465 = vpop.permute.xlu0 %464
        %466 = vrot.lane.b32.xlu0 %v454, 127
        %v467 = vpop.permute.xlu0 %466
        %468 = vrot.lane.b32.xlu0 %v455, 127
        %v469 = vpop.permute.xlu0 %468
        %470 = vrot.lane.b32.xlu0 %v456, 127
        %v471 = vpop.permute.xlu0 %470
        %472 = vrot.lane.b32.xlu0 %v457, 127
        %v473 = vpop.permute.xlu0 %472
        %vm474 = vcmask 1039360
        %v475 = vsel %vm474, %v459, %v461
        %v476 = vsel %vm474, %v463, %v465
        %v477 = vsel %vm474, %v467, %v469
        %v478 = vsel %vm474, %v471, %v473
        %vm483 = vcmask 523264
        %v485 = vsel %vm483, %v424, 0
        %v488 = vsel %vm483, %v425, 0
        %490 = vmatpush.bf16.msra.mxu0 0
        %491 = vmatpush.bf16.msra.mxu0 0
        %492 = vmatpush.bf16.msra.mxu0 0
        %493 = vmatpush.bf16.msra.mxu0 0
        %494 = vmatpush.bf16.msra.mxu0 %v478
        %495 = vmatpush.bf16.msra.mxu0 %v477
        %496 = vmatpush.bf16.msra.mxu0 %v476
        %497 = vmatpush.bf16.msra.mxu0 %v475
        %498 = vmatmul.bf16.gmra.mxu0 %v485
        %v499 = vpop.f32.mrf.mxu0
        %v500 = vadd.f32 0.0, %v499
        %v501 = vpop.f32.mrf.mxu0
        %v502 = vadd.f32 0.0, %v501
        %503 = vmatmul.bf16.gmra.mxu0 %v488
        %v504 = vpop.f32.mrf.mxu0
        %v505 = vadd.f32 0.0, %v504
        %v506 = vpop.f32.mrf.mxu0
        %v507 = vadd.f32 0.0, %v506
        %508 = vdwg.mxu0
        %v513 = vunpack.c.l.b16 %v391
        %v514 = vunpack.c.l.b16 %v392
        %v515 = vunpack.c.l.b16 %v393
        %v516 = vunpack.c.l.b16 %v394
        %v517 = vpack.c.b16 %v514, %v513
        %v518 = vpack.c.b16 %v516, %v515
        %v527 = vunpack.c.l.b16 %v395
        %v528 = vunpack.c.l.b16 %v396
        %v529 = vunpack.c.l.b16 %v397
        %v530 = vunpack.c.l.b16 %v398
        %v531 = vunpack.c.l.b16 %v399
        %v532 = vunpack.c.l.b16 %v400
        %v533 = vunpack.c.l.b16 %v401
        %v534 = vunpack.c.l.b16 %v402
        %v535 = vpack.c.b16 %v528, %v527
        %v536 = vpack.c.b16 %v530, %v529
        %v537 = vpack.c.b16 %v532, %v531
        %v538 = vpack.c.b16 %v534, %v533
        %v544 = vsel %vm483, %v517, 0
        %v547 = vsel %vm483, %v518, 0
        %549 = vmatpush.bf16.msra.mxu0 0
        %550 = vmatpush.bf16.msra.mxu0 0
        %551 = vmatpush.bf16.msra.mxu0 0
        %552 = vmatpush.bf16.msra.mxu0 0
        %553 = vmatpush.bf16.msra.mxu0 %v538
        %554 = vmatpush.bf16.msra.mxu0 %v537
        %555 = vmatpush.bf16.msra.mxu0 %v536
        %556 = vmatpush.bf16.msra.mxu0 %v535
        %557 = vmatmul.bf16.gmra.mxu0 %v544
        %v558 = vpop.f32.mrf.mxu0
        %v559 = vadd.f32 %v500, %v558
        %v560 = vpop.f32.mrf.mxu0
        %v561 = vadd.f32 %v502, %v560
        %562 = vmatmul.bf16.gmra.mxu0 %v547
        %v563 = vpop.f32.mrf.mxu0
        %v564 = vadd.f32 %v505, %v563
        %v565 = vpop.f32.mrf.mxu0
        %v566 = vadd.f32 %v507, %v565
        %567 = vdwg.mxu0
        %s568 = scalar_lea.vmem %s2, 32
        %v569 = vld [vmem:[%s568] sm:$0xf]
        %v570 = vld [vmem:[%s568 + $0x4] sm:$0xf]
        %v571 = vld [vmem:[%s568 + $0x8] sm:$0xf]
        %v572 = vld [vmem:[%s568 + $0xc] sm:$0xf]
        %v577 = vunpack.c.l.b16 %v569
        %v578 = vunpack.c.l.b16 %v570
        %v579 = vunpack.c.l.b16 %v571
        %v580 = vunpack.c.l.b16 %v572
        %v581 = vpack.c.b16 %v578, %v577
        %v582 = vpack.c.b16 %v580, %v579
        %583 = vrot.lane.b32.xlu0 %v450, 119
        %v584 = vpop.permute.xlu0 %583
        %585 = vrot.lane.b32.xlu0 %v451, 119
        %v586 = vpop.permute.xlu0 %585
        %587 = vrot.lane.b32.xlu0 %v452, 119
        %v588 = vpop.permute.xlu0 %587
        %589 = vrot.lane.b32.xlu0 %v453, 119
        %v590 = vpop.permute.xlu0 %589
        %591 = vrot.lane.b32.xlu0 %v454, 119
        %v592 = vpop.permute.xlu0 %591
        %593 = vrot.lane.b32.xlu0 %v455, 119
        %v594 = vpop.permute.xlu0 %593
        %595 = vrot.lane.b32.xlu0 %v456, 119
        %v596 = vpop.permute.xlu0 %595
        %597 = vrot.lane.b32.xlu0 %v457, 119
        %v598 = vpop.permute.xlu0 %597
        %vm599 = vcmask 973824
        %v600 = vsel %vm599, %v584, %v586
        %v601 = vsel %vm599, %v588, %v590
        %v602 = vsel %vm599, %v592, %v594
        %v603 = vsel %vm599, %v596, %v598
        %v609 = vsel %vm483, %v581, 0
        %v612 = vsel %vm483, %v582, 0
        %614 = vmatpush.bf16.msra.mxu0 0
        %615 = vmatpush.bf16.msra.mxu0 0
        %616 = vmatpush.bf16.msra.mxu0 0
        %617 = vmatpush.bf16.msra.mxu0 0
        %618 = vmatpush.bf16.msra.mxu0 %v603
        %619 = vmatpush.bf16.msra.mxu0 %v602
        %620 = vmatpush.bf16.msra.mxu0 %v601
        %621 = vmatpush.bf16.msra.mxu0 %v600
        %622 = vmatmul.bf16.gmra.mxu0 %v609
        %v623 = vpop.f32.mrf.mxu0
        %v624 = vadd.f32 0.0, %v623
        %v625 = vpop.f32.mrf.mxu0
        %v626 = vadd.f32 0.0, %v625
        %627 = vmatmul.bf16.gmra.mxu0 %v612
        %v628 = vpop.f32.mrf.mxu0
        %v629 = vadd.f32 0.0, %v628
        %v630 = vpop.f32.mrf.mxu0
        %v631 = vadd.f32 0.0, %v630
        %632 = vdwg.mxu0
        %v633 = vadd.f32 %v559, %v624
        %v634 = vadd.f32 %v561, %v626
        %v635 = vadd.f32 %v564, %v629
        %v636 = vadd.f32 %v566, %v631
        %s637 = scalar_lea.vmem %s2, 48
        %v638 = vld [vmem:[%s637] sm:$0xf]
        %v639 = vld [vmem:[%s637 + $0x4] sm:$0xf]
        %v640 = vld [vmem:[%s637 + $0x8] sm:$0xf]
        %v641 = vld [vmem:[%s637 + $0xc] sm:$0xf]
        %v646 = vunpack.c.l.b16 %v638
        %v647 = vunpack.c.l.b16 %v639
        %v648 = vunpack.c.l.b16 %v640
        %v649 = vunpack.c.l.b16 %v641
        %v650 = vpack.c.b16 %v647, %v646
        %v651 = vpack.c.b16 %v649, %v648
        %652 = vrot.lane.b32.xlu0 %v450, 118
        %v653 = vpop.permute.xlu0 %652
        %654 = vrot.lane.b32.xlu0 %v451, 118
        %v655 = vpop.permute.xlu0 %654
        %656 = vrot.lane.b32.xlu0 %v452, 118
        %v657 = vpop.permute.xlu0 %656
        %658 = vrot.lane.b32.xlu0 %v453, 118
        %v659 = vpop.permute.xlu0 %658
        %660 = vrot.lane.b32.xlu0 %v454, 118
        %v661 = vpop.permute.xlu0 %660
        %662 = vrot.lane.b32.xlu0 %v455, 118
        %v663 = vpop.permute.xlu0 %662
        %664 = vrot.lane.b32.xlu0 %v456, 118
        %v665 = vpop.permute.xlu0 %664
        %666 = vrot.lane.b32.xlu0 %v457, 118
        %v667 = vpop.permute.xlu0 %666
        %vm668 = vcmask 965632
        %v669 = vsel %vm668, %v653, %v655
        %v670 = vsel %vm668, %v657, %v659
        %v671 = vsel %vm668, %v661, %v663
        %v672 = vsel %vm668, %v665, %v667
        %v678 = vsel %vm483, %v650, 0
        %v681 = vsel %vm483, %v651, 0
        %683 = vmatpush.bf16.msra.mxu0 0
        %684 = vmatpush.bf16.msra.mxu0 0
        %685 = vmatpush.bf16.msra.mxu0 0
        %686 = vmatpush.bf16.msra.mxu0 0
        %687 = vmatpush.bf16.msra.mxu0 %v672
        %688 = vmatpush.bf16.msra.mxu0 %v671
        %689 = vmatpush.bf16.msra.mxu0 %v670
        %690 = vmatpush.bf16.msra.mxu0 %v669
        %691 = vmatmul.bf16.gmra.mxu0 %v678
        %v692 = vpop.f32.mrf.mxu0
        %v693 = vadd.f32 0.0, %v692
        %v694 = vpop.f32.mrf.mxu0
        %v695 = vadd.f32 0.0, %v694
        %696 = vmatmul.bf16.gmra.mxu0 %v681
        %v697 = vpop.f32.mrf.mxu0
        %v698 = vadd.f32 0.0, %v697
        %v699 = vpop.f32.mrf.mxu0
        %v700 = vadd.f32 0.0, %v699
        %701 = vdwg.mxu0
        %v702 = vadd.f32 %v633, %v693
        %v703 = vadd.f32 %v634, %v695
        %v704 = vadd.f32 %v635, %v698
        %v705 = vadd.f32 %v636, %v700
        %v706 = vld [vmem:[%s3] sm:$0xff]
        %v707 = vld [vmem:[%s3 + $0x8] sm:$0xff]
        %v708 = vld [vmem:[%s3 + $0x10] sm:$0xff]
        %v709 = vld [vmem:[%s3 + $0x18] sm:$0xff]
        %711 = vset.pattern.permute.xlu0 0
        %712 = vperm.xlu0 %711, %v706
        %v713 = vpop.permute.xlu0 %712
        %716 = vset.pattern.permute.xlu0 0
        %717 = vperm.xlu0 %716, %v707
        %v718 = vpop.permute.xlu0 %717
        %721 = vset.pattern.permute.xlu0 0
        %722 = vperm.xlu0 %721, %v708
        %v723 = vpop.permute.xlu0 %722
        %726 = vset.pattern.permute.xlu0 0
        %727 = vperm.xlu0 %726, %v709
        %v728 = vpop.permute.xlu0 %727
        %v730 = vadd.f32 %v702, %v713
        %v731 = vadd.f32 %v703, %v718
        %v732 = vadd.f32 %v704, %v723
        %v733 = vadd.f32 %v705, %v728
        %v734 = vmax.f32 %v730, 0.0
        %v735 = vmax.f32 %v731, 0.0
        %v736 = vmax.f32 %v732, 0.0
        %v737 = vmax.f32 %v733, 0.0
        %v738 = vpack.c.bf16 %v734, %v734
        %v739 = vpack.c.bf16 %v735, %v735
        %v740 = vpack.c.bf16 %v736, %v736
        %v741 = vpack.c.bf16 %v737, %v737
        %742 = vst [vmem:[%s356] sm:$0xf] %v738
        %743 = vst [vmem:[%s356 + $0x4] sm:$0xf] %v739
        %744 = vst [vmem:[%s356 + $0x8] sm:$0xf] %v740
        %745 = vst [vmem:[%s356 + $0xc] sm:$0xf] %v741
        %s746 = sand.u32 %s119, 1
        %s747 = sand.u32 %s119, 1
        %s748 = smul.addr %s747, 16
        %s749 = scalar_lea.vmem [#allocation5], %s748
        // Predicated region
        $region119: #{cnn_only_forward.3} parent=109 // pred_check
          %p750 = pneg %p129
        $region120: #{cnn_only_forward.3} parent=109 // pred_check_branch
          %752 = sbr.rel (%p750) target = $region122
        $region121: #{cnn_only_forward.3} parent=109 // pred_region
          %s753 = smul.addr %s15, 4
          %s754 = scalar_lea.vmem %s4, %s753
          // Predicated region
          $region123: #{cnn_only_forward.3} parent=121 // pred_check
            _
          $region124: #{cnn_only_forward.3} parent=121 // pred_check_branch
            %756 = sbr.rel (0) target = $region126
          $region125: #{cnn_only_forward.3} parent=121 // pred_region
            // Predicated region
            $region127: #{cnn_only_forward.3} parent=125 // pred_check
              _
            $region128: #{cnn_only_forward.3} parent=125 // pred_check_branch
              %758 = sbr.rel target = $region130
            $region129: #{cnn_only_forward.3} parent=125 // pred_region
              // Predicated region
              $region142: #{cnn_only_forward.3} parent=129 // pred_check
                _
              $region143: #{cnn_only_forward.3} parent=129 // pred_check_branch
                %780 = sbr.rel (0) target = $region145
              $region144: #{cnn_only_forward.3} parent=129 // pred_region
                loop: start=0, step=1, limit=1
                $region146: #{cnn_only_forward.3} parent=144 // loop_pre_header
                  _
                $region147: #{cnn_only_forward.3} parent=144 // loop_header
                  %s782 = sphi 0, %s786
                  %p783 = scmp.ge.s32.totalorder %s782, 1
                  %s787 = sphi %s749, %s749
                  %s788 = sphi %s754, %s754
                $region148: #{cnn_only_forward.3} parent=144 // loop_header_branch
                  %785 = sbr.rel (%p783) target = $region152
                $region149: #{cnn_only_forward.3} parent=144 // loop_body
                  _
                $region150: #{cnn_only_forward.3} parent=144 // loop_footer
                  %s786 = sadd.s32 1, %s782
                $region151: #{cnn_only_forward.3} parent=144 // loop_footer_branch
                  %781 = sbr.rel target = $region147
                $region152: #{cnn_only_forward.3} parent=144 // loop_exit
                  _
                %s790 = ssub.s32 16, 1
                loop: start=0, step=1, limit=1
                $region153: #{cnn_only_forward.3} parent=144 // loop_pre_header
                  _
                $region154: #{cnn_only_forward.3} parent=144 // loop_header
                  %s792 = sphi 0, %s796
                  %p793 = scmp.ge.s32.totalorder %s792, 1
                  %s797 = sphi %s749, %s749
                  %s798 = sphi %s754, %s754
                $region155: #{cnn_only_forward.3} parent=144 // loop_header_branch
                  %795 = sbr.rel (%p793) target = $region159
                $region156: #{cnn_only_forward.3} parent=144 // loop_body
                  %v799 = vld [vmem:[%s797] sm:%s790]
                  %800 = vst [vmem:[%s798] sm:%s790] %v799
                  %v801 = vld [vmem:[%s797 + $0x4] sm:%s790]
                  %802 = vst [vmem:[%s798 + $0x8] sm:%s790] %v801
                  %v803 = vld [vmem:[%s797 + $0x8] sm:%s790]
                  %804 = vst [vmem:[%s798 + $0x10] sm:%s790] %v803
                  %v805 = vld [vmem:[%s797 + $0xc] sm:%s790]
                  %806 = vst [vmem:[%s798 + $0x18] sm:%s790] %v805
                $region157: #{cnn_only_forward.3} parent=144 // loop_footer
                  %s796 = sadd.s32 1, %s792
                $region158: #{cnn_only_forward.3} parent=144 // loop_footer_branch
                  %791 = sbr.rel target = $region154
                $region159: #{cnn_only_forward.3} parent=144 // loop_exit
                  _
              $region145: #{cnn_only_forward.3} parent=129 // pred_fallthru
                _
            $region130: #{cnn_only_forward.3} parent=125 // pred_fallthru
              _
            // Predicated region
            $region131: #{cnn_only_forward.3} parent=125 // pred_check
              _
            $region132: #{cnn_only_forward.3} parent=125 // pred_check_branch
              %760 = sbr.rel (0) target = $region134
            $region133: #{cnn_only_forward.3} parent=125 // pred_region
              %s762 = ssub.s32 16, 1
              loop: start=0, step=1, limit=1
              $region135: #{cnn_only_forward.3} parent=133 // loop_pre_header
                _
              $region136: #{cnn_only_forward.3} parent=133 // loop_header
                %s764 = sphi 0, %s768
                %p765 = scmp.ge.s32.totalorder %s764, 1
                %s769 = sphi %s749, %s749
                %s770 = sphi %s754, %s754
              $region137: #{cnn_only_forward.3} parent=133 // loop_header_branch
                %767 = sbr.rel (%p765) target = $region141
              $region138: #{cnn_only_forward.3} parent=133 // loop_body
                %v771 = vld [vmem:[%s769] sm:%s762]
                %772 = vst [vmem:[%s770] sm:%s762] %v771
                %v773 = vld [vmem:[%s769 + $0x4] sm:%s762]
                %774 = vst [vmem:[%s770 + $0x8] sm:%s762] %v773
                %v775 = vld [vmem:[%s769 + $0x8] sm:%s762]
                %776 = vst [vmem:[%s770 + $0x10] sm:%s762] %v775
                %v777 = vld [vmem:[%s769 + $0xc] sm:%s762]
                %778 = vst [vmem:[%s770 + $0x18] sm:%s762] %v777
              $region139: #{cnn_only_forward.3} parent=133 // loop_footer
                %s768 = sadd.s32 1, %s764
              $region140: #{cnn_only_forward.3} parent=133 // loop_footer_branch
                %763 = sbr.rel target = $region136
              $region141: #{cnn_only_forward.3} parent=133 // loop_exit
                _
            $region134: #{cnn_only_forward.3} parent=125 // pred_fallthru
              _
          $region126: #{cnn_only_forward.3} parent=121 // pred_fallthru
            _
          %807 = vnop
        $region122: #{cnn_only_forward.3} parent=109 // pred_fallthru
          _
      $region110: #{cnn_only_forward.3} parent=5 // pred_fallthru
        _
      %p808 = scmp.le.s32.totalorder 2, %s10
      // Predicated region
      $region160: #{cnn_only_forward.3} parent=5 // pred_check
        %p809 = pneg %p808
      $region161: #{cnn_only_forward.3} parent=5 // pred_check_branch
        %811 = sbr.rel (%p809) target = $region163
      $region162: #{cnn_only_forward.3} parent=5 // pred_region
        %s812 = ssub.s32 %s10, 2
        // Predicated region
        $region164: #{cnn_only_forward.3} parent=162 // pred_check
          %p813 = pneg %p135
        $region165: #{cnn_only_forward.3} parent=162 // pred_check_branch
          %815 = sbr.rel (%p813) target = $region167
        $region166: #{cnn_only_forward.3} parent=162 // pred_region
          %s816 = sand.u32 %s120, 1
          %s817 = sand.u32 %s120, 1
          %s818 = smul.addr %s817, 16
          %s819 = scalar_lea.vmem [#allocation5], %s818
        $region167: #{cnn_only_forward.3} parent=162 // pred_fallthru
          _
      $region163: #{cnn_only_forward.3} parent=5 // pred_fallthru
        _
    $region6: #{cnn_only_forward.3} parent=1 // loop_footer
      %s14 = sadd.s32 1, %s10
    $region7: #{cnn_only_forward.3} parent=1 // loop_footer_branch
      %9 = sbr.rel target = $region3
    $region8: #{cnn_only_forward.3} parent=1 // loop_exit
      _

// kernel: cnn_only_forward.4
$region0: #{cnn_only_forward.4}
  #allocation0 [shape = 'u32[]', space=smem, size = 0x4, offset = 0x4, fixed_abs, tag = 'smem constant byte address 0x4 - core index']
  #allocation1 [shape = 'u32[72,128]{1,0:T(1,128)}', space=vmem, size = 0x9000, scoped, tag = 'internal scratch']
  #allocation2 [shape = 'bf16[128,256]{1,0:T(8,128)(2,1)}', space=vmem, size = 0x10000, scoped, tag = 'scratch operand']
  %s0 = inlined_call_operand.vmem [shape: bf16[128,256], index: 0, kind: input, shape index: {}, may-alias: {0,1}]
  %s1 = inlined_call_operand.vmem [shape: bf16[128,256], index: 1, kind: input, shape index: {}, may-alias: {0,1}]
  %s2 = inlined_call_operand.vmem [shape: bf16[4,64,128], index: 2, kind: input, shape index: {}]
  %s3 = inlined_call_operand.vmem [shape: f32[64,1], index: 3, kind: input, shape index: {}]
  %s4 = inlined_call_operand.vmem [shape: bf16[64,32], index: 4, kind: output, shape index: {}]
  %s5 = sld [smem:[#allocation0]]
  $region108: #{cnn_only_forward.4} parent=0
    _
  %s7 = ssub.s32 1, %s5
  %s8 = scalar_select 0, %s7, %s5
  $region1: #{cnn_only_forward.4} parent=0
    #allocation3 [shape = 'u8[32768]{0}', space=vmem, size = 0x8000, scoped, tag = 'input window, operand 0, single buffered']
    #allocation4 [shape = 'u8[32768]{0}', space=vmem, size = 0x8000, scoped, tag = 'input window, operand 1, single buffered']
    // Predicated region
    $region2: #{cnn_only_forward.4} parent=1 // pred_check
      _
    $region3: #{cnn_only_forward.4} parent=1 // pred_check_branch
      %10 = sbr.rel (0) target = $region5
    $region4: #{cnn_only_forward.4} parent=1 // pred_region
      // Predicated region
      $region6: #{cnn_only_forward.4} parent=4 // pred_check
        _
      $region7: #{cnn_only_forward.4} parent=4 // pred_check_branch
        %12 = sbr.rel (0) target = $region9
      $region8: #{cnn_only_forward.4} parent=4 // pred_region
        // Predicated region
        $region10: #{cnn_only_forward.4} parent=8 // pred_check
          _
        $region11: #{cnn_only_forward.4} parent=8 // pred_check_branch
          %14 = sbr.rel target = $region13
        $region12: #{cnn_only_forward.4} parent=8 // pred_region
          // Predicated region
          $region25: #{cnn_only_forward.4} parent=12 // pred_check
            _
          $region26: #{cnn_only_forward.4} parent=12 // pred_check_branch
            %60 = sbr.rel (0) target = $region28
          $region27: #{cnn_only_forward.4} parent=12 // pred_region
            loop: start=0, step=1, limit=1
            $region29: #{cnn_only_forward.4} parent=27 // loop_pre_header
              _
            $region30: #{cnn_only_forward.4} parent=27 // loop_header
              %s62 = sphi 0, %s66
              %p63 = scmp.ge.s32.totalorder %s62, 1
              %s67 = sphi %s0, %s0
              %s68 = sphi [#allocation3], [#allocation3]
            $region31: #{cnn_only_forward.4} parent=27 // loop_header_branch
              %65 = sbr.rel (%p63) target = $region35
            $region32: #{cnn_only_forward.4} parent=27 // loop_body
              _
            $region33: #{cnn_only_forward.4} parent=27 // loop_footer
              %s66 = sadd.s32 1, %s62
            $region34: #{cnn_only_forward.4} parent=27 // loop_footer_branch
              %61 = sbr.rel target = $region30
            $region35: #{cnn_only_forward.4} parent=27 // loop_exit
              _
            %s70 = ssub.s32 16, 1
            loop: start=0, step=1, limit=1
            $region36: #{cnn_only_forward.4} parent=27 // loop_pre_header
              _
            $region37: #{cnn_only_forward.4} parent=27 // loop_header
              %s72 = sphi 0, %s76
              %p73 = scmp.ge.s32.totalorder %s72, 1
              %s77 = sphi %s0, %s0
              %s78 = sphi [#allocation3], [#allocation3]
            $region38: #{cnn_only_forward.4} parent=27 // loop_header_branch
              %75 = sbr.rel (%p73) target = $region42
            $region39: #{cnn_only_forward.4} parent=27 // loop_body
              %v79 = vld [vmem:[%s77] sm:%s70]
              %80 = vst [vmem:[%s78] sm:%s70] %v79
              %v81 = vld [vmem:[%s77 + $0x8] sm:%s70]
              %82 = vst [vmem:[%s78 + $0x4] sm:%s70] %v81
              %v83 = vld [vmem:[%s77 + $0x10] sm:%s70]
              %84 = vst [vmem:[%s78 + $0x8] sm:%s70] %v83
              %v85 = vld [vmem:[%s77 + $0x18] sm:%s70]
              %86 = vst [vmem:[%s78 + $0xc] sm:%s70] %v85
              %v87 = vld [vmem:[%s77 + $0x20] sm:%s70]
              %88 = vst [vmem:[%s78 + $0x10] sm:%s70] %v87
              %v89 = vld [vmem:[%s77 + $0x28] sm:%s70]
              %90 = vst [vmem:[%s78 + $0x14] sm:%s70] %v89
              %v91 = vld [vmem:[%s77 + $0x30] sm:%s70]
              %92 = vst [vmem:[%s78 + $0x18] sm:%s70] %v91
              %v93 = vld [vmem:[%s77 + $0x38] sm:%s70]
              %94 = vst [vmem:[%s78 + $0x1c] sm:%s70] %v93
              %v95 = vld [vmem:[%s77 + $0x40] sm:%s70]
              %96 = vst [vmem:[%s78 + $0x20] sm:%s70] %v95
              %v97 = vld [vmem:[%s77 + $0x48] sm:%s70]
              %98 = vst [vmem:[%s78 + $0x24] sm:%s70] %v97
              %v99 = vld [vmem:[%s77 + $0x50] sm:%s70]
              %100 = vst [vmem:[%s78 + $0x28] sm:%s70] %v99
              %v101 = vld [vmem:[%s77 + $0x58] sm:%s70]
              %102 = vst [vmem:[%s78 + $0x2c] sm:%s70] %v101
              %v103 = vld [vmem:[%s77 + $0x60] sm:%s70]
              %104 = vst [vmem:[%s78 + $0x30] sm:%s70] %v103
              %v105 = vld [vmem:[%s77 + $0x68] sm:%s70]
              %106 = vst [vmem:[%s78 + $0x34] sm:%s70] %v105
              %v107 = vld [vmem:[%s77 + $0x70] sm:%s70]
              %108 = vst [vmem:[%s78 + $0x38] sm:%s70] %v107
              %v109 = vld [vmem:[%s77 + $0x78] sm:%s70]
              %110 = vst [vmem:[%s78 + $0x3c] sm:%s70] %v109
            $region40: #{cnn_only_forward.4} parent=27 // loop_footer
              %s76 = sadd.s32 1, %s72
            $region41: #{cnn_only_forward.4} parent=27 // loop_footer_branch
              %71 = sbr.rel target = $region37
            $region42: #{cnn_only_forward.4} parent=27 // loop_exit
              _
          $region28: #{cnn_only_forward.4} parent=12 // pred_fallthru
            _
        $region13: #{cnn_only_forward.4} parent=8 // pred_fallthru
          _
        // Predicated region
        $region14: #{cnn_only_forward.4} parent=8 // pred_check
          _
        $region15: #{cnn_only_forward.4} parent=8 // pred_check_branch
          %16 = sbr.rel (0) target = $region17
        $region16: #{cnn_only_forward.4} parent=8 // pred_region
          %s18 = ssub.s32 16, 1
          loop: start=0, step=1, limit=1
          $region18: #{cnn_only_forward.4} parent=16 // loop_pre_header
            _
          $region19: #{cnn_only_forward.4} parent=16 // loop_header
            %s20 = sphi 0, %s24
            %p21 = scmp.ge.s32.totalorder %s20, 1
            %s25 = sphi %s0, %s0
            %s26 = sphi [#allocation3], [#allocation3]
          $region20: #{cnn_only_forward.4} parent=16 // loop_header_branch
            %23 = sbr.rel (%p21) target = $region24
          $region21: #{cnn_only_forward.4} parent=16 // loop_body
            %v27 = vld [vmem:[%s25] sm:%s18]
            %28 = vst [vmem:[%s26] sm:%s18] %v27
            %v29 = vld [vmem:[%s25 + $0x8] sm:%s18]
            %30 = vst [vmem:[%s26 + $0x4] sm:%s18] %v29
            %v31 = vld [vmem:[%s25 + $0x10] sm:%s18]
            %32 = vst [vmem:[%s26 + $0x8] sm:%s18] %v31
            %v33 = vld [vmem:[%s25 + $0x18] sm:%s18]
            %34 = vst [vmem:[%s26 + $0xc] sm:%s18] %v33
            %v35 = vld [vmem:[%s25 + $0x20] sm:%s18]
            %36 = vst [vmem:[%s26 + $0x10] sm:%s18] %v35
            %v37 = vld [vmem:[%s25 + $0x28] sm:%s18]
            %38 = vst [vmem:[%s26 + $0x14] sm:%s18] %v37
            %v39 = vld [vmem:[%s25 + $0x30] sm:%s18]
            %40 = vst [vmem:[%s26 + $0x18] sm:%s18] %v39
            %v41 = vld [vmem:[%s25 + $0x38] sm:%s18]
            %42 = vst [vmem:[%s26 + $0x1c] sm:%s18] %v41
            %v43 = vld [vmem:[%s25 + $0x40] sm:%s18]
            %44 = vst [vmem:[%s26 + $0x20] sm:%s18] %v43
            %v45 = vld [vmem:[%s25 + $0x48] sm:%s18]
            %46 = vst [vmem:[%s26 + $0x24] sm:%s18] %v45
            %v47 = vld [vmem:[%s25 + $0x50] sm:%s18]
            %48 = vst [vmem:[%s26 + $0x28] sm:%s18] %v47
            %v49 = vld [vmem:[%s25 + $0x58] sm:%s18]
            %50 = vst [vmem:[%s26 + $0x2c] sm:%s18] %v49
            %v51 = vld [vmem:[%s25 + $0x60] sm:%s18]
            %52 = vst [vmem:[%s26 + $0x30] sm:%s18] %v51
            %v53 = vld [vmem:[%s25 + $0x68] sm:%s18]
            %54 = vst [vmem:[%s26 + $0x34] sm:%s18] %v53
            %v55 = vld [vmem:[%s25 + $0x70] sm:%s18]
            %56 = vst [vmem:[%s26 + $0x38] sm:%s18] %v55
            %v57 = vld [vmem:[%s25 + $0x78] sm:%s18]
            %58 = vst [vmem:[%s26 + $0x3c] sm:%s18] %v57
          $region22: #{cnn_only_forward.4} parent=16 // loop_footer
            %s24 = sadd.s32 1, %s20
          $region23: #{cnn_only_forward.4} parent=16 // loop_footer_branch
            %19 = sbr.rel target = $region19
          $region24: #{cnn_only_forward.4} parent=16 // loop_exit
            _
        $region17: #{cnn_only_forward.4} parent=8 // pred_fallthru
          _
      $region9: #{cnn_only_forward.4} parent=4 // pred_fallthru
        _
      %111 = vnop
    $region5: #{cnn_only_forward.4} parent=1 // pred_fallthru
      _
    // Predicated region
    $region43: #{cnn_only_forward.4} parent=1 // pred_check
      _
    $region44: #{cnn_only_forward.4} parent=1 // pred_check_branch
      %113 = sbr.rel (0) target = $region46
    $region45: #{cnn_only_forward.4} parent=1 // pred_region
      %s114 = sadd.s32 0, 1
      %s115 = smul.addr %s114, 4
      %s116 = scalar_lea.vmem %s1, %s115
      // Predicated region
      $region47: #{cnn_only_forward.4} parent=45 // pred_check
        _
      $region48: #{cnn_only_forward.4} parent=45 // pred_check_branch
        %118 = sbr.rel (0) target = $region50
      $region49: #{cnn_only_forward.4} parent=45 // pred_region
        // Predicated region
        $region51: #{cnn_only_forward.4} parent=49 // pred_check
          _
        $region52: #{cnn_only_forward.4} parent=49 // pred_check_branch
          %120 = sbr.rel target = $region54
        $region53: #{cnn_only_forward.4} parent=49 // pred_region
          // Predicated region
          $region66: #{cnn_only_forward.4} parent=53 // pred_check
            _
          $region67: #{cnn_only_forward.4} parent=53 // pred_check_branch
            %166 = sbr.rel (0) target = $region69
          $region68: #{cnn_only_forward.4} parent=53 // pred_region
            loop: start=0, step=1, limit=1
            $region70: #{cnn_only_forward.4} parent=68 // loop_pre_header
              _
            $region71: #{cnn_only_forward.4} parent=68 // loop_header
              %s168 = sphi 0, %s172
              %p169 = scmp.ge.s32.totalorder %s168, 1
              %s173 = sphi %s116, %s116
              %s174 = sphi [#allocation4], [#allocation4]
            $region72: #{cnn_only_forward.4} parent=68 // loop_header_branch
              %171 = sbr.rel (%p169) target = $region76
            $region73: #{cnn_only_forward.4} parent=68 // loop_body
              _
            $region74: #{cnn_only_forward.4} parent=68 // loop_footer
              %s172 = sadd.s32 1, %s168
            $region75: #{cnn_only_forward.4} parent=68 // loop_footer_branch
              %167 = sbr.rel target = $region71
            $region76: #{cnn_only_forward.4} parent=68 // loop_exit
              _
            %s176 = ssub.s32 16, 1
            loop: start=0, step=1, limit=1
            $region77: #{cnn_only_forward.4} parent=68 // loop_pre_header
              _
            $region78: #{cnn_only_forward.4} parent=68 // loop_header
              %s178 = sphi 0, %s182
              %p179 = scmp.ge.s32.totalorder %s178, 1
              %s183 = sphi %s116, %s116
              %s184 = sphi [#allocation4], [#allocation4]
            $region79: #{cnn_only_forward.4} parent=68 // loop_header_branch
              %181 = sbr.rel (%p179) target = $region83
            $region80: #{cnn_only_forward.4} parent=68 // loop_body
              %v185 = vld [vmem:[%s183] sm:%s176]
              %186 = vst [vmem:[%s184] sm:%s176] %v185
              %v187 = vld [vmem:[%s183 + $0x8] sm:%s176]
              %188 = vst [vmem:[%s184 + $0x4] sm:%s176] %v187
              %v189 = vld [vmem:[%s183 + $0x10] sm:%s176]
              %190 = vst [vmem:[%s184 + $0x8] sm:%s176] %v189
              %v191 = vld [vmem:[%s183 + $0x18] sm:%s176]
              %192 = vst [vmem:[%s184 + $0xc] sm:%s176] %v191
              %v193 = vld [vmem:[%s183 + $0x20] sm:%s176]
              %194 = vst [vmem:[%s184 + $0x10] sm:%s176] %v193
              %v195 = vld [vmem:[%s183 + $0x28] sm:%s176]
              %196 = vst [vmem:[%s184 + $0x14] sm:%s176] %v195
              %v197 = vld [vmem:[%s183 + $0x30] sm:%s176]
              %198 = vst [vmem:[%s184 + $0x18] sm:%s176] %v197
              %v199 = vld [vmem:[%s183 + $0x38] sm:%s176]
              %200 = vst [vmem:[%s184 + $0x1c] sm:%s176] %v199
              %v201 = vld [vmem:[%s183 + $0x40] sm:%s176]
              %202 = vst [vmem:[%s184 + $0x20] sm:%s176] %v201
              %v203 = vld [vmem:[%s183 + $0x48] sm:%s176]
              %204 = vst [vmem:[%s184 + $0x24] sm:%s176] %v203
              %v205 = vld [vmem:[%s183 + $0x50] sm:%s176]
              %206 = vst [vmem:[%s184 + $0x28] sm:%s176] %v205
              %v207 = vld [vmem:[%s183 + $0x58] sm:%s176]
              %208 = vst [vmem:[%s184 + $0x2c] sm:%s176] %v207
              %v209 = vld [vmem:[%s183 + $0x60] sm:%s176]
              %210 = vst [vmem:[%s184 + $0x30] sm:%s176] %v209
              %v211 = vld [vmem:[%s183 + $0x68] sm:%s176]
              %212 = vst [vmem:[%s184 + $0x34] sm:%s176] %v211
              %v213 = vld [vmem:[%s183 + $0x70] sm:%s176]
              %214 = vst [vmem:[%s184 + $0x38] sm:%s176] %v213
              %v215 = vld [vmem:[%s183 + $0x78] sm:%s176]
              %216 = vst [vmem:[%s184 + $0x3c] sm:%s176] %v215
            $region81: #{cnn_only_forward.4} parent=68 // loop_footer
              %s182 = sadd.s32 1, %s178
            $region82: #{cnn_only_forward.4} parent=68 // loop_footer_branch
              %177 = sbr.rel target = $region78
            $region83: #{cnn_only_forward.4} parent=68 // loop_exit
              _
          $region69: #{cnn_only_forward.4} parent=53 // pred_fallthru
            _
        $region54: #{cnn_only_forward.4} parent=49 // pred_fallthru
          _
        // Predicated region
        $region55: #{cnn_only_forward.4} parent=49 // pred_check
          _
        $region56: #{cnn_only_forward.4} parent=49 // pred_check_branch
          %122 = sbr.rel (0) target = $region58
        $region57: #{cnn_only_forward.4} parent=49 // pred_region
          %s124 = ssub.s32 16, 1
          loop: start=0, step=1, limit=1
          $region59: #{cnn_only_forward.4} parent=57 // loop_pre_header
            _
          $region60: #{cnn_only_forward.4} parent=57 // loop_header
            %s126 = sphi 0, %s130
            %p127 = scmp.ge.s32.totalorder %s126, 1
            %s131 = sphi %s116, %s116
            %s132 = sphi [#allocation4], [#allocation4]
          $region61: #{cnn_only_forward.4} parent=57 // loop_header_branch
            %129 = sbr.rel (%p127) target = $region65
          $region62: #{cnn_only_forward.4} parent=57 // loop_body
            %v133 = vld [vmem:[%s131] sm:%s124]
            %134 = vst [vmem:[%s132] sm:%s124] %v133
            %v135 = vld [vmem:[%s131 + $0x8] sm:%s124]
            %136 = vst [vmem:[%s132 + $0x4] sm:%s124] %v135
            %v137 = vld [vmem:[%s131 + $0x10] sm:%s124]
            %138 = vst [vmem:[%s132 + $0x8] sm:%s124] %v137
            %v139 = vld [vmem:[%s131 + $0x18] sm:%s124]
            %140 = vst [vmem:[%s132 + $0xc] sm:%s124] %v139
            %v141 = vld [vmem:[%s131 + $0x20] sm:%s124]
            %142 = vst [vmem:[%s132 + $0x10] sm:%s124] %v141
            %v143 = vld [vmem:[%s131 + $0x28] sm:%s124]
            %144 = vst [vmem:[%s132 + $0x14] sm:%s124] %v143
            %v145 = vld [vmem:[%s131 + $0x30] sm:%s124]
            %146 = vst [vmem:[%s132 + $0x18] sm:%s124] %v145
            %v147 = vld [vmem:[%s131 + $0x38] sm:%s124]
            %148 = vst [vmem:[%s132 + $0x1c] sm:%s124] %v147
            %v149 = vld [vmem:[%s131 + $0x40] sm:%s124]
            %150 = vst [vmem:[%s132 + $0x20] sm:%s124] %v149
            %v151 = vld [vmem:[%s131 + $0x48] sm:%s124]
            %152 = vst [vmem:[%s132 + $0x24] sm:%s124] %v151
            %v153 = vld [vmem:[%s131 + $0x50] sm:%s124]
            %154 = vst [vmem:[%s132 + $0x28] sm:%s124] %v153
            %v155 = vld [vmem:[%s131 + $0x58] sm:%s124]
            %156 = vst [vmem:[%s132 + $0x2c] sm:%s124] %v155
            %v157 = vld [vmem:[%s131 + $0x60] sm:%s124]
            %158 = vst [vmem:[%s132 + $0x30] sm:%s124] %v157
            %v159 = vld [vmem:[%s131 + $0x68] sm:%s124]
            %160 = vst [vmem:[%s132 + $0x34] sm:%s124] %v159
            %v161 = vld [vmem:[%s131 + $0x70] sm:%s124]
            %162 = vst [vmem:[%s132 + $0x38] sm:%s124] %v161
            %v163 = vld [vmem:[%s131 + $0x78] sm:%s124]
            %164 = vst [vmem:[%s132 + $0x3c] sm:%s124] %v163
          $region63: #{cnn_only_forward.4} parent=57 // loop_footer
            %s130 = sadd.s32 1, %s126
          $region64: #{cnn_only_forward.4} parent=57 // loop_footer_branch
            %125 = sbr.rel target = $region60
          $region65: #{cnn_only_forward.4} parent=57 // loop_exit
            _
        $region58: #{cnn_only_forward.4} parent=49 // pred_fallthru
          _
      $region50: #{cnn_only_forward.4} parent=45 // pred_fallthru
        _
      %217 = vnop
    $region46: #{cnn_only_forward.4} parent=1 // pred_fallthru
      _
    // Predicated region
    $region84: #{cnn_only_forward.4} parent=1 // pred_check
      _
    $region85: #{cnn_only_forward.4} parent=1 // pred_check_branch
      %219 = sbr.rel (0) target = $region87
    $region86: #{cnn_only_forward.4} parent=1 // pred_region
      _
    $region87: #{cnn_only_forward.4} parent=1 // pred_fallthru
      _
    // Predicated region
    $region88: #{cnn_only_forward.4} parent=1 // pred_check
      _
    $region89: #{cnn_only_forward.4} parent=1 // pred_check_branch
      %221 = sbr.rel (0) target = $region91
    $region90: #{cnn_only_forward.4} parent=1 // pred_region
      _
    $region91: #{cnn_only_forward.4} parent=1 // pred_fallthru
      _
    // Predicated region
    $region92: #{cnn_only_forward.4} parent=1 // pred_check
      _
    $region93: #{cnn_only_forward.4} parent=1 // pred_check_branch
      %223 = sbr.rel (0) target = $region95
    $region94: #{cnn_only_forward.4} parent=1 // pred_region
      _
    $region95: #{cnn_only_forward.4} parent=1 // pred_fallthru
      _
    // Predicated region
    $region96: #{cnn_only_forward.4} parent=1 // pred_check
      _
    $region97: #{cnn_only_forward.4} parent=1 // pred_check_branch
      %225 = sbr.rel (0) target = $region99
    $region98: #{cnn_only_forward.4} parent=1 // pred_region
      _
    $region99: #{cnn_only_forward.4} parent=1 // pred_fallthru
      _
    %s226 = sadd.s32 0, 1
    %v227 = vld [vmem:[#allocation3] sm:$0xf]
    %v228 = vld [vmem:[#allocation3 + $0x4] sm:$0xf]
    %v229 = vld [vmem:[#allocation3 + $0x8] sm:$0xf]
    %v230 = vld [vmem:[#allocation3 + $0xc] sm:$0xf]
    %v231 = vld [vmem:[#allocation3 + $0x10] sm:$0xf]
    %v232 = vld [vmem:[#allocation3 + $0x14] sm:$0xf]
    %v233 = vld [vmem:[#allocation3 + $0x18] sm:$0xf]
    %v234 = vld [vmem:[#allocation3 + $0x1c] sm:$0xf]
    %v235 = vld [vmem:[#allocation3 + $0x20] sm:$0xf]
    %v236 = vld [vmem:[#allocation3 + $0x24] sm:$0xf]
    %v237 = vld [vmem:[#allocation3 + $0x28] sm:$0xf]
    %v238 = vld [vmem:[#allocation3 + $0x2c] sm:$0xf]
    %v239 = vld [vmem:[#allocation3 + $0x30] sm:$0xf]
    %v240 = vld [vmem:[#allocation3 + $0x34] sm:$0xf]
    %v241 = vld [vmem:[#allocation3 + $0x38] sm:$0xf]
    %v242 = vld [vmem:[#allocation3 + $0x3c] sm:$0xf]
    %243 = vst [vmem:[#allocation2] sm:$0xf] %v227
    %244 = vst [vmem:[#allocation2 + $0x8] sm:$0xf] %v228
    %245 = vst [vmem:[#allocation2 + $0x10] sm:$0xf] %v229
    %246 = vst [vmem:[#allocation2 + $0x18] sm:$0xf] %v230
    %247 = vst [vmem:[#allocation2 + $0x20] sm:$0xf] %v231
    %248 = vst [vmem:[#allocation2 + $0x28] sm:$0xf] %v232
    %249 = vst [vmem:[#allocation2 + $0x30] sm:$0xf] %v233
    %250 = vst [vmem:[#allocation2 + $0x38] sm:$0xf] %v234
    %251 = vst [vmem:[#allocation2 + $0x40] sm:$0xf] %v235
    %252 = vst [vmem:[#allocation2 + $0x48] sm:$0xf] %v236
    %253 = vst [vmem:[#allocation2 + $0x50] sm:$0xf] %v237
    %254 = vst [vmem:[#allocation2 + $0x58] sm:$0xf] %v238
    %255 = vst [vmem:[#allocation2 + $0x60] sm:$0xf] %v239
    %256 = vst [vmem:[#allocation2 + $0x68] sm:$0xf] %v240
    %257 = vst [vmem:[#allocation2 + $0x70] sm:$0xf] %v241
    %258 = vst [vmem:[#allocation2 + $0x78] sm:$0xf] %v242
    %v259 = vld [vmem:[#allocation4] sm:$0xf]
    %v260 = vld [vmem:[#allocation4 + $0x4] sm:$0xf]
    %v261 = vld [vmem:[#allocation4 + $0x8] sm:$0xf]
    %v262 = vld [vmem:[#allocation4 + $0xc] sm:$0xf]
    %v263 = vld [vmem:[#allocation4 + $0x10] sm:$0xf]
    %v264 = vld [vmem:[#allocation4 + $0x14] sm:$0xf]
    %v265 = vld [vmem:[#allocation4 + $0x18] sm:$0xf]
    %v266 = vld [vmem:[#allocation4 + $0x1c] sm:$0xf]
    %v267 = vld [vmem:[#allocation4 + $0x20] sm:$0xf]
    %v268 = vld [vmem:[#allocation4 + $0x24] sm:$0xf]
    %v269 = vld [vmem:[#allocation4 + $0x28] sm:$0xf]
    %v270 = vld [vmem:[#allocation4 + $0x2c] sm:$0xf]
    %v271 = vld [vmem:[#allocation4 + $0x30] sm:$0xf]
    %v272 = vld [vmem:[#allocation4 + $0x34] sm:$0xf]
    %v273 = vld [vmem:[#allocation4 + $0x38] sm:$0xf]
    %v274 = vld [vmem:[#allocation4 + $0x3c] sm:$0xf]
    %275 = vst [vmem:[#allocation2 + $0x4] sm:$0xf] %v259
    %276 = vst [vmem:[#allocation2 + $0xc] sm:$0xf] %v260
    %277 = vst [vmem:[#allocation2 + $0x14] sm:$0xf] %v261
    %278 = vst [vmem:[#allocation2 + $0x1c] sm:$0xf] %v262
    %279 = vst [vmem:[#allocation2 + $0x24] sm:$0xf] %v263
    %280 = vst [vmem:[#allocation2 + $0x2c] sm:$0xf] %v264
    %281 = vst [vmem:[#allocation2 + $0x34] sm:$0xf] %v265
    %282 = vst [vmem:[#allocation2 + $0x3c] sm:$0xf] %v266
    %283 = vst [vmem:[#allocation2 + $0x44] sm:$0xf] %v267
    %284 = vst [vmem:[#allocation2 + $0x4c] sm:$0xf] %v268
    %285 = vst [vmem:[#allocation2 + $0x54] sm:$0xf] %v269
    %286 = vst [vmem:[#allocation2 + $0x5c] sm:$0xf] %v270
    %287 = vst [vmem:[#allocation2 + $0x64] sm:$0xf] %v271
    %288 = vst [vmem:[#allocation2 + $0x6c] sm:$0xf] %v272
    %289 = vst [vmem:[#allocation2 + $0x74] sm:$0xf] %v273
    %290 = vst [vmem:[#allocation2 + $0x7c] sm:$0xf] %v274
    %v291 = vld [vmem:[%s2] sm:$0xf]
    %v292 = vld [vmem:[%s2 + $0x4] sm:$0xf]
    %v293 = vld [vmem:[%s2 + $0x8] sm:$0xf]
    %v294 = vld [vmem:[%s2 + $0xc] sm:$0xf]
    %v295 = vld [vmem:[%s2 + $0x10] sm:$0xf]
    %v296 = vld [vmem:[%s2 + $0x14] sm:$0xf]
    %v297 = vld [vmem:[%s2 + $0x18] sm:$0xf]
    %v298 = vld [vmem:[%s2 + $0x1c] sm:$0xf]
    %v299 = vld [vmem:[#allocation2] sm:$0xf]
    %v300 = vld [vmem:[#allocation2 + $0x8] sm:$0xf]
    %v301 = vld [vmem:[#allocation2 + $0x10] sm:$0xf]
    %v302 = vld [vmem:[#allocation2 + $0x18] sm:$0xf]
    %v303 = vld [vmem:[#allocation2 + $0x20] sm:$0xf]
    %v304 = vld [vmem:[#allocation2 + $0x28] sm:$0xf]
    %v305 = vld [vmem:[#allocation2 + $0x30] sm:$0xf]
    %v306 = vld [vmem:[#allocation2 + $0x38] sm:$0xf]
    %v307 = vld [vmem:[#allocation2 + $0x40] sm:$0xf]
    %v308 = vld [vmem:[#allocation2 + $0x48] sm:$0xf]
    %v309 = vld [vmem:[#allocation2 + $0x50] sm:$0xf]
    %v310 = vld [vmem:[#allocation2 + $0x58] sm:$0xf]
    %v311 = vld [vmem:[#allocation2 + $0x60] sm:$0xf]
    %v312 = vld [vmem:[#allocation2 + $0x68] sm:$0xf]
    %v313 = vld [vmem:[#allocation2 + $0x70] sm:$0xf]
    %v314 = vld [vmem:[#allocation2 + $0x78] sm:$0xf]
    %s315 = scalar_lea.vmem %s2, 32
    %v316 = vld [vmem:[%s315] sm:$0xf]
    %v317 = vld [vmem:[%s315 + $0x4] sm:$0xf]
    %v318 = vld [vmem:[%s315 + $0x8] sm:$0xf]
    %v319 = vld [vmem:[%s315 + $0xc] sm:$0xf]
    %v320 = vld [vmem:[%s315 + $0x10] sm:$0xf]
    %v321 = vld [vmem:[%s315 + $0x14] sm:$0xf]
    %v322 = vld [vmem:[%s315 + $0x18] sm:$0xf]
    %v323 = vld [vmem:[%s315 + $0x1c] sm:$0xf]
    %v324 = vld [vmem:[#allocation2] sm:$0xff]
    %v325 = vld [vmem:[#allocation2 + $0x8] sm:$0xff]
    %v326 = vld [vmem:[#allocation2 + $0x10] sm:$0xff]
    %v327 = vld [vmem:[#allocation2 + $0x18] sm:$0xff]
    %v328 = vld [vmem:[#allocation2 + $0x20] sm:$0xff]
    %v329 = vld [vmem:[#allocation2 + $0x28] sm:$0xff]
    %v330 = vld [vmem:[#allocation2 + $0x30] sm:$0xff]
    %v331 = vld [vmem:[#allocation2 + $0x38] sm:$0xff]
    %v332 = vld [vmem:[#allocation2 + $0x40] sm:$0xff]
    %v333 = vld [vmem:[#allocation2 + $0x48] sm:$0xff]
    %v334 = vld [vmem:[#allocation2 + $0x50] sm:$0xff]
    %v335 = vld [vmem:[#allocation2 + $0x58] sm:$0xff]
    %v336 = vld [vmem:[#allocation2 + $0x60] sm:$0xff]
    %v337 = vld [vmem:[#allocation2 + $0x68] sm:$0xff]
    %v338 = vld [vmem:[#allocation2 + $0x70] sm:$0xff]
    %v339 = vld [vmem:[#allocation2 + $0x78] sm:$0xff]
    %v348 = vunpack.c.l.b16 %v316
    %v349 = vunpack.c.l.b16 %v317
    %v350 = vunpack.c.l.b16 %v318
    %v351 = vunpack.c.l.b16 %v319
    %v352 = vunpack.c.l.b16 %v320
    %v353 = vunpack.c.l.b16 %v321
    %v354 = vunpack.c.l.b16 %v322
    %v355 = vunpack.c.l.b16 %v323
    %v356 = vpack.c.b16 %v349, %v348
    %v357 = vpack.c.b16 %v351, %v350
    %v358 = vpack.c.b16 %v353, %v352
    %v359 = vpack.c.b16 %v355, %v354
    %v380 = vunpack.c.l.b16 %v324
    %v381 = vunpack.c.h.b16 %v324
    %v382 = vunpack.c.l.b16 %v325
    %v383 = vunpack.c.h.b16 %v325
    %v384 = vunpack.c.l.b16 %v326
    %v385 = vunpack.c.h.b16 %v326
    %v386 = vunpack.c.l.b16 %v327
    %v387 = vunpack.c.h.b16 %v327
    %v388 = vunpack.c.l.b16 %v328
    %v389 = vunpack.c.h.b16 %v328
    %v390 = vunpack.c.l.b16 %v329
    %v391 = vunpack.c.h.b16 %v329
    %v392 = vunpack.c.l.b16 %v330
    %v393 = vunpack.c.h.b16 %v330
    %v394 = vunpack.c.l.b16 %v331
    %v395 = vunpack.c.h.b16 %v331
    %v396 = vunpack.c.l.b16 %v332
    %v397 = vunpack.c.h.b16 %v332
    %v398 = vunpack.c.l.b16 %v333
    %v399 = vunpack.c.h.b16 %v333
    %v400 = vunpack.c.l.b16 %v334
    %v401 = vunpack.c.h.b16 %v334
    %v402 = vunpack.c.l.b16 %v335
    %v403 = vunpack.c.h.b16 %v335
    %v404 = vunpack.c.l.b16 %v336
    %v405 = vunpack.c.h.b16 %v336
    %v406 = vunpack.c.l.b16 %v337
    %v407 = vunpack.c.h.b16 %v337
    %v408 = vunpack.c.l.b16 %v338
    %v409 = vunpack.c.h.b16 %v338
    %v410 = vunpack.c.l.b16 %v339
    %v411 = vunpack.c.h.b16 %v339
    %v412 = vpack.c.b16 %v382, %v380
    %v413 = vpack.c.b16 %v383, %v381
    %v414 = vpack.c.b16 %v386, %v384
    %v415 = vpack.c.b16 %v387, %v385
    %v416 = vpack.c.b16 %v390, %v388
    %v417 = vpack.c.b16 %v391, %v389
    %v418 = vpack.c.b16 %v394, %v392
    %v419 = vpack.c.b16 %v395, %v393
    %v420 = vpack.c.b16 %v398, %v396
    %v421 = vpack.c.b16 %v399, %v397
    %v422 = vpack.c.b16 %v402, %v400
    %v423 = vpack.c.b16 %v403, %v401
    %v424 = vpack.c.b16 %v406, %v404
    %v425 = vpack.c.b16 %v407, %v405
    %v426 = vpack.c.b16 %v410, %v408
    %v427 = vpack.c.b16 %v411, %v409
    %428 = vrot.lane.b32.xlu0 %v412, 127
    %v429 = vpop.permute.xlu0 %428
    %430 = vrot.lane.b32.xlu0 %v413, 127
    %v431 = vpop.permute.xlu0 %430
    %432 = vrot.lane.b32.xlu0 %v414, 127
    %v433 = vpop.permute.xlu0 %432
    %434 = vrot.lane.b32.xlu0 %v415, 127
    %v435 = vpop.permute.xlu0 %434
    %436 = vrot.lane.b32.xlu0 %v416, 127
    %v437 = vpop.permute.xlu0 %436
    %438 = vrot.lane.b32.xlu0 %v417, 127
    %v439 = vpop.permute.xlu0 %438
    %440 = vrot.lane.b32.xlu0 %v418, 127
    %v441 = vpop.permute.xlu0 %440
    %442 = vrot.lane.b32.xlu0 %v419, 127
    %v443 = vpop.permute.xlu0 %442
    %444 = vrot.lane.b32.xlu0 %v420, 127
    %v445 = vpop.permute.xlu0 %444
    %446 = vrot.lane.b32.xlu0 %v421, 127
    %v447 = vpop.permute.xlu0 %446
    %448 = vrot.lane.b32.xlu0 %v422, 127
    %v449 = vpop.permute.xlu0 %448
    %450 = vrot.lane.b32.xlu0 %v423, 127
    %v451 = vpop.permute.xlu0 %450
    %452 = vrot.lane.b32.xlu0 %v424, 127
    %v453 = vpop.permute.xlu0 %452
    %454 = vrot.lane.b32.xlu0 %v425, 127
    %v455 = vpop.permute.xlu0 %454
    %456 = vrot.lane.b32.xlu0 %v426, 127
    %v457 = vpop.permute.xlu0 %456
    %458 = vrot.lane.b32.xlu0 %v427, 127
    %v459 = vpop.permute.xlu0 %458
    %vm460 = vcmask 1039360
    %v461 = vsel %vm460, %v429, %v431
    %v462 = vsel %vm460, %v433, %v435
    %v463 = vsel %vm460, %v437, %v439
    %v464 = vsel %vm460, %v441, %v443
    %v465 = vsel %vm460, %v445, %v447
    %v466 = vsel %vm460, %v449, %v451
    %v467 = vsel %vm460, %v453, %v455
    %v468 = vsel %vm460, %v457, %v459
    %477 = vmatpush.bf16.msra.mxu0 %v468
    %478 = vmatpush.bf16.msra.mxu0 %v467
    %479 = vmatpush.bf16.msra.mxu0 %v466
    %480 = vmatpush.bf16.msra.mxu0 %v465
    %481 = vmatpush.bf16.msra.mxu0 %v464
    %482 = vmatpush.bf16.msra.mxu0 %v463
    %483 = vmatpush.bf16.msra.mxu0 %v462
    %484 = vmatpush.bf16.msra.mxu0 %v461
    %485 = vmatmul.bf16.gmra.mxu0 %v356
    %v486 = vpop.f32.mrf.mxu0
    %v487 = vadd.f32 0.0, %v486
    %v488 = vpop.f32.mrf.mxu0
    %v489 = vadd.f32 0.0, %v488
    %490 = vmatmul.bf16.gmra.mxu0 %v357
    %v491 = vpop.f32.mrf.mxu0
    %v492 = vadd.f32 0.0, %v491
    %v493 = vpop.f32.mrf.mxu0
    %v494 = vadd.f32 0.0, %v493
    %495 = vmatmul.bf16.gmra.mxu0 %v358
    %v496 = vpop.f32.mrf.mxu0
    %v497 = vadd.f32 0.0, %v496
    %v498 = vpop.f32.mrf.mxu0
    %v499 = vadd.f32 0.0, %v498
    %500 = vmatmul.bf16.gmra.mxu0 %v359
    %v501 = vpop.f32.mrf.mxu0
    %v502 = vadd.f32 0.0, %v501
    %v503 = vpop.f32.mrf.mxu0
    %v504 = vadd.f32 0.0, %v503
    %505 = vdwg.mxu0
    %v514 = vunpack.c.l.b16 %v291
    %v515 = vunpack.c.l.b16 %v292
    %v516 = vunpack.c.l.b16 %v293
    %v517 = vunpack.c.l.b16 %v294
    %v518 = vunpack.c.l.b16 %v295
    %v519 = vunpack.c.l.b16 %v296
    %v520 = vunpack.c.l.b16 %v297
    %v521 = vunpack.c.l.b16 %v298
    %v522 = vpack.c.b16 %v515, %v514
    %v523 = vpack.c.b16 %v517, %v516
    %v524 = vpack.c.b16 %v519, %v518
    %v525 = vpack.c.b16 %v521, %v520
    %v546 = vunpack.c.l.b16 %v299
    %v547 = vunpack.c.l.b16 %v300
    %v548 = vunpack.c.l.b16 %v301
    %v549 = vunpack.c.l.b16 %v302
    %v550 = vunpack.c.l.b16 %v303
    %v551 = vunpack.c.l.b16 %v304
    %v552 = vunpack.c.l.b16 %v305
    %v553 = vunpack.c.l.b16 %v306
    %v554 = vunpack.c.l.b16 %v307
    %v555 = vunpack.c.l.b16 %v308
    %v556 = vunpack.c.l.b16 %v309
    %v557 = vunpack.c.l.b16 %v310
    %v558 = vunpack.c.l.b16 %v311
    %v559 = vunpack.c.l.b16 %v312
    %v560 = vunpack.c.l.b16 %v313
    %v561 = vunpack.c.l.b16 %v314
    %v562 = vpack.c.b16 %v547, %v546
    %v563 = vpack.c.b16 %v549, %v548
    %v564 = vpack.c.b16 %v551, %v550
    %v565 = vpack.c.b16 %v553, %v552
    %v566 = vpack.c.b16 %v555, %v554
    %v567 = vpack.c.b16 %v557, %v556
    %v568 = vpack.c.b16 %v559, %v558
    %v569 = vpack.c.b16 %v561, %v560
    %578 = vmatpush.bf16.msra.mxu0 %v569
    %579 = vmatpush.bf16.msra.mxu0 %v568
    %580 = vmatpush.bf16.msra.mxu0 %v567
    %581 = vmatpush.bf16.msra.mxu0 %v566
    %582 = vmatpush.bf16.msra.mxu0 %v565
    %583 = vmatpush.bf16.msra.mxu0 %v564
    %584 = vmatpush.bf16.msra.mxu0 %v563
    %585 = vmatpush.bf16.msra.mxu0 %v562
    %586 = vmatmul.bf16.gmra.mxu0 %v522
    %v587 = vpop.f32.mrf.mxu0
    %v588 = vadd.f32 %v487, %v587
    %v589 = vpop.f32.mrf.mxu0
    %v590 = vadd.f32 %v489, %v589
    %591 = vmatmul.bf16.gmra.mxu0 %v523
    %v592 = vpop.f32.mrf.mxu0
    %v593 = vadd.f32 %v492, %v592
    %v594 = vpop.f32.mrf.mxu0
    %v595 = vadd.f32 %v494, %v594
    %596 = vmatmul.bf16.gmra.mxu0 %v524
    %v597 = vpop.f32.mrf.mxu0
    %v598 = vadd.f32 %v497, %v597
    %v599 = vpop.f32.mrf.mxu0
    %v600 = vadd.f32 %v499, %v599
    %601 = vmatmul.bf16.gmra.mxu0 %v525
    %v602 = vpop.f32.mrf.mxu0
    %v603 = vadd.f32 %v502, %v602
    %v604 = vpop.f32.mrf.mxu0
    %v605 = vadd.f32 %v504, %v604
    %606 = vdwg.mxu0
    %s607 = scalar_lea.vmem %s2, 64
    %v608 = vld [vmem:[%s607] sm:$0xf]
    %v609 = vld [vmem:[%s607 + $0x4] sm:$0xf]
    %v610 = vld [vmem:[%s607 + $0x8] sm:$0xf]
    %v611 = vld [vmem:[%s607 + $0xc] sm:$0xf]
    %v612 = vld [vmem:[%s607 + $0x10] sm:$0xf]
    %v613 = vld [vmem:[%s607 + $0x14] sm:$0xf]
    %v614 = vld [vmem:[%s607 + $0x18] sm:$0xf]
    %v615 = vld [vmem:[%s607 + $0x1c] sm:$0xf]
    %v624 = vunpack.c.l.b16 %v608
    %v625 = vunpack.c.l.b16 %v609
    %v626 = vunpack.c.l.b16 %v610
    %v627 = vunpack.c.l.b16 %v611
    %v628 = vunpack.c.l.b16 %v612
    %v629 = vunpack.c.l.b16 %v613
    %v630 = vunpack.c.l.b16 %v614
    %v631 = vunpack.c.l.b16 %v615
    %v632 = vpack.c.b16 %v625, %v624
    %v633 = vpack.c.b16 %v627, %v626
    %v634 = vpack.c.b16 %v629, %v628
    %v635 = vpack.c.b16 %v631, %v630
    %640 = vrot.lane.b32.xlu0 %v412, 124
    %v641 = vpop.permute.xlu0 %640
    %642 = vrot.lane.b32.xlu0 %v413, 124
    %v643 = vpop.permute.xlu0 %642
    %644 = vrot.lane.b32.xlu0 %v414, 124
    %v645 = vpop.permute.xlu0 %644
    %646 = vrot.lane.b32.xlu0 %v415, 124
    %v647 = vpop.permute.xlu0 %646
    %648 = vrot.lane.b32.xlu0 %v416, 124
    %v649 = vpop.permute.xlu0 %648
    %650 = vrot.lane.b32.xlu0 %v417, 124
    %v651 = vpop.permute.xlu0 %650
    %652 = vrot.lane.b32.xlu0 %v418, 124
    %v653 = vpop.permute.xlu0 %652
    %654 = vrot.lane.b32.xlu0 %v419, 124
    %v655 = vpop.permute.xlu0 %654
    %656 = vrot.lane.b32.xlu0 %v420, 124
    %v657 = vpop.permute.xlu0 %656
    %658 = vrot.lane.b32.xlu0 %v421, 124
    %v659 = vpop.permute.xlu0 %658
    %660 = vrot.lane.b32.xlu0 %v422, 124
    %v661 = vpop.permute.xlu0 %660
    %662 = vrot.lane.b32.xlu0 %v423, 124
    %v663 = vpop.permute.xlu0 %662
    %664 = vrot.lane.b32.xlu0 %v424, 124
    %v665 = vpop.permute.xlu0 %664
    %666 = vrot.lane.b32.xlu0 %v425, 124
    %v667 = vpop.permute.xlu0 %666
    %668 = vrot.lane.b32.xlu0 %v426, 124
    %v669 = vpop.permute.xlu0 %668
    %670 = vrot.lane.b32.xlu0 %v427, 124
    %v671 = vpop.permute.xlu0 %670
    %vm672 = vcmask 1014784
    %v673 = vsel %vm672, %v641, %v643
    %v674 = vsel %vm672, %v645, %v647
    %v675 = vsel %vm672, %v649, %v651
    %v676 = vsel %vm672, %v653, %v655
    %v677 = vsel %vm672, %v657, %v659
    %v678 = vsel %vm672, %v661, %v663
    %v679 = vsel %vm672, %v665, %v667
    %v680 = vsel %vm672, %v669, %v671
    %689 = vmatpush.bf16.msra.mxu0 %v680
    %690 = vmatpush.bf16.msra.mxu0 %v679
    %691 = vmatpush.bf16.msra.mxu0 %v678
    %692 = vmatpush.bf16.msra.mxu0 %v677
    %693 = vmatpush.bf16.msra.mxu0 %v676
    %694 = vmatpush.bf16.msra.mxu0 %v675
    %695 = vmatpush.bf16.msra.mxu0 %v674
    %696 = vmatpush.bf16.msra.mxu0 %v673
    %697 = vmatmul.bf16.gmra.mxu0 %v632
    %v698 = vpop.f32.mrf.mxu0
    %v699 = vadd.f32 0.0, %v698
    %v700 = vpop.f32.mrf.mxu0
    %v701 = vadd.f32 0.0, %v700
    %702 = vmatmul.bf16.gmra.mxu0 %v633
    %v703 = vpop.f32.mrf.mxu0
    %v704 = vadd.f32 0.0, %v703
    %v705 = vpop.f32.mrf.mxu0
    %v706 = vadd.f32 0.0, %v705
    %707 = vmatmul.bf16.gmra.mxu0 %v634
    %v708 = vpop.f32.mrf.mxu0
    %v709 = vadd.f32 0.0, %v708
    %v710 = vpop.f32.mrf.mxu0
    %v711 = vadd.f32 0.0, %v710
    %712 = vmatmul.bf16.gmra.mxu0 %v635
    %v713 = vpop.f32.mrf.mxu0
    %v714 = vadd.f32 0.0, %v713
    %v715 = vpop.f32.mrf.mxu0
    %v716 = vadd.f32 0.0, %v715
    %717 = vdwg.mxu0
    %v718 = vadd.f32 %v588, %v699
    %v719 = vadd.f32 %v590, %v701
    %v720 = vadd.f32 %v593, %v704
    %v721 = vadd.f32 %v595, %v706
    %v722 = vadd.f32 %v598, %v709
    %v723 = vadd.f32 %v600, %v711
    %v724 = vadd.f32 %v603, %v714
    %v725 = vadd.f32 %v605, %v716
    %s726 = scalar_lea.vmem %s2, 96
    %v727 = vld [vmem:[%s726] sm:$0xf]
    %v728 = vld [vmem:[%s726 + $0x4] sm:$0xf]
    %v729 = vld [vmem:[%s726 + $0x8] sm:$0xf]
    %v730 = vld [vmem:[%s726 + $0xc] sm:$0xf]
    %v731 = vld [vmem:[%s726 + $0x10] sm:$0xf]
    %v732 = vld [vmem:[%s726 + $0x14] sm:$0xf]
    %v733 = vld [vmem:[%s726 + $0x18] sm:$0xf]
    %v734 = vld [vmem:[%s726 + $0x1c] sm:$0xf]
    %v743 = vunpack.c.l.b16 %v727
    %v744 = vunpack.c.l.b16 %v728
    %v745 = vunpack.c.l.b16 %v729
    %v746 = vunpack.c.l.b16 %v730
    %v747 = vunpack.c.l.b16 %v731
    %v748 = vunpack.c.l.b16 %v732
    %v749 = vunpack.c.l.b16 %v733
    %v750 = vunpack.c.l.b16 %v734
    %v751 = vpack.c.b16 %v744, %v743
    %v752 = vpack.c.b16 %v746, %v745
    %v753 = vpack.c.b16 %v748, %v747
    %v754 = vpack.c.b16 %v750, %v749
    %759 = vrot.lane.b32.xlu0 %v412, 123
    %v760 = vpop.permute.xlu0 %759
    %761 = vrot.lane.b32.xlu0 %v413, 123
    %v762 = vpop.permute.xlu0 %761
    %763 = vrot.lane.b32.xlu0 %v414, 123
    %v764 = vpop.permute.xlu0 %763
    %765 = vrot.lane.b32.xlu0 %v415, 123
    %v766 = vpop.permute.xlu0 %765
    %767 = vrot.lane.b32.xlu0 %v416, 123
    %v768 = vpop.permute.xlu0 %767
    %769 = vrot.lane.b32.xlu0 %v417, 123
    %v770 = vpop.permute.xlu0 %769
    %771 = vrot.lane.b32.xlu0 %v418, 123
    %v772 = vpop.permute.xlu0 %771
    %773 = vrot.lane.b32.xlu0 %v419, 123
    %v774 = vpop.permute.xlu0 %773
    %775 = vrot.lane.b32.xlu0 %v420, 123
    %v776 = vpop.permute.xlu0 %775
    %777 = vrot.lane.b32.xlu0 %v421, 123
    %v778 = vpop.permute.xlu0 %777
    %779 = vrot.lane.b32.xlu0 %v422, 123
    %v780 = vpop.permute.xlu0 %779
    %781 = vrot.lane.b32.xlu0 %v423, 123
    %v782 = vpop.permute.xlu0 %781
    %783 = vrot.lane.b32.xlu0 %v424, 123
    %v784 = vpop.permute.xlu0 %783
    %785 = vrot.lane.b32.xlu0 %v425, 123
    %v786 = vpop.permute.xlu0 %785
    %787 = vrot.lane.b32.xlu0 %v426, 123
    %v788 = vpop.permute.xlu0 %787
    %789 = vrot.lane.b32.xlu0 %v427, 123
    %v790 = vpop.permute.xlu0 %789
    %vm791 = vcmask 1006592
    %v792 = vsel %vm791, %v760, %v762
    %v793 = vsel %vm791, %v764, %v766
    %v794 = vsel %vm791, %v768, %v770
    %v795 = vsel %vm791, %v772, %v774
    %v796 = vsel %vm791, %v776, %v778
    %v797 = vsel %vm791, %v780, %v782
    %v798 = vsel %vm791, %v784, %v786
    %v799 = vsel %vm791, %v788, %v790
    %808 = vmatpush.bf16.msra.mxu0 %v799
    %809 = vmatpush.bf16.msra.mxu0 %v798
    %810 = vmatpush.bf16.msra.mxu0 %v797
    %811 = vmatpush.bf16.msra.mxu0 %v796
    %812 = vmatpush.bf16.msra.mxu0 %v795
    %813 = vmatpush.bf16.msra.mxu0 %v794
    %814 = vmatpush.bf16.msra.mxu0 %v793
    %815 = vmatpush.bf16.msra.mxu0 %v792
    %816 = vmatmul.bf16.gmra.mxu0 %v751
    %v817 = vpop.f32.mrf.mxu0
    %v818 = vadd.f32 0.0, %v817
    %v819 = vpop.f32.mrf.mxu0
    %v820 = vadd.f32 0.0, %v819
    %821 = vmatmul.bf16.gmra.mxu0 %v752
    %v822 = vpop.f32.mrf.mxu0
    %v823 = vadd.f32 0.0, %v822
    %v824 = vpop.f32.mrf.mxu0
    %v825 = vadd.f32 0.0, %v824
    %826 = vmatmul.bf16.gmra.mxu0 %v753
    %v827 = vpop.f32.mrf.mxu0
    %v828 = vadd.f32 0.0, %v827
    %v829 = vpop.f32.mrf.mxu0
    %v830 = vadd.f32 0.0, %v829
    %831 = vmatmul.bf16.gmra.mxu0 %v754
    %v832 = vpop.f32.mrf.mxu0
    %v833 = vadd.f32 0.0, %v832
    %v834 = vpop.f32.mrf.mxu0
    %v835 = vadd.f32 0.0, %v834
    %836 = vdwg.mxu0
    %v837 = vadd.f32 %v718, %v818
    %v838 = vadd.f32 %v719, %v820
    %v839 = vadd.f32 %v720, %v823
    %v840 = vadd.f32 %v721, %v825
    %v841 = vadd.f32 %v722, %v828
    %v842 = vadd.f32 %v723, %v830
    %v843 = vadd.f32 %v724, %v833
    %v844 = vadd.f32 %v725, %v835
    %v845 = vld [vmem:[%s3] sm:$0xff]
    %v846 = vld [vmem:[%s3 + $0x8] sm:$0xff]
    %v847 = vld [vmem:[%s3 + $0x10] sm:$0xff]
    %v848 = vld [vmem:[%s3 + $0x18] sm:$0xff]
    %v849 = vld [vmem:[%s3 + $0x20] sm:$0xff]
    %v850 = vld [vmem:[%s3 + $0x28] sm:$0xff]
    %v851 = vld [vmem:[%s3 + $0x30] sm:$0xff]
    %v852 = vld [vmem:[%s3 + $0x38] sm:$0xff]
    %854 = vset.pattern.permute.xlu0 0
    %855 = vperm.xlu0 %854, %v845
    %v856 = vpop.permute.xlu0 %855
    %859 = vset.pattern.permute.xlu0 0
    %860 = vperm.xlu0 %859, %v846
    %v861 = vpop.permute.xlu0 %860
    %864 = vset.pattern.permute.xlu0 0
    %865 = vperm.xlu0 %864, %v847
    %v866 = vpop.permute.xlu0 %865
    %869 = vset.pattern.permute.xlu0 0
    %870 = vperm.xlu0 %869, %v848
    %v871 = vpop.permute.xlu0 %870
    %874 = vset.pattern.permute.xlu0 0
    %875 = vperm.xlu0 %874, %v849
    %v876 = vpop.permute.xlu0 %875
    %879 = vset.pattern.permute.xlu0 0
    %880 = vperm.xlu0 %879, %v850
    %v881 = vpop.permute.xlu0 %880
    %884 = vset.pattern.permute.xlu0 0
    %885 = vperm.xlu0 %884, %v851
    %v886 = vpop.permute.xlu0 %885
    %889 = vset.pattern.permute.xlu0 0
    %890 = vperm.xlu0 %889, %v852
    %v891 = vpop.permute.xlu0 %890
    %v893 = vadd.f32 %v837, %v856
    %v894 = vadd.f32 %v838, %v861
    %v895 = vadd.f32 %v839, %v866
    %v896 = vadd.f32 %v840, %v871
    %v897 = vadd.f32 %v841, %v876
    %v898 = vadd.f32 %v842, %v881
    %v899 = vadd.f32 %v843, %v886
    %v900 = vadd.f32 %v844, %v891
    %v901 = vmax.f32 %v893, 0.0
    %v902 = vmax.f32 %v894, 0.0
    %v903 = vmax.f32 %v895, 0.0
    %v904 = vmax.f32 %v896, 0.0
    %v905 = vmax.f32 %v897, 0.0
    %v906 = vmax.f32 %v898, 0.0
    %v907 = vmax.f32 %v899, 0.0
    %v908 = vmax.f32 %v900, 0.0
    %v909 = vpack.c.bf16 %v901, %v901
    %v910 = vpack.c.bf16 %v902, %v902
    %v911 = vpack.c.bf16 %v903, %v903
    %v912 = vpack.c.bf16 %v904, %v904
    %v913 = vpack.c.bf16 %v905, %v905
    %v914 = vpack.c.bf16 %v906, %v906
    %v915 = vpack.c.bf16 %v907, %v907
    %v916 = vpack.c.bf16 %v908, %v908
    %917 = vst [vmem:[%s4] sm:$0xf] %v909
    %918 = vst [vmem:[%s4 + $0x4] sm:$0xf] %v910
    %919 = vst [vmem:[%s4 + $0x8] sm:$0xf] %v911
    %920 = vst [vmem:[%s4 + $0xc] sm:$0xf] %v912
    %921 = vst [vmem:[%s4 + $0x10] sm:$0xf] %v913
    %922 = vst [vmem:[%s4 + $0x14] sm:$0xf] %v914
    %923 = vst [vmem:[%s4 + $0x18] sm:$0xf] %v915
    %924 = vst [vmem:[%s4 + $0x1c] sm:$0xf] %v916
    // Predicated region
    $region100: #{cnn_only_forward.4} parent=1 // pred_check
      _
    $region101: #{cnn_only_forward.4} parent=1 // pred_check_branch
      %926 = sbr.rel (0) target = $region103
    $region102: #{cnn_only_forward.4} parent=1 // pred_region
      _
    $region103: #{cnn_only_forward.4} parent=1 // pred_fallthru
      _
    // Predicated region
    $region104: #{cnn_only_forward.4} parent=1 // pred_check
      _
    $region105: #{cnn_only_forward.4} parent=1 // pred_check_branch
      %928 = sbr.rel (0) target = $region107
    $region106: #{cnn_only_forward.4} parent=1 // pred_region
      _
    $region107: #{cnn_only_forward.4} parent=1 // pred_fallthru
      _

// kernel: cnn_only_forward.5
$region0: #{cnn_only_forward.5}
  #allocation0 [shape = 'u32[]', space=smem, size = 0x4, offset = 0x4, fixed_abs, tag = 'smem constant byte address 0x4 - core index']
  #allocation1 [shape = 'u32[72,128]{1,0:T(1,128)}', space=vmem, size = 0x9000, scoped, tag = 'internal scratch']
  #allocation2 [shape = 'bf16[64,256]{1,0:T(8,128)(2,1)}', space=vmem, size = 0x8000, scoped, tag = 'scratch operand']
  %s0 = inlined_call_operand.vmem [shape: bf16[64,256], index: 0, kind: input, shape index: {}, may-alias: {0,1}]
  %s1 = inlined_call_operand.vmem [shape: bf16[64,256], index: 1, kind: input, shape index: {}, may-alias: {0,1}]
  %s2 = inlined_call_operand.vmem [shape: bf16[9,64,64], index: 2, kind: input, shape index: {}]
  %s3 = inlined_call_operand.vmem [shape: f32[64,1], index: 3, kind: input, shape index: {}]
  %s4 = inlined_call_operand.vmem [shape: f32[64,18], index: 4, kind: output, shape index: {}]
  %s5 = sld [smem:[#allocation0]]
  $region108: #{cnn_only_forward.5} parent=0
    _
  %s7 = ssub.s32 1, %s5
  %s8 = scalar_select 0, %s7, %s5
  $region1: #{cnn_only_forward.5} parent=0
    #allocation3 [shape = 'u8[16384]{0}', space=vmem, size = 0x4000, scoped, tag = 'input window, operand 0, single buffered']
    #allocation4 [shape = 'u8[16384]{0}', space=vmem, size = 0x4000, scoped, tag = 'input window, operand 1, single buffered']
    // Predicated region
    $region2: #{cnn_only_forward.5} parent=1 // pred_check
      _
    $region3: #{cnn_only_forward.5} parent=1 // pred_check_branch
      %10 = sbr.rel (0) target = $region5
    $region4: #{cnn_only_forward.5} parent=1 // pred_region
      // Predicated region
      $region6: #{cnn_only_forward.5} parent=4 // pred_check
        _
      $region7: #{cnn_only_forward.5} parent=4 // pred_check_branch
        %12 = sbr.rel (0) target = $region9
      $region8: #{cnn_only_forward.5} parent=4 // pred_region
        // Predicated region
        $region10: #{cnn_only_forward.5} parent=8 // pred_check
          _
        $region11: #{cnn_only_forward.5} parent=8 // pred_check_branch
          %14 = sbr.rel target = $region13
        $region12: #{cnn_only_forward.5} parent=8 // pred_region
          // Predicated region
          $region25: #{cnn_only_forward.5} parent=12 // pred_check
            _
          $region26: #{cnn_only_forward.5} parent=12 // pred_check_branch
            %44 = sbr.rel (0) target = $region28
          $region27: #{cnn_only_forward.5} parent=12 // pred_region
            loop: start=0, step=1, limit=1
            $region29: #{cnn_only_forward.5} parent=27 // loop_pre_header
              _
            $region30: #{cnn_only_forward.5} parent=27 // loop_header
              %s46 = sphi 0, %s50
              %p47 = scmp.ge.s32.totalorder %s46, 1
              %s51 = sphi %s0, %s0
              %s52 = sphi [#allocation3], [#allocation3]
            $region31: #{cnn_only_forward.5} parent=27 // loop_header_branch
              %49 = sbr.rel (%p47) target = $region35
            $region32: #{cnn_only_forward.5} parent=27 // loop_body
              _
            $region33: #{cnn_only_forward.5} parent=27 // loop_footer
              %s50 = sadd.s32 1, %s46
            $region34: #{cnn_only_forward.5} parent=27 // loop_footer_branch
              %45 = sbr.rel target = $region30
            $region35: #{cnn_only_forward.5} parent=27 // loop_exit
              _
            %s54 = ssub.s32 16, 1
            loop: start=0, step=1, limit=1
            $region36: #{cnn_only_forward.5} parent=27 // loop_pre_header
              _
            $region37: #{cnn_only_forward.5} parent=27 // loop_header
              %s56 = sphi 0, %s60
              %p57 = scmp.ge.s32.totalorder %s56, 1
              %s61 = sphi %s0, %s0
              %s62 = sphi [#allocation3], [#allocation3]
            $region38: #{cnn_only_forward.5} parent=27 // loop_header_branch
              %59 = sbr.rel (%p57) target = $region42
            $region39: #{cnn_only_forward.5} parent=27 // loop_body
              %v63 = vld [vmem:[%s61] sm:%s54]
              %64 = vst [vmem:[%s62] sm:%s54] %v63
              %v65 = vld [vmem:[%s61 + $0x8] sm:%s54]
              %66 = vst [vmem:[%s62 + $0x4] sm:%s54] %v65
              %v67 = vld [vmem:[%s61 + $0x10] sm:%s54]
              %68 = vst [vmem:[%s62 + $0x8] sm:%s54] %v67
              %v69 = vld [vmem:[%s61 + $0x18] sm:%s54]
              %70 = vst [vmem:[%s62 + $0xc] sm:%s54] %v69
              %v71 = vld [vmem:[%s61 + $0x20] sm:%s54]
              %72 = vst [vmem:[%s62 + $0x10] sm:%s54] %v71
              %v73 = vld [vmem:[%s61 + $0x28] sm:%s54]
              %74 = vst [vmem:[%s62 + $0x14] sm:%s54] %v73
              %v75 = vld [vmem:[%s61 + $0x30] sm:%s54]
              %76 = vst [vmem:[%s62 + $0x18] sm:%s54] %v75
              %v77 = vld [vmem:[%s61 + $0x38] sm:%s54]
              %78 = vst [vmem:[%s62 + $0x1c] sm:%s54] %v77
            $region40: #{cnn_only_forward.5} parent=27 // loop_footer
              %s60 = sadd.s32 1, %s56
            $region41: #{cnn_only_forward.5} parent=27 // loop_footer_branch
              %55 = sbr.rel target = $region37
            $region42: #{cnn_only_forward.5} parent=27 // loop_exit
              _
          $region28: #{cnn_only_forward.5} parent=12 // pred_fallthru
            _
        $region13: #{cnn_only_forward.5} parent=8 // pred_fallthru
          _
        // Predicated region
        $region14: #{cnn_only_forward.5} parent=8 // pred_check
          _
        $region15: #{cnn_only_forward.5} parent=8 // pred_check_branch
          %16 = sbr.rel (0) target = $region17
        $region16: #{cnn_only_forward.5} parent=8 // pred_region
          %s18 = ssub.s32 16, 1
          loop: start=0, step=1, limit=1
          $region18: #{cnn_only_forward.5} parent=16 // loop_pre_header
            _
          $region19: #{cnn_only_forward.5} parent=16 // loop_header
            %s20 = sphi 0, %s24
            %p21 = scmp.ge.s32.totalorder %s20, 1
            %s25 = sphi %s0, %s0
            %s26 = sphi [#allocation3], [#allocation3]
          $region20: #{cnn_only_forward.5} parent=16 // loop_header_branch
            %23 = sbr.rel (%p21) target = $region24
          $region21: #{cnn_only_forward.5} parent=16 // loop_body
            %v27 = vld [vmem:[%s25] sm:%s18]
            %28 = vst [vmem:[%s26] sm:%s18] %v27
            %v29 = vld [vmem:[%s25 + $0x8] sm:%s18]
            %30 = vst [vmem:[%s26 + $0x4] sm:%s18] %v29
            %v31 = vld [vmem:[%s25 + $0x10] sm:%s18]
            %32 = vst [vmem:[%s26 + $0x8] sm:%s18] %v31
            %v33 = vld [vmem:[%s25 + $0x18] sm:%s18]
            %34 = vst [vmem:[%s26 + $0xc] sm:%s18] %v33
            %v35 = vld [vmem:[%s25 + $0x20] sm:%s18]
            %36 = vst [vmem:[%s26 + $0x10] sm:%s18] %v35
            %v37 = vld [vmem:[%s25 + $0x28] sm:%s18]
            %38 = vst [vmem:[%s26 + $0x14] sm:%s18] %v37
            %v39 = vld [vmem:[%s25 + $0x30] sm:%s18]
            %40 = vst [vmem:[%s26 + $0x18] sm:%s18] %v39
            %v41 = vld [vmem:[%s25 + $0x38] sm:%s18]
            %42 = vst [vmem:[%s26 + $0x1c] sm:%s18] %v41
          $region22: #{cnn_only_forward.5} parent=16 // loop_footer
            %s24 = sadd.s32 1, %s20
          $region23: #{cnn_only_forward.5} parent=16 // loop_footer_branch
            %19 = sbr.rel target = $region19
          $region24: #{cnn_only_forward.5} parent=16 // loop_exit
            _
        $region17: #{cnn_only_forward.5} parent=8 // pred_fallthru
          _
      $region9: #{cnn_only_forward.5} parent=4 // pred_fallthru
        _
      %79 = vnop
    $region5: #{cnn_only_forward.5} parent=1 // pred_fallthru
      _
    // Predicated region
    $region43: #{cnn_only_forward.5} parent=1 // pred_check
      _
    $region44: #{cnn_only_forward.5} parent=1 // pred_check_branch
      %81 = sbr.rel (0) target = $region46
    $region45: #{cnn_only_forward.5} parent=1 // pred_region
      %s82 = sadd.s32 0, 1
      %s83 = smul.addr %s82, 4
      %s84 = scalar_lea.vmem %s1, %s83
      // Predicated region
      $region47: #{cnn_only_forward.5} parent=45 // pred_check
        _
      $region48: #{cnn_only_forward.5} parent=45 // pred_check_branch
        %86 = sbr.rel (0) target = $region50
      $region49: #{cnn_only_forward.5} parent=45 // pred_region
        // Predicated region
        $region51: #{cnn_only_forward.5} parent=49 // pred_check
          _
        $region52: #{cnn_only_forward.5} parent=49 // pred_check_branch
          %88 = sbr.rel target = $region54
        $region53: #{cnn_only_forward.5} parent=49 // pred_region
          // Predicated region
          $region66: #{cnn_only_forward.5} parent=53 // pred_check
            _
          $region67: #{cnn_only_forward.5} parent=53 // pred_check_branch
            %118 = sbr.rel (0) target = $region69
          $region68: #{cnn_only_forward.5} parent=53 // pred_region
            loop: start=0, step=1, limit=1
            $region70: #{cnn_only_forward.5} parent=68 // loop_pre_header
              _
            $region71: #{cnn_only_forward.5} parent=68 // loop_header
              %s120 = sphi 0, %s124
              %p121 = scmp.ge.s32.totalorder %s120, 1
              %s125 = sphi %s84, %s84
              %s126 = sphi [#allocation4], [#allocation4]
            $region72: #{cnn_only_forward.5} parent=68 // loop_header_branch
              %123 = sbr.rel (%p121) target = $region76
            $region73: #{cnn_only_forward.5} parent=68 // loop_body
              _
            $region74: #{cnn_only_forward.5} parent=68 // loop_footer
              %s124 = sadd.s32 1, %s120
            $region75: #{cnn_only_forward.5} parent=68 // loop_footer_branch
              %119 = sbr.rel target = $region71
            $region76: #{cnn_only_forward.5} parent=68 // loop_exit
              _
            %s128 = ssub.s32 16, 1
            loop: start=0, step=1, limit=1
            $region77: #{cnn_only_forward.5} parent=68 // loop_pre_header
              _
            $region78: #{cnn_only_forward.5} parent=68 // loop_header
              %s130 = sphi 0, %s134
              %p131 = scmp.ge.s32.totalorder %s130, 1
              %s135 = sphi %s84, %s84
              %s136 = sphi [#allocation4], [#allocation4]
            $region79: #{cnn_only_forward.5} parent=68 // loop_header_branch
              %133 = sbr.rel (%p131) target = $region83
            $region80: #{cnn_only_forward.5} parent=68 // loop_body
              %v137 = vld [vmem:[%s135] sm:%s128]
              %138 = vst [vmem:[%s136] sm:%s128] %v137
              %v139 = vld [vmem:[%s135 + $0x8] sm:%s128]
              %140 = vst [vmem:[%s136 + $0x4] sm:%s128] %v139
              %v141 = vld [vmem:[%s135 + $0x10] sm:%s128]
              %142 = vst [vmem:[%s136 + $0x8] sm:%s128] %v141
              %v143 = vld [vmem:[%s135 + $0x18] sm:%s128]
              %144 = vst [vmem:[%s136 + $0xc] sm:%s128] %v143
              %v145 = vld [vmem:[%s135 + $0x20] sm:%s128]
              %146 = vst [vmem:[%s136 + $0x10] sm:%s128] %v145
              %v147 = vld [vmem:[%s135 + $0x28] sm:%s128]
              %148 = vst [vmem:[%s136 + $0x14] sm:%s128] %v147
              %v149 = vld [vmem:[%s135 + $0x30] sm:%s128]
              %150 = vst [vmem:[%s136 + $0x18] sm:%s128] %v149
              %v151 = vld [vmem:[%s135 + $0x38] sm:%s128]
              %152 = vst [vmem:[%s136 + $0x1c] sm:%s128] %v151
            $region81: #{cnn_only_forward.5} parent=68 // loop_footer
              %s134 = sadd.s32 1, %s130
            $region82: #{cnn_only_forward.5} parent=68 // loop_footer_branch
              %129 = sbr.rel target = $region78
            $region83: #{cnn_only_forward.5} parent=68 // loop_exit
              _
          $region69: #{cnn_only_forward.5} parent=53 // pred_fallthru
            _
        $region54: #{cnn_only_forward.5} parent=49 // pred_fallthru
          _
        // Predicated region
        $region55: #{cnn_only_forward.5} parent=49 // pred_check
          _
        $region56: #{cnn_only_forward.5} parent=49 // pred_check_branch
          %90 = sbr.rel (0) target = $region58
        $region57: #{cnn_only_forward.5} parent=49 // pred_region
          %s92 = ssub.s32 16, 1
          loop: start=0, step=1, limit=1
          $region59: #{cnn_only_forward.5} parent=57 // loop_pre_header
            _
          $region60: #{cnn_only_forward.5} parent=57 // loop_header
            %s94 = sphi 0, %s98
            %p95 = scmp.ge.s32.totalorder %s94, 1
            %s99 = sphi %s84, %s84
            %s100 = sphi [#allocation4], [#allocation4]
          $region61: #{cnn_only_forward.5} parent=57 // loop_header_branch
            %97 = sbr.rel (%p95) target = $region65
          $region62: #{cnn_only_forward.5} parent=57 // loop_body
            %v101 = vld [vmem:[%s99] sm:%s92]
            %102 = vst [vmem:[%s100] sm:%s92] %v101
            %v103 = vld [vmem:[%s99 + $0x8] sm:%s92]
            %104 = vst [vmem:[%s100 + $0x4] sm:%s92] %v103
            %v105 = vld [vmem:[%s99 + $0x10] sm:%s92]
            %106 = vst [vmem:[%s100 + $0x8] sm:%s92] %v105
            %v107 = vld [vmem:[%s99 + $0x18] sm:%s92]
            %108 = vst [vmem:[%s100 + $0xc] sm:%s92] %v107
            %v109 = vld [vmem:[%s99 + $0x20] sm:%s92]
            %110 = vst [vmem:[%s100 + $0x10] sm:%s92] %v109
            %v111 = vld [vmem:[%s99 + $0x28] sm:%s92]
            %112 = vst [vmem:[%s100 + $0x14] sm:%s92] %v111
            %v113 = vld [vmem:[%s99 + $0x30] sm:%s92]
            %114 = vst [vmem:[%s100 + $0x18] sm:%s92] %v113
            %v115 = vld [vmem:[%s99 + $0x38] sm:%s92]
            %116 = vst [vmem:[%s100 + $0x1c] sm:%s92] %v115
          $region63: #{cnn_only_forward.5} parent=57 // loop_footer
            %s98 = sadd.s32 1, %s94
          $region64: #{cnn_only_forward.5} parent=57 // loop_footer_branch
            %93 = sbr.rel target = $region60
          $region65: #{cnn_only_forward.5} parent=57 // loop_exit
            _
        $region58: #{cnn_only_forward.5} parent=49 // pred_fallthru
          _
      $region50: #{cnn_only_forward.5} parent=45 // pred_fallthru
        _
      %153 = vnop
    $region46: #{cnn_only_forward.5} parent=1 // pred_fallthru
      _
    // Predicated region
    $region84: #{cnn_only_forward.5} parent=1 // pred_check
      _
    $region85: #{cnn_only_forward.5} parent=1 // pred_check_branch
      %155 = sbr.rel (0) target = $region87
    $region86: #{cnn_only_forward.5} parent=1 // pred_region
      _
    $region87: #{cnn_only_forward.5} parent=1 // pred_fallthru
      _
    // Predicated region
    $region88: #{cnn_only_forward.5} parent=1 // pred_check
      _
    $region89: #{cnn_only_forward.5} parent=1 // pred_check_branch
      %157 = sbr.rel (0) target = $region91
    $region90: #{cnn_only_forward.5} parent=1 // pred_region
      _
    $region91: #{cnn_only_forward.5} parent=1 // pred_fallthru
      _
    // Predicated region
    $region92: #{cnn_only_forward.5} parent=1 // pred_check
      _
    $region93: #{cnn_only_forward.5} parent=1 // pred_check_branch
      %159 = sbr.rel (0) target = $region95
    $region94: #{cnn_only_forward.5} parent=1 // pred_region
      _
    $region95: #{cnn_only_forward.5} parent=1 // pred_fallthru
      _
    // Predicated region
    $region96: #{cnn_only_forward.5} parent=1 // pred_check
      _
    $region97: #{cnn_only_forward.5} parent=1 // pred_check_branch
      %161 = sbr.rel (0) target = $region99
    $region98: #{cnn_only_forward.5} parent=1 // pred_region
      _
    $region99: #{cnn_only_forward.5} parent=1 // pred_fallthru
      _
    %s162 = sadd.s32 0, 1
    %v164 = vld [vmem:[#allocation3] sm:$0xf]
    %v165 = vld [vmem:[#allocation3 + $0x4] sm:$0xf]
    %v166 = vld [vmem:[#allocation3 + $0x8] sm:$0xf]
    %v167 = vld [vmem:[#allocation3 + $0xc] sm:$0xf]
    %v168 = vld [vmem:[#allocation3 + $0x10] sm:$0xf]
    %v169 = vld [vmem:[#allocation3 + $0x14] sm:$0xf]
    %v170 = vld [vmem:[#allocation3 + $0x18] sm:$0xf]
    %v171 = vld [vmem:[#allocation3 + $0x1c] sm:$0xf]
    %172 = vst [vmem:[#allocation2] sm:$0xf] %v164
    %173 = vst [vmem:[#allocation2 + $0x8] sm:$0xf] %v165
    %174 = vst [vmem:[#allocation2 + $0x10] sm:$0xf] %v166
    %175 = vst [vmem:[#allocation2 + $0x18] sm:$0xf] %v167
    %176 = vst [vmem:[#allocation2 + $0x20] sm:$0xf] %v168
    %177 = vst [vmem:[#allocation2 + $0x28] sm:$0xf] %v169
    %178 = vst [vmem:[#allocation2 + $0x30] sm:$0xf] %v170
    %179 = vst [vmem:[#allocation2 + $0x38] sm:$0xf] %v171
    %v180 = vld [vmem:[#allocation4] sm:$0xf]
    %v181 = vld [vmem:[#allocation4 + $0x4] sm:$0xf]
    %v182 = vld [vmem:[#allocation4 + $0x8] sm:$0xf]
    %v183 = vld [vmem:[#allocation4 + $0xc] sm:$0xf]
    %v184 = vld [vmem:[#allocation4 + $0x10] sm:$0xf]
    %v185 = vld [vmem:[#allocation4 + $0x14] sm:$0xf]
    %v186 = vld [vmem:[#allocation4 + $0x18] sm:$0xf]
    %v187 = vld [vmem:[#allocation4 + $0x1c] sm:$0xf]
    %188 = vst [vmem:[#allocation2 + $0x4] sm:$0xf] %v180
    %189 = vst [vmem:[#allocation2 + $0xc] sm:$0xf] %v181
    %190 = vst [vmem:[#allocation2 + $0x14] sm:$0xf] %v182
    %191 = vst [vmem:[#allocation2 + $0x1c] sm:$0xf] %v183
    %192 = vst [vmem:[#allocation2 + $0x24] sm:$0xf] %v184
    %193 = vst [vmem:[#allocation2 + $0x2c] sm:$0xf] %v185
    %194 = vst [vmem:[#allocation2 + $0x34] sm:$0xf] %v186
    %195 = vst [vmem:[#allocation2 + $0x3c] sm:$0xf] %v187
    %v196 = vld [vmem:[%s2] sm:$0xf]
    %v197 = vld [vmem:[%s2 + $0x4] sm:$0xf]
    %v198 = vld [vmem:[%s2 + $0x8] sm:$0xf]
    %v199 = vld [vmem:[%s2 + $0xc] sm:$0xf]
    %v200 = vld [vmem:[%s2 + $0x10] sm:$0xf]
    %v201 = vld [vmem:[%s2 + $0x14] sm:$0xf]
    %v202 = vld [vmem:[%s2 + $0x18] sm:$0xf]
    %v203 = vld [vmem:[%s2 + $0x1c] sm:$0xf]
    %v204 = vld [vmem:[#allocation2] sm:$0xf]
    %v205 = vld [vmem:[#allocation2 + $0x8] sm:$0xf]
    %v206 = vld [vmem:[#allocation2 + $0x10] sm:$0xf]
    %v207 = vld [vmem:[#allocation2 + $0x18] sm:$0xf]
    %v208 = vld [vmem:[#allocation2 + $0x20] sm:$0xf]
    %v209 = vld [vmem:[#allocation2 + $0x28] sm:$0xf]
    %v210 = vld [vmem:[#allocation2 + $0x30] sm:$0xf]
    %v211 = vld [vmem:[#allocation2 + $0x38] sm:$0xf]
    %s212 = scalar_lea.vmem %s2, 32
    %v213 = vld [vmem:[%s212] sm:$0xf]
    %v214 = vld [vmem:[%s212 + $0x4] sm:$0xf]
    %v215 = vld [vmem:[%s212 + $0x8] sm:$0xf]
    %v216 = vld [vmem:[%s212 + $0xc] sm:$0xf]
    %v217 = vld [vmem:[%s212 + $0x10] sm:$0xf]
    %v218 = vld [vmem:[%s212 + $0x14] sm:$0xf]
    %v219 = vld [vmem:[%s212 + $0x18] sm:$0xf]
    %v220 = vld [vmem:[%s212 + $0x1c] sm:$0xf]
    %v221 = vld [vmem:[#allocation2] sm:$0xff]
    %v222 = vld [vmem:[#allocation2 + $0x8] sm:$0xff]
    %v223 = vld [vmem:[#allocation2 + $0x10] sm:$0xff]
    %v224 = vld [vmem:[#allocation2 + $0x18] sm:$0xff]
    %v225 = vld [vmem:[#allocation2 + $0x20] sm:$0xff]
    %v226 = vld [vmem:[#allocation2 + $0x28] sm:$0xff]
    %v227 = vld [vmem:[#allocation2 + $0x30] sm:$0xff]
    %v228 = vld [vmem:[#allocation2 + $0x38] sm:$0xff]
    %v237 = vunpack.c.l.b16 %v213
    %v238 = vunpack.c.l.b16 %v214
    %v239 = vunpack.c.l.b16 %v215
    %v240 = vunpack.c.l.b16 %v216
    %v241 = vunpack.c.l.b16 %v217
    %v242 = vunpack.c.l.b16 %v218
    %v243 = vunpack.c.l.b16 %v219
    %v244 = vunpack.c.l.b16 %v220
    %v245 = vpack.c.b16 %v238, %v237
    %v246 = vpack.c.b16 %v240, %v239
    %v247 = vpack.c.b16 %v242, %v241
    %v248 = vpack.c.b16 %v244, %v243
    %v257 = vunpack.c.l.b16 %v221
    %v258 = vunpack.c.h.b16 %v221
    %v259 = vunpack.c.l.b16 %v222
    %v260 = vunpack.c.h.b16 %v222
    %v261 = vunpack.c.l.b16 %v223
    %v262 = vunpack.c.h.b16 %v223
    %v263 = vunpack.c.l.b16 %v224
    %v264 = vunpack.c.h.b16 %v224
    %v265 = vunpack.c.l.b16 %v225
    %v266 = vunpack.c.h.b16 %v225
    %v267 = vunpack.c.l.b16 %v226
    %v268 = vunpack.c.h.b16 %v226
    %v269 = vunpack.c.l.b16 %v227
    %v270 = vunpack.c.h.b16 %v227
    %v271 = vunpack.c.l.b16 %v228
    %v272 = vunpack.c.h.b16 %v228
    %v273 = vpack.c.b16 %v259, %v257
    %v274 = vpack.c.b16 %v260, %v258
    %v275 = vpack.c.b16 %v263, %v261
    %v276 = vpack.c.b16 %v264, %v262
    %v277 = vpack.c.b16 %v267, %v265
    %v278 = vpack.c.b16 %v268, %v266
    %v279 = vpack.c.b16 %v271, %v269
    %v280 = vpack.c.b16 %v272, %v270
    %281 = vrot.lane.b32.xlu0 %v273, 127
    %v282 = vpop.permute.xlu0 %281
    %283 = vrot.lane.b32.xlu0 %v274, 127
    %v284 = vpop.permute.xlu0 %283
    %285 = vrot.lane.b32.xlu0 %v275, 127
    %v286 = vpop.permute.xlu0 %285
    %287 = vrot.lane.b32.xlu0 %v276, 127
    %v288 = vpop.permute.xlu0 %287
    %289 = vrot.lane.b32.xlu0 %v277, 127
    %v290 = vpop.permute.xlu0 %289
    %291 = vrot.lane.b32.xlu0 %v278, 127
    %v292 = vpop.permute.xlu0 %291
    %293 = vrot.lane.b32.xlu0 %v279, 127
    %v294 = vpop.permute.xlu0 %293
    %295 = vrot.lane.b32.xlu0 %v280, 127
    %v296 = vpop.permute.xlu0 %295
    %vm297 = vcmask 1039360
    %v298 = vsel %vm297, %v282, %v284
    %v299 = vsel %vm297, %v286, %v288
    %v300 = vsel %vm297, %v290, %v292
    %v301 = vsel %vm297, %v294, %v296
    %vm306 = vcmask 523264
    %v308 = vsel %vm306, %v245, 0
    %v311 = vsel %vm306, %v246, 0
    %v314 = vsel %vm306, %v247, 0
    %v317 = vsel %vm306, %v248, 0
    %319 = vmatpush.bf16.msra.mxu0 0
    %320 = vmatpush.bf16.msra.mxu0 0
    %321 = vmatpush.bf16.msra.mxu0 0
    %322 = vmatpush.bf16.msra.mxu0 0
    %323 = vmatpush.bf16.msra.mxu0 %v301
    %324 = vmatpush.bf16.msra.mxu0 %v300
    %325 = vmatpush.bf16.msra.mxu0 %v299
    %326 = vmatpush.bf16.msra.mxu0 %v298
    %327 = vmatmul.bf16.gmra.mxu0 %v308
    %v328 = vpop.f32.mrf.mxu0
    %v329 = vadd.f32 0.0, %v328
    %v330 = vpop.f32.mrf.mxu0
    %v331 = vadd.f32 0.0, %v330
    %332 = vmatmul.bf16.gmra.mxu0 %v311
    %v333 = vpop.f32.mrf.mxu0
    %v334 = vadd.f32 0.0, %v333
    %v335 = vpop.f32.mrf.mxu0
    %v336 = vadd.f32 0.0, %v335
    %337 = vmatmul.bf16.gmra.mxu0 %v314
    %v338 = vpop.f32.mrf.mxu0
    %v339 = vadd.f32 0.0, %v338
    %v340 = vpop.f32.mrf.mxu0
    %v341 = vadd.f32 0.0, %v340
    %342 = vmatmul.bf16.gmra.mxu0 %v317
    %v343 = vpop.f32.mrf.mxu0
    %v344 = vadd.f32 0.0, %v343
    %v345 = vpop.f32.mrf.mxu0
    %v346 = vadd.f32 0.0, %v345
    %347 = vdwg.mxu0
    %v356 = vunpack.c.l.b16 %v196
    %v357 = vunpack.c.l.b16 %v197
    %v358 = vunpack.c.l.b16 %v198
    %v359 = vunpack.c.l.b16 %v199
    %v360 = vunpack.c.l.b16 %v200
    %v361 = vunpack.c.l.b16 %v201
    %v362 = vunpack.c.l.b16 %v202
    %v363 = vunpack.c.l.b16 %v203
    %v364 = vpack.c.b16 %v357, %v356
    %v365 = vpack.c.b16 %v359, %v358
    %v366 = vpack.c.b16 %v361, %v360
    %v367 = vpack.c.b16 %v363, %v362
    %v376 = vunpack.c.l.b16 %v204
    %v377 = vunpack.c.l.b16 %v205
    %v378 = vunpack.c.l.b16 %v206
    %v379 = vunpack.c.l.b16 %v207
    %v380 = vunpack.c.l.b16 %v208
    %v381 = vunpack.c.l.b16 %v209
    %v382 = vunpack.c.l.b16 %v210
    %v383 = vunpack.c.l.b16 %v211
    %v384 = vpack.c.b16 %v377, %v376
    %v385 = vpack.c.b16 %v379, %v378
    %v386 = vpack.c.b16 %v381, %v380
    %v387 = vpack.c.b16 %v383, %v382
    %v393 = vsel %vm306, %v364, 0
    %v396 = vsel %vm306, %v365, 0
    %v399 = vsel %vm306, %v366, 0
    %v402 = vsel %vm306, %v367, 0
    %404 = vmatpush.bf16.msra.mxu0 0
    %405 = vmatpush.bf16.msra.mxu0 0
    %406 = vmatpush.bf16.msra.mxu0 0
    %407 = vmatpush.bf16.msra.mxu0 0
    %408 = vmatpush.bf16.msra.mxu0 %v387
    %409 = vmatpush.bf16.msra.mxu0 %v386
    %410 = vmatpush.bf16.msra.mxu0 %v385
    %411 = vmatpush.bf16.msra.mxu0 %v384
    %412 = vmatmul.bf16.gmra.mxu0 %v393
    %v413 = vpop.f32.mrf.mxu0
    %v414 = vadd.f32 %v329, %v413
    %v415 = vpop.f32.mrf.mxu0
    %v416 = vadd.f32 %v331, %v415
    %417 = vmatmul.bf16.gmra.mxu0 %v396
    %v418 = vpop.f32.mrf.mxu0
    %v419 = vadd.f32 %v334, %v418
    %v420 = vpop.f32.mrf.mxu0
    %v421 = vadd.f32 %v336, %v420
    %422 = vmatmul.bf16.gmra.mxu0 %v399
    %v423 = vpop.f32.mrf.mxu0
    %v424 = vadd.f32 %v339, %v423
    %v425 = vpop.f32.mrf.mxu0
    %v426 = vadd.f32 %v341, %v425
    %427 = vmatmul.bf16.gmra.mxu0 %v402
    %v428 = vpop.f32.mrf.mxu0
    %v429 = vadd.f32 %v344, %v428
    %v430 = vpop.f32.mrf.mxu0
    %v431 = vadd.f32 %v346, %v430
    %432 = vdwg.mxu0
    %s433 = scalar_lea.vmem %s2, 64
    %v434 = vld [vmem:[%s433] sm:$0xf]
    %v435 = vld [vmem:[%s433 + $0x4] sm:$0xf]
    %v436 = vld [vmem:[%s433 + $0x8] sm:$0xf]
    %v437 = vld [vmem:[%s433 + $0xc] sm:$0xf]
    %v438 = vld [vmem:[%s433 + $0x10] sm:$0xf]
    %v439 = vld [vmem:[%s433 + $0x14] sm:$0xf]
    %v440 = vld [vmem:[%s433 + $0x18] sm:$0xf]
    %v441 = vld [vmem:[%s433 + $0x1c] sm:$0xf]
    %v450 = vunpack.c.l.b16 %v434
    %v451 = vunpack.c.l.b16 %v435
    %v452 = vunpack.c.l.b16 %v436
    %v453 = vunpack.c.l.b16 %v437
    %v454 = vunpack.c.l.b16 %v438
    %v455 = vunpack.c.l.b16 %v439
    %v456 = vunpack.c.l.b16 %v440
    %v457 = vunpack.c.l.b16 %v441
    %v458 = vpack.c.b16 %v451, %v450
    %v459 = vpack.c.b16 %v453, %v452
    %v460 = vpack.c.b16 %v455, %v454
    %v461 = vpack.c.b16 %v457, %v456
    %462 = vrot.lane.b32.xlu0 %v273, 126
    %v463 = vpop.permute.xlu0 %462
    %464 = vrot.lane.b32.xlu0 %v274, 126
    %v465 = vpop.permute.xlu0 %464
    %466 = vrot.lane.b32.xlu0 %v275, 126
    %v467 = vpop.permute.xlu0 %466
    %468 = vrot.lane.b32.xlu0 %v276, 126
    %v469 = vpop.permute.xlu0 %468
    %470 = vrot.lane.b32.xlu0 %v277, 126
    %v471 = vpop.permute.xlu0 %470
    %472 = vrot.lane.b32.xlu0 %v278, 126
    %v473 = vpop.permute.xlu0 %472
    %474 = vrot.lane.b32.xlu0 %v279, 126
    %v475 = vpop.permute.xlu0 %474
    %476 = vrot.lane.b32.xlu0 %v280, 126
    %v477 = vpop.permute.xlu0 %476
    %vm478 = vcmask 1031168
    %v479 = vsel %vm478, %v463, %v465
    %v480 = vsel %vm478, %v467, %v469
    %v481 = vsel %vm478, %v471, %v473
    %v482 = vsel %vm478, %v475, %v477
    %v488 = vsel %vm306, %v458, 0
    %v491 = vsel %vm306, %v459, 0
    %v494 = vsel %vm306, %v460, 0
    %v497 = vsel %vm306, %v461, 0
    %499 = vmatpush.bf16.msra.mxu0 0
    %500 = vmatpush.bf16.msra.mxu0 0
    %501 = vmatpush.bf16.msra.mxu0 0
    %502 = vmatpush.bf16.msra.mxu0 0
    %503 = vmatpush.bf16.msra.mxu0 %v482
    %504 = vmatpush.bf16.msra.mxu0 %v481
    %505 = vmatpush.bf16.msra.mxu0 %v480
    %506 = vmatpush.bf16.msra.mxu0 %v479
    %507 = vmatmul.bf16.gmra.mxu0 %v488
    %v508 = vpop.f32.mrf.mxu0
    %v509 = vadd.f32 0.0, %v508
    %v510 = vpop.f32.mrf.mxu0
    %v511 = vadd.f32 0.0, %v510
    %512 = vmatmul.bf16.gmra.mxu0 %v491
    %v513 = vpop.f32.mrf.mxu0
    %v514 = vadd.f32 0.0, %v513
    %v515 = vpop.f32.mrf.mxu0
    %v516 = vadd.f32 0.0, %v515
    %517 = vmatmul.bf16.gmra.mxu0 %v494
    %v518 = vpop.f32.mrf.mxu0
    %v519 = vadd.f32 0.0, %v518
    %v520 = vpop.f32.mrf.mxu0
    %v521 = vadd.f32 0.0, %v520
    %522 = vmatmul.bf16.gmra.mxu0 %v497
    %v523 = vpop.f32.mrf.mxu0
    %v524 = vadd.f32 0.0, %v523
    %v525 = vpop.f32.mrf.mxu0
    %v526 = vadd.f32 0.0, %v525
    %527 = vdwg.mxu0
    %v528 = vadd.f32 %v414, %v509
    %v529 = vadd.f32 %v416, %v511
    %v530 = vadd.f32 %v419, %v514
    %v531 = vadd.f32 %v421, %v516
    %v532 = vadd.f32 %v424, %v519
    %v533 = vadd.f32 %v426, %v521
    %v534 = vadd.f32 %v429, %v524
    %v535 = vadd.f32 %v431, %v526
    %s536 = scalar_lea.vmem %s2, 96
    %v537 = vld [vmem:[%s536] sm:$0xf]
    %v538 = vld [vmem:[%s536 + $0x4] sm:$0xf]
    %v539 = vld [vmem:[%s536 + $0x8] sm:$0xf]
    %v540 = vld [vmem:[%s536 + $0xc] sm:$0xf]
    %v541 = vld [vmem:[%s536 + $0x10] sm:$0xf]
    %v542 = vld [vmem:[%s536 + $0x14] sm:$0xf]
    %v543 = vld [vmem:[%s536 + $0x18] sm:$0xf]
    %v544 = vld [vmem:[%s536 + $0x1c] sm:$0xf]
    %v553 = vunpack.c.l.b16 %v537
    %v554 = vunpack.c.l.b16 %v538
    %v555 = vunpack.c.l.b16 %v539
    %v556 = vunpack.c.l.b16 %v540
    %v557 = vunpack.c.l.b16 %v541
    %v558 = vunpack.c.l.b16 %v542
    %v559 = vunpack.c.l.b16 %v543
    %v560 = vunpack.c.l.b16 %v544
    %v561 = vpack.c.b16 %v554, %v553
    %v562 = vpack.c.b16 %v556, %v555
    %v563 = vpack.c.b16 %v558, %v557
    %v564 = vpack.c.b16 %v560, %v559
    %565 = vrot.lane.b32.xlu0 %v273, 125
    %v566 = vpop.permute.xlu0 %565
    %567 = vrot.lane.b32.xlu0 %v274, 125
    %v568 = vpop.permute.xlu0 %567
    %569 = vrot.lane.b32.xlu0 %v275, 125
    %v570 = vpop.permute.xlu0 %569
    %571 = vrot.lane.b32.xlu0 %v276, 125
    %v572 = vpop.permute.xlu0 %571
    %573 = vrot.lane.b32.xlu0 %v277, 125
    %v574 = vpop.permute.xlu0 %573
    %575 = vrot.lane.b32.xlu0 %v278, 125
    %v576 = vpop.permute.xlu0 %575
    %577 = vrot.lane.b32.xlu0 %v279, 125
    %v578 = vpop.permute.xlu0 %577
    %579 = vrot.lane.b32.xlu0 %v280, 125
    %v580 = vpop.permute.xlu0 %579
    %vm581 = vcmask 1022976
    %v582 = vsel %vm581, %v566, %v568
    %v583 = vsel %vm581, %v570, %v572
    %v584 = vsel %vm581, %v574, %v576
    %v585 = vsel %vm581, %v578, %v580
    %v591 = vsel %vm306, %v561, 0
    %v594 = vsel %vm306, %v562, 0
    %v597 = vsel %vm306, %v563, 0
    %v600 = vsel %vm306, %v564, 0
    %602 = vmatpush.bf16.msra.mxu0 0
    %603 = vmatpush.bf16.msra.mxu0 0
    %604 = vmatpush.bf16.msra.mxu0 0
    %605 = vmatpush.bf16.msra.mxu0 0
    %606 = vmatpush.bf16.msra.mxu0 %v585
    %607 = vmatpush.bf16.msra.mxu0 %v584
    %608 = vmatpush.bf16.msra.mxu0 %v583
    %609 = vmatpush.bf16.msra.mxu0 %v582
    %610 = vmatmul.bf16.gmra.mxu0 %v591
    %v611 = vpop.f32.mrf.mxu0
    %v612 = vadd.f32 0.0, %v611
    %v613 = vpop.f32.mrf.mxu0
    %v614 = vadd.f32 0.0, %v613
    %615 = vmatmul.bf16.gmra.mxu0 %v594
    %v616 = vpop.f32.mrf.mxu0
    %v617 = vadd.f32 0.0, %v616
    %v618 = vpop.f32.mrf.mxu0
    %v619 = vadd.f32 0.0, %v618
    %620 = vmatmul.bf16.gmra.mxu0 %v597
    %v621 = vpop.f32.mrf.mxu0
    %v622 = vadd.f32 0.0, %v621
    %v623 = vpop.f32.mrf.mxu0
    %v624 = vadd.f32 0.0, %v623
    %625 = vmatmul.bf16.gmra.mxu0 %v600
    %v626 = vpop.f32.mrf.mxu0
    %v627 = vadd.f32 0.0, %v626
    %v628 = vpop.f32.mrf.mxu0
    %v629 = vadd.f32 0.0, %v628
    %630 = vdwg.mxu0
    %v631 = vadd.f32 %v528, %v612
    %v632 = vadd.f32 %v529, %v614
    %v633 = vadd.f32 %v530, %v617
    %v634 = vadd.f32 %v531, %v619
    %v635 = vadd.f32 %v532, %v622
    %v636 = vadd.f32 %v533, %v624
    %v637 = vadd.f32 %v534, %v627
    %v638 = vadd.f32 %v535, %v629
    %s639 = scalar_lea.vmem %s2, 128
    %v640 = vld [vmem:[%s639] sm:$0xf]
    %v641 = vld [vmem:[%s639 + $0x4] sm:$0xf]
    %v642 = vld [vmem:[%s639 + $0x8] sm:$0xf]
    %v643 = vld [vmem:[%s639 + $0xc] sm:$0xf]
    %v644 = vld [vmem:[%s639 + $0x10] sm:$0xf]
    %v645 = vld [vmem:[%s639 + $0x14] sm:$0xf]
    %v646 = vld [vmem:[%s639 + $0x18] sm:$0xf]
    %v647 = vld [vmem:[%s639 + $0x1c] sm:$0xf]
    %v656 = vunpack.c.l.b16 %v640
    %v657 = vunpack.c.l.b16 %v641
    %v658 = vunpack.c.l.b16 %v642
    %v659 = vunpack.c.l.b16 %v643
    %v660 = vunpack.c.l.b16 %v644
    %v661 = vunpack.c.l.b16 %v645
    %v662 = vunpack.c.l.b16 %v646
    %v663 = vunpack.c.l.b16 %v647
    %v664 = vpack.c.b16 %v657, %v656
    %v665 = vpack.c.b16 %v659, %v658
    %v666 = vpack.c.b16 %v661, %v660
    %v667 = vpack.c.b16 %v663, %v662
    %668 = vrot.lane.b32.xlu0 %v273, 124
    %v669 = vpop.permute.xlu0 %668
    %670 = vrot.lane.b32.xlu0 %v274, 124
    %v671 = vpop.permute.xlu0 %670
    %672 = vrot.lane.b32.xlu0 %v275, 124
    %v673 = vpop.permute.xlu0 %672
    %674 = vrot.lane.b32.xlu0 %v276, 124
    %v675 = vpop.permute.xlu0 %674
    %676 = vrot.lane.b32.xlu0 %v277, 124
    %v677 = vpop.permute.xlu0 %676
    %678 = vrot.lane.b32.xlu0 %v278, 124
    %v679 = vpop.permute.xlu0 %678
    %680 = vrot.lane.b32.xlu0 %v279, 124
    %v681 = vpop.permute.xlu0 %680
    %682 = vrot.lane.b32.xlu0 %v280, 124
    %v683 = vpop.permute.xlu0 %682
    %vm684 = vcmask 1014784
    %v685 = vsel %vm684, %v669, %v671
    %v686 = vsel %vm684, %v673, %v675
    %v687 = vsel %vm684, %v677, %v679
    %v688 = vsel %vm684, %v681, %v683
    %v694 = vsel %vm306, %v664, 0
    %v697 = vsel %vm306, %v665, 0
    %v700 = vsel %vm306, %v666, 0
    %v703 = vsel %vm306, %v667, 0
    %705 = vmatpush.bf16.msra.mxu0 0
    %706 = vmatpush.bf16.msra.mxu0 0
    %707 = vmatpush.bf16.msra.mxu0 0
    %708 = vmatpush.bf16.msra.mxu0 0
    %709 = vmatpush.bf16.msra.mxu0 %v688
    %710 = vmatpush.bf16.msra.mxu0 %v687
    %711 = vmatpush.bf16.msra.mxu0 %v686
    %712 = vmatpush.bf16.msra.mxu0 %v685
    %713 = vmatmul.bf16.gmra.mxu0 %v694
    %v714 = vpop.f32.mrf.mxu0
    %v715 = vadd.f32 0.0, %v714
    %v716 = vpop.f32.mrf.mxu0
    %v717 = vadd.f32 0.0, %v716
    %718 = vmatmul.bf16.gmra.mxu0 %v697
    %v719 = vpop.f32.mrf.mxu0
    %v720 = vadd.f32 0.0, %v719
    %v721 = vpop.f32.mrf.mxu0
    %v722 = vadd.f32 0.0, %v721
    %723 = vmatmul.bf16.gmra.mxu0 %v700
    %v724 = vpop.f32.mrf.mxu0
    %v725 = vadd.f32 0.0, %v724
    %v726 = vpop.f32.mrf.mxu0
    %v727 = vadd.f32 0.0, %v726
    %728 = vmatmul.bf16.gmra.mxu0 %v703
    %v729 = vpop.f32.mrf.mxu0
    %v730 = vadd.f32 0.0, %v729
    %v731 = vpop.f32.mrf.mxu0
    %v732 = vadd.f32 0.0, %v731
    %733 = vdwg.mxu0
    %v734 = vadd.f32 %v631, %v715
    %v735 = vadd.f32 %v632, %v717
    %v736 = vadd.f32 %v633, %v720
    %v737 = vadd.f32 %v634, %v722
    %v738 = vadd.f32 %v635, %v725
    %v739 = vadd.f32 %v636, %v727
    %v740 = vadd.f32 %v637, %v730
    %v741 = vadd.f32 %v638, %v732
    %s742 = scalar_lea.vmem %s2, 160
    %v743 = vld [vmem:[%s742] sm:$0xf]
    %v744 = vld [vmem:[%s742 + $0x4] sm:$0xf]
    %v745 = vld [vmem:[%s742 + $0x8] sm:$0xf]
    %v746 = vld [vmem:[%s742 + $0xc] sm:$0xf]
    %v747 = vld [vmem:[%s742 + $0x10] sm:$0xf]
    %v748 = vld [vmem:[%s742 + $0x14] sm:$0xf]
    %v749 = vld [vmem:[%s742 + $0x18] sm:$0xf]
    %v750 = vld [vmem:[%s742 + $0x1c] sm:$0xf]
    %v759 = vunpack.c.l.b16 %v743
    %v760 = vunpack.c.l.b16 %v744
    %v761 = vunpack.c.l.b16 %v745
    %v762 = vunpack.c.l.b16 %v746
    %v763 = vunpack.c.l.b16 %v747
    %v764 = vunpack.c.l.b16 %v748
    %v765 = vunpack.c.l.b16 %v749
    %v766 = vunpack.c.l.b16 %v750
    %v767 = vpack.c.b16 %v760, %v759
    %v768 = vpack.c.b16 %v762, %v761
    %v769 = vpack.c.b16 %v764, %v763
    %v770 = vpack.c.b16 %v766, %v765
    %771 = vrot.lane.b32.xlu0 %v273, 123
    %v772 = vpop.permute.xlu0 %771
    %773 = vrot.lane.b32.xlu0 %v274, 123
    %v774 = vpop.permute.xlu0 %773
    %775 = vrot.lane.b32.xlu0 %v275, 123
    %v776 = vpop.permute.xlu0 %775
    %777 = vrot.lane.b32.xlu0 %v276, 123
    %v778 = vpop.permute.xlu0 %777
    %779 = vrot.lane.b32.xlu0 %v277, 123
    %v780 = vpop.permute.xlu0 %779
    %781 = vrot.lane.b32.xlu0 %v278, 123
    %v782 = vpop.permute.xlu0 %781
    %783 = vrot.lane.b32.xlu0 %v279, 123
    %v784 = vpop.permute.xlu0 %783
    %785 = vrot.lane.b32.xlu0 %v280, 123
    %v786 = vpop.permute.xlu0 %785
    %vm787 = vcmask 1006592
    %v788 = vsel %vm787, %v772, %v774
    %v789 = vsel %vm787, %v776, %v778
    %v790 = vsel %vm787, %v780, %v782
    %v791 = vsel %vm787, %v784, %v786
    %v797 = vsel %vm306, %v767, 0
    %v800 = vsel %vm306, %v768, 0
    %v803 = vsel %vm306, %v769, 0
    %v806 = vsel %vm306, %v770, 0
    %808 = vmatpush.bf16.msra.mxu0 0
    %809 = vmatpush.bf16.msra.mxu0 0
    %810 = vmatpush.bf16.msra.mxu0 0
    %811 = vmatpush.bf16.msra.mxu0 0
    %812 = vmatpush.bf16.msra.mxu0 %v791
    %813 = vmatpush.bf16.msra.mxu0 %v790
    %814 = vmatpush.bf16.msra.mxu0 %v789
    %815 = vmatpush.bf16.msra.mxu0 %v788
    %816 = vmatmul.bf16.gmra.mxu0 %v797
    %v817 = vpop.f32.mrf.mxu0
    %v818 = vadd.f32 0.0, %v817
    %v819 = vpop.f32.mrf.mxu0
    %v820 = vadd.f32 0.0, %v819
    %821 = vmatmul.bf16.gmra.mxu0 %v800
    %v822 = vpop.f32.mrf.mxu0
    %v823 = vadd.f32 0.0, %v822
    %v824 = vpop.f32.mrf.mxu0
    %v825 = vadd.f32 0.0, %v824
    %826 = vmatmul.bf16.gmra.mxu0 %v803
    %v827 = vpop.f32.mrf.mxu0
    %v828 = vadd.f32 0.0, %v827
    %v829 = vpop.f32.mrf.mxu0
    %v830 = vadd.f32 0.0, %v829
    %831 = vmatmul.bf16.gmra.mxu0 %v806
    %v832 = vpop.f32.mrf.mxu0
    %v833 = vadd.f32 0.0, %v832
    %v834 = vpop.f32.mrf.mxu0
    %v835 = vadd.f32 0.0, %v834
    %836 = vdwg.mxu0
    %v837 = vadd.f32 %v734, %v818
    %v838 = vadd.f32 %v735, %v820
    %v839 = vadd.f32 %v736, %v823
    %v840 = vadd.f32 %v737, %v825
    %v841 = vadd.f32 %v738, %v828
    %v842 = vadd.f32 %v739, %v830
    %v843 = vadd.f32 %v740, %v833
    %v844 = vadd.f32 %v741, %v835
    %s845 = scalar_lea.vmem %s2, 192
    %v846 = vld [vmem:[%s845] sm:$0xf]
    %v847 = vld [vmem:[%s845 + $0x4] sm:$0xf]
    %v848 = vld [vmem:[%s845 + $0x8] sm:$0xf]
    %v849 = vld [vmem:[%s845 + $0xc] sm:$0xf]
    %v850 = vld [vmem:[%s845 + $0x10] sm:$0xf]
    %v851 = vld [vmem:[%s845 + $0x14] sm:$0xf]
    %v852 = vld [vmem:[%s845 + $0x18] sm:$0xf]
    %v853 = vld [vmem:[%s845 + $0x1c] sm:$0xf]
    %v862 = vunpack.c.l.b16 %v846
    %v863 = vunpack.c.l.b16 %v847
    %v864 = vunpack.c.l.b16 %v848
    %v865 = vunpack.c.l.b16 %v849
    %v866 = vunpack.c.l.b16 %v850
    %v867 = vunpack.c.l.b16 %v851
    %v868 = vunpack.c.l.b16 %v852
    %v869 = vunpack.c.l.b16 %v853
    %v870 = vpack.c.b16 %v863, %v862
    %v871 = vpack.c.b16 %v865, %v864
    %v872 = vpack.c.b16 %v867, %v866
    %v873 = vpack.c.b16 %v869, %v868
    %874 = vrot.lane.b32.xlu0 %v273, 122
    %v875 = vpop.permute.xlu0 %874
    %876 = vrot.lane.b32.xlu0 %v274, 122
    %v877 = vpop.permute.xlu0 %876
    %878 = vrot.lane.b32.xlu0 %v275, 122
    %v879 = vpop.permute.xlu0 %878
    %880 = vrot.lane.b32.xlu0 %v276, 122
    %v881 = vpop.permute.xlu0 %880
    %882 = vrot.lane.b32.xlu0 %v277, 122
    %v883 = vpop.permute.xlu0 %882
    %884 = vrot.lane.b32.xlu0 %v278, 122
    %v885 = vpop.permute.xlu0 %884
    %886 = vrot.lane.b32.xlu0 %v279, 122
    %v887 = vpop.permute.xlu0 %886
    %888 = vrot.lane.b32.xlu0 %v280, 122
    %v889 = vpop.permute.xlu0 %888
    %vm890 = vcmask 998400
    %v891 = vsel %vm890, %v875, %v877
    %v892 = vsel %vm890, %v879, %v881
    %v893 = vsel %vm890, %v883, %v885
    %v894 = vsel %vm890, %v887, %v889
    %v900 = vsel %vm306, %v870, 0
    %v903 = vsel %vm306, %v871, 0
    %v906 = vsel %vm306, %v872, 0
    %v909 = vsel %vm306, %v873, 0
    %911 = vmatpush.bf16.msra.mxu0 0
    %912 = vmatpush.bf16.msra.mxu0 0
    %913 = vmatpush.bf16.msra.mxu0 0
    %914 = vmatpush.bf16.msra.mxu0 0
    %915 = vmatpush.bf16.msra.mxu0 %v894
    %916 = vmatpush.bf16.msra.mxu0 %v893
    %917 = vmatpush.bf16.msra.mxu0 %v892
    %918 = vmatpush.bf16.msra.mxu0 %v891
    %919 = vmatmul.bf16.gmra.mxu0 %v900
    %v920 = vpop.f32.mrf.mxu0
    %v921 = vadd.f32 0.0, %v920
    %v922 = vpop.f32.mrf.mxu0
    %v923 = vadd.f32 0.0, %v922
    %924 = vmatmul.bf16.gmra.mxu0 %v903
    %v925 = vpop.f32.mrf.mxu0
    %v926 = vadd.f32 0.0, %v925
    %v927 = vpop.f32.mrf.mxu0
    %v928 = vadd.f32 0.0, %v927
    %929 = vmatmul.bf16.gmra.mxu0 %v906
    %v930 = vpop.f32.mrf.mxu0
    %v931 = vadd.f32 0.0, %v930
    %v932 = vpop.f32.mrf.mxu0
    %v933 = vadd.f32 0.0, %v932
    %934 = vmatmul.bf16.gmra.mxu0 %v909
    %v935 = vpop.f32.mrf.mxu0
    %v936 = vadd.f32 0.0, %v935
    %v937 = vpop.f32.mrf.mxu0
    %v938 = vadd.f32 0.0, %v937
    %939 = vdwg.mxu0
    %v940 = vadd.f32 %v837, %v921
    %v941 = vadd.f32 %v838, %v923
    %v942 = vadd.f32 %v839, %v926
    %v943 = vadd.f32 %v840, %v928
    %v944 = vadd.f32 %v841, %v931
    %v945 = vadd.f32 %v842, %v933
    %v946 = vadd.f32 %v843, %v936
    %v947 = vadd.f32 %v844, %v938
    %s948 = scalar_lea.vmem %s2, 224
    %v949 = vld [vmem:[%s948] sm:$0xf]
    %v950 = vld [vmem:[%s948 + $0x4] sm:$0xf]
    %v951 = vld [vmem:[%s948 + $0x8] sm:$0xf]
    %v952 = vld [vmem:[%s948 + $0xc] sm:$0xf]
    %v953 = vld [vmem:[%s948 + $0x10] sm:$0xf]
    %v954 = vld [vmem:[%s948 + $0x14] sm:$0xf]
    %v955 = vld [vmem:[%s948 + $0x18] sm:$0xf]
    %v956 = vld [vmem:[%s948 + $0x1c] sm:$0xf]
    %v965 = vunpack.c.l.b16 %v949
    %v966 = vunpack.c.l.b16 %v950
    %v967 = vunpack.c.l.b16 %v951
    %v968 = vunpack.c.l.b16 %v952
    %v969 = vunpack.c.l.b16 %v953
    %v970 = vunpack.c.l.b16 %v954
    %v971 = vunpack.c.l.b16 %v955
    %v972 = vunpack.c.l.b16 %v956
    %v973 = vpack.c.b16 %v966, %v965
    %v974 = vpack.c.b16 %v968, %v967
    %v975 = vpack.c.b16 %v970, %v969
    %v976 = vpack.c.b16 %v972, %v971
    %977 = vrot.lane.b32.xlu0 %v273, 121
    %v978 = vpop.permute.xlu0 %977
    %979 = vrot.lane.b32.xlu0 %v274, 121
    %v980 = vpop.permute.xlu0 %979
    %981 = vrot.lane.b32.xlu0 %v275, 121
    %v982 = vpop.permute.xlu0 %981
    %983 = vrot.lane.b32.xlu0 %v276, 121
    %v984 = vpop.permute.xlu0 %983
    %985 = vrot.lane.b32.xlu0 %v277, 121
    %v986 = vpop.permute.xlu0 %985
    %987 = vrot.lane.b32.xlu0 %v278, 121
    %v988 = vpop.permute.xlu0 %987
    %989 = vrot.lane.b32.xlu0 %v279, 121
    %v990 = vpop.permute.xlu0 %989
    %991 = vrot.lane.b32.xlu0 %v280, 121
    %v992 = vpop.permute.xlu0 %991
    %vm993 = vcmask 990208
    %v994 = vsel %vm993, %v978, %v980
    %v995 = vsel %vm993, %v982, %v984
    %v996 = vsel %vm993, %v986, %v988
    %v997 = vsel %vm993, %v990, %v992
    %v1003 = vsel %vm306, %v973, 0
    %v1006 = vsel %vm306, %v974, 0
    %v1009 = vsel %vm306, %v975, 0
    %v1012 = vsel %vm306, %v976, 0
    %1014 = vmatpush.bf16.msra.mxu0 0
    %1015 = vmatpush.bf16.msra.mxu0 0
    %1016 = vmatpush.bf16.msra.mxu0 0
    %1017 = vmatpush.bf16.msra.mxu0 0
    %1018 = vmatpush.bf16.msra.mxu0 %v997
    %1019 = vmatpush.bf16.msra.mxu0 %v996
    %1020 = vmatpush.bf16.msra.mxu0 %v995
    %1021 = vmatpush.bf16.msra.mxu0 %v994
    %1022 = vmatmul.bf16.gmra.mxu0 %v1003
    %v1023 = vpop.f32.mrf.mxu0
    %v1024 = vadd.f32 0.0, %v1023
    %v1025 = vpop.f32.mrf.mxu0
    %v1026 = vadd.f32 0.0, %v1025
    %1027 = vmatmul.bf16.gmra.mxu0 %v1006
    %v1028 = vpop.f32.mrf.mxu0
    %v1029 = vadd.f32 0.0, %v1028
    %v1030 = vpop.f32.mrf.mxu0
    %v1031 = vadd.f32 0.0, %v1030
    %1032 = vmatmul.bf16.gmra.mxu0 %v1009
    %v1033 = vpop.f32.mrf.mxu0
    %v1034 = vadd.f32 0.0, %v1033
    %v1035 = vpop.f32.mrf.mxu0
    %v1036 = vadd.f32 0.0, %v1035
    %1037 = vmatmul.bf16.gmra.mxu0 %v1012
    %v1038 = vpop.f32.mrf.mxu0
    %v1039 = vadd.f32 0.0, %v1038
    %v1040 = vpop.f32.mrf.mxu0
    %v1041 = vadd.f32 0.0, %v1040
    %1042 = vdwg.mxu0
    %v1043 = vadd.f32 %v940, %v1024
    %v1044 = vadd.f32 %v941, %v1026
    %v1045 = vadd.f32 %v942, %v1029
    %v1046 = vadd.f32 %v943, %v1031
    %v1047 = vadd.f32 %v944, %v1034
    %v1048 = vadd.f32 %v945, %v1036
    %v1049 = vadd.f32 %v946, %v1039
    %v1050 = vadd.f32 %v947, %v1041
    %s1051 = scalar_lea.vmem %s2, 256
    %v1052 = vld [vmem:[%s1051] sm:$0xf]
    %v1053 = vld [vmem:[%s1051 + $0x4] sm:$0xf]
    %v1054 = vld [vmem:[%s1051 + $0x8] sm:$0xf]
    %v1055 = vld [vmem:[%s1051 + $0xc] sm:$0xf]
    %v1056 = vld [vmem:[%s1051 + $0x10] sm:$0xf]
    %v1057 = vld [vmem:[%s1051 + $0x14] sm:$0xf]
    %v1058 = vld [vmem:[%s1051 + $0x18] sm:$0xf]
    %v1059 = vld [vmem:[%s1051 + $0x1c] sm:$0xf]
    %v1068 = vunpack.c.l.b16 %v1052
    %v1069 = vunpack.c.l.b16 %v1053
    %v1070 = vunpack.c.l.b16 %v1054
    %v1071 = vunpack.c.l.b16 %v1055
    %v1072 = vunpack.c.l.b16 %v1056
    %v1073 = vunpack.c.l.b16 %v1057
    %v1074 = vunpack.c.l.b16 %v1058
    %v1075 = vunpack.c.l.b16 %v1059
    %v1076 = vpack.c.b16 %v1069, %v1068
    %v1077 = vpack.c.b16 %v1071, %v1070
    %v1078 = vpack.c.b16 %v1073, %v1072
    %v1079 = vpack.c.b16 %v1075, %v1074
    %1080 = vrot.lane.b32.xlu0 %v273, 120
    %v1081 = vpop.permute.xlu0 %1080
    %1082 = vrot.lane.b32.xlu0 %v274, 120
    %v1083 = vpop.permute.xlu0 %1082
    %1084 = vrot.lane.b32.xlu0 %v275, 120
    %v1085 = vpop.permute.xlu0 %1084
    %1086 = vrot.lane.b32.xlu0 %v276, 120
    %v1087 = vpop.permute.xlu0 %1086
    %1088 = vrot.lane.b32.xlu0 %v277, 120
    %v1089 = vpop.permute.xlu0 %1088
    %1090 = vrot.lane.b32.xlu0 %v278, 120
    %v1091 = vpop.permute.xlu0 %1090
    %1092 = vrot.lane.b32.xlu0 %v279, 120
    %v1093 = vpop.permute.xlu0 %1092
    %1094 = vrot.lane.b32.xlu0 %v280, 120
    %v1095 = vpop.permute.xlu0 %1094
    %vm1096 = vcmask 982016
    %v1097 = vsel %vm1096, %v1081, %v1083
    %v1098 = vsel %vm1096, %v1085, %v1087
    %v1099 = vsel %vm1096, %v1089, %v1091
    %v1100 = vsel %vm1096, %v1093, %v1095
    %v1106 = vsel %vm306, %v1076, 0
    %v1109 = vsel %vm306, %v1077, 0
    %v1112 = vsel %vm306, %v1078, 0
    %v1115 = vsel %vm306, %v1079, 0
    %1117 = vmatpush.bf16.msra.mxu0 0
    %1118 = vmatpush.bf16.msra.mxu0 0
    %1119 = vmatpush.bf16.msra.mxu0 0
    %1120 = vmatpush.bf16.msra.mxu0 0
    %1121 = vmatpush.bf16.msra.mxu0 %v1100
    %1122 = vmatpush.bf16.msra.mxu0 %v1099
    %1123 = vmatpush.bf16.msra.mxu0 %v1098
    %1124 = vmatpush.bf16.msra.mxu0 %v1097
    %1125 = vmatmul.bf16.gmra.mxu0 %v1106
    %v1126 = vpop.f32.mrf.mxu0
    %v1127 = vadd.f32 0.0, %v1126
    %v1128 = vpop.f32.mrf.mxu0
    %v1129 = vadd.f32 0.0, %v1128
    %1130 = vmatmul.bf16.gmra.mxu0 %v1109
    %v1131 = vpop.f32.mrf.mxu0
    %v1132 = vadd.f32 0.0, %v1131
    %v1133 = vpop.f32.mrf.mxu0
    %v1134 = vadd.f32 0.0, %v1133
    %1135 = vmatmul.bf16.gmra.mxu0 %v1112
    %v1136 = vpop.f32.mrf.mxu0
    %v1137 = vadd.f32 0.0, %v1136
    %v1138 = vpop.f32.mrf.mxu0
    %v1139 = vadd.f32 0.0, %v1138
    %1140 = vmatmul.bf16.gmra.mxu0 %v1115
    %v1141 = vpop.f32.mrf.mxu0
    %v1142 = vadd.f32 0.0, %v1141
    %v1143 = vpop.f32.mrf.mxu0
    %v1144 = vadd.f32 0.0, %v1143
    %1145 = vdwg.mxu0
    %v1146 = vadd.f32 %v1043, %v1127
    %v1147 = vadd.f32 %v1044, %v1129
    %v1148 = vadd.f32 %v1045, %v1132
    %v1149 = vadd.f32 %v1046, %v1134
    %v1150 = vadd.f32 %v1047, %v1137
    %v1151 = vadd.f32 %v1048, %v1139
    %v1152 = vadd.f32 %v1049, %v1142
    %v1153 = vadd.f32 %v1050, %v1144
    %v1154 = vld [vmem:[%s3] sm:$0xff]
    %v1155 = vld [vmem:[%s3 + $0x8] sm:$0xff]
    %v1156 = vld [vmem:[%s3 + $0x10] sm:$0xff]
    %v1157 = vld [vmem:[%s3 + $0x18] sm:$0xff]
    %v1158 = vld [vmem:[%s3 + $0x20] sm:$0xff]
    %v1159 = vld [vmem:[%s3 + $0x28] sm:$0xff]
    %v1160 = vld [vmem:[%s3 + $0x30] sm:$0xff]
    %v1161 = vld [vmem:[%s3 + $0x38] sm:$0xff]
    %1163 = vset.pattern.permute.xlu0 0
    %1164 = vperm.xlu0 %1163, %v1154
    %v1165 = vpop.permute.xlu0 %1164
    %1168 = vset.pattern.permute.xlu0 0
    %1169 = vperm.xlu0 %1168, %v1155
    %v1170 = vpop.permute.xlu0 %1169
    %1173 = vset.pattern.permute.xlu0 0
    %1174 = vperm.xlu0 %1173, %v1156
    %v1175 = vpop.permute.xlu0 %1174
    %1178 = vset.pattern.permute.xlu0 0
    %1179 = vperm.xlu0 %1178, %v1157
    %v1180 = vpop.permute.xlu0 %1179
    %1183 = vset.pattern.permute.xlu0 0
    %1184 = vperm.xlu0 %1183, %v1158
    %v1185 = vpop.permute.xlu0 %1184
    %1188 = vset.pattern.permute.xlu0 0
    %1189 = vperm.xlu0 %1188, %v1159
    %v1190 = vpop.permute.xlu0 %1189
    %1193 = vset.pattern.permute.xlu0 0
    %1194 = vperm.xlu0 %1193, %v1160
    %v1195 = vpop.permute.xlu0 %1194
    %1198 = vset.pattern.permute.xlu0 0
    %1199 = vperm.xlu0 %1198, %v1161
    %v1200 = vpop.permute.xlu0 %1199
    %v1202 = vadd.f32 %v1146, %v1165
    %v1203 = vadd.f32 %v1147, %v1170
    %v1204 = vadd.f32 %v1148, %v1175
    %v1205 = vadd.f32 %v1149, %v1180
    %v1206 = vadd.f32 %v1150, %v1185
    %v1207 = vadd.f32 %v1151, %v1190
    %v1208 = vadd.f32 %v1152, %v1195
    %v1209 = vadd.f32 %v1153, %v1200
    %v1210 = vmax.f32 %v1202, 0.0
    %v1211 = vmax.f32 %v1203, 0.0
    %v1212 = vmax.f32 %v1204, 0.0
    %v1213 = vmax.f32 %v1205, 0.0
    %v1214 = vmax.f32 %v1206, 0.0
    %v1215 = vmax.f32 %v1207, 0.0
    %v1216 = vmax.f32 %v1208, 0.0
    %v1217 = vmax.f32 %v1209, 0.0
    %1218 = vst [vmem:[%s4] sm:$0xff] %v1210
    %1219 = vst [vmem:[%s4 + $0x8] sm:$0xff] %v1211
    %1220 = vst [vmem:[%s4 + $0x10] sm:$0xff] %v1212
    %1221 = vst [vmem:[%s4 + $0x18] sm:$0xff] %v1213
    %1222 = vst [vmem:[%s4 + $0x20] sm:$0xff] %v1214
    %1223 = vst [vmem:[%s4 + $0x28] sm:$0xff] %v1215
    %1224 = vst [vmem:[%s4 + $0x30] sm:$0xff] %v1216
    %1225 = vst [vmem:[%s4 + $0x38] sm:$0xff] %v1217
    // Predicated region
    $region100: #{cnn_only_forward.5} parent=1 // pred_check
      _
    $region101: #{cnn_only_forward.5} parent=1 // pred_check_branch
      %1227 = sbr.rel (0) target = $region103
    $region102: #{cnn_only_forward.5} parent=1 // pred_region
      _
    $region103: #{cnn_only_forward.5} parent=1 // pred_fallthru
      _
    // Predicated region
    $region104: #{cnn_only_forward.5} parent=1 // pred_check
      _
    $region105: #{cnn_only_forward.5} parent=1 // pred_check_branch
      %1229 = sbr.rel (0) target = $region107
    $region106: #{cnn_only_forward.5} parent=1 // pred_region
      _
    $region107: #{cnn_only_forward.5} parent=1 // pred_fallthru
      _

</llo_original>
